<compile_context>
chip_gen: v7x
topology: tpu7x:2x2x1
jax: 0.10.0
libtpu: 0.0.40
codegen_flags: <defaults>
</compile_context>

<pallas_src>
import jax
import jax.numpy as jnp
import numpy as np
from jax import lax
from jax.experimental import pallas as pl
from jax.experimental.pallas import tpu as pltpu

_LANE = 128


def _round_up(x, m):
    return (x + m - 1) // m * m


def _vmem_limit_bytes():
    """Per-generation VMEM budget: ~3/4 of physical VMEM, clamped to a safe range."""
    try:
        cap = int(pltpu.get_tpu_info().vmem_capacity_bytes)
    except Exception:
        cap = 64 * 1024 * 1024
    return int(min(max(cap * 3 // 4, 32 * 1024 * 1024), 112 * 1024 * 1024))


def acblock_forward(x_nchw, params, kernel_size, padding, eps=1e-5, use_bf16=False):
    # TODO(synk): CropLayer crop path (padding < kernel_size // 2), stride > 1,
    # dilation > 1, groups > 1 and last_bn are not implemented; module defaults
    # are covered.
    assert padding == kernel_size // 2
    K = kernel_size
    p = padding
    c = K // 2
    N, Cin, H, W = x_nchw.shape
    Cout = params["w_sq"].shape[0]
    Cp = _round_up(Cout, _LANE)          # lane-dense output channel count
    Hp, Wp = H + 2 * p, W + 2 * p
    HW = H * W
    f32 = jnp.float32
    dot_dtype = jnp.bfloat16 if use_bf16 else f32
    vmem_limit = _vmem_limit_bytes()

    # Split the batch across TensorCores (v7x megacore); neutral on 1-TC chips.
    n_par = 2 if (N >= 2 and N % 2 == 0) else 1
    n_per = N // n_par

    # ---- input: NCHW -> NHWC, one shared zero-pad ---------------------------
    x = jnp.transpose(x_nchw, (0, 2, 3, 1)).astype(dot_dtype)
    xpad = jnp.pad(x, ((0, 0), (p, p), (p, p), (0, 0)))      # (N, Hp, Wp, Cin)

    # ---- weights: embed ver/hor in the KxK tap grid, pad Cout -> Cp ---------
    wsq = jnp.transpose(params["w_sq"], (2, 3, 1, 0)).astype(f32)            # (K,K,Cin,Cout)
    wver = jnp.transpose(params["w_ver"][:, :, :, 0], (2, 1, 0)).astype(f32)  # (K,Cin,Cout)
    whor = jnp.transpose(params["w_hor"][:, :, 0, :], (2, 1, 0)).astype(f32)  # (K,Cin,Cout)
    wver_emb = jnp.zeros((K, K, Cin, Cout), f32).at[:, c].set(wver)  # centre column
    whor_emb = jnp.zeros((K, K, Cin, Cout), f32).at[c].set(whor)     # centre row

    def _pad_cout(w):
        return jnp.pad(w, ((0, 0), (0, 0), (0, 0), (0, Cp - Cout)))

    # Branch column order [ver | sq | hor]: every tap's active branches form a
    # CONTIGUOUS, 128-aligned column window of the packed weight.
    branch_w = [_pad_cout(wver_emb), _pad_cout(wsq), _pad_cout(whor_emb)]    # (K,K,Cin,Cp) each
    w_all = jnp.concatenate(branch_w, axis=-1).astype(dot_dtype)             # (K,K,Cin,3*Cp)

    # ------------------- pass 1: branch statistics only ----------------------
    def stats_kernel(xpad_ref, w_hbm, sum_ref, sumsq_ref, w_scr):
        # Single-buffer the grid-invariant packed weight: one HBM->VMEM copy
        # per core (pl.ANY input + persistent scratch).
        @pl.when(pl.program_id(1) == 0)
        def _():
            pltpu.sync_copy(w_hbm, w_scr)

        x_img = xpad_ref[0]                                  # (Hp, Wp, Cin)

        def _add(acc, val):                                  # first tap writes
            return val if acc is None else acc + val

        y_ver = y_sq = y_hor = None
        # dw hoisted: one strided W-window relayout per dw (K total, not K*K);
        # the dh slice is a contiguous row window of the flattened copy.
        # TODO(synk): im2col tap packing for very small Cin.
        for dw in range(K):
            x_w = x_img[:, dw:dw + W, :].reshape(Hp * W, Cin)
            has_ver = dw == c                                # centre column -> vertical
            lo = 0 if has_ver else Cp
            for dh in range(K):
                has_hor = dh == c                            # centre row -> horizontal
                hi = 3 * Cp if has_hor else 2 * Cp
                patch = x_w[dh * W:dh * W + HW, :]           # (HW, Cin), contiguous
                d = jnp.dot(patch, w_scr[dh, dw, :, lo:hi],
                            preferred_element_type=f32)
                off = 0
                if has_ver:
                    y_ver = _add(y_ver, d[:, off:off + Cp]); off += Cp
                y_sq = _add(y_sq, d[:, off:off + Cp]); off += Cp
                if has_hor:
                    y_hor = _add(y_hor, d[:, off:off + Cp])

        @pl.when(pl.program_id(1) == 0)
        def _():
            sum_ref[...] = jnp.zeros_like(sum_ref)
            sumsq_ref[...] = jnp.zeros_like(sumsq_ref)

        for i, y in enumerate((y_ver, y_sq, y_hor)):
            sl = slice(i * Cp, (i + 1) * Cp)
            sum_ref[:, sl] += jnp.sum(y, axis=0, keepdims=True)
            sumsq_ref[:, sl] += jnp.sum(y * y, axis=0, keepdims=True)

    sums, sumsqs = pl.pallas_call(
        stats_kernel,
        out_shape=[jax.ShapeDtypeStruct((1, n_par * 3 * Cp), f32)] * 2,
        grid=(n_par, n_per),
        in_specs=[
            pl.BlockSpec((1, Hp, Wp, Cin),
                         lambda cpar, n: (cpar * n_per + n, 0, 0, 0)),
            pl.BlockSpec(memory_space=pl.ANY),
        ],
        out_specs=[pl.BlockSpec((1, 3 * Cp), lambda cpar, n: (0, cpar))] * 2,
        scratch_shapes=[pltpu.VMEM((K, K, Cin, 3 * Cp), dot_dtype)],
        compiler_params=pltpu.CompilerParams(
            dimension_semantics=("parallel", "arbitrary"),
            vmem_limit_bytes=vmem_limit),
    )(xpad, w_all)

    # --------- fold the three training-mode BatchNorms into one conv ---------
    # NOTE: variance = E[y^2]-E[y]^2 in f32; cancellation-prone if |mean|>>std.
    # TODO(synk): centered/Welford partial moments for large real-model scales.
    count = jnp.asarray(N * H * W, f32)
    sums = jnp.sum(sums.reshape(n_par, 3 * Cp), axis=0)      # reduce per-core partials
    sumsqs = jnp.sum(sumsqs.reshape(n_par, 3 * Cp), axis=0)
    mean = sums.reshape(3, Cp) / count                       # rows: ver, sq, hor
    var = jnp.maximum(sumsqs.reshape(3, Cp) / count - mean * mean, 0.0)  # biased

    def _pad_c(v):
        return jnp.pad(v.astype(f32), (0, Cp - Cout))

    gamma = jnp.stack([_pad_c(params["g_ver"]), _pad_c(params["g_sq"]),
                       _pad_c(params["g_hor"])])             # (3, Cp)
    beta = jnp.stack([_pad_c(params["b_ver"]), _pad_c(params["b_sq"]),
                      _pad_c(params["b_hor"])])              # (3, Cp)
    scale = gamma * lax.rsqrt(var + eps)                     # (3, Cp)
    bias = beta - scale * mean                               # (3, Cp)

    w_eff = (branch_w[0] * scale[0] + branch_w[1] * scale[1]
             + branch_w[2] * scale[2]).astype(dot_dtype)     # (K,K,Cin,Cp)
    bias_eff = jnp.sum(bias, axis=0, keepdims=True)          # (1, Cp), f32

    # ------------- pass 2: single fused conv + affine + branch sum -----------
    def fused_kernel(xpad_ref, w_hbm, bias_ref, out_ref, w_scr):
        @pl.when(pl.program_id(1) == 0)
        def _():
            pltpu.sync_copy(w_hbm, w_scr)

        x_img = xpad_ref[0]                                  # (Hp, Wp, Cin)
        acc = None
        for dw in range(K):
            x_w = x_img[:, dw:dw + W, :].reshape(Hp * W, Cin)
            for dh in range(K):
                patch = x_w[dh * W:dh * W + HW, :]           # (HW, Cin)
                d = jnp.dot(patch, w_scr[dh, dw], preferred_element_type=f32)
                # First tap writes, with the bias fused in: no zero/bias init pass.
                acc = d + bias_ref[...] if acc is None else acc + d
        # Channels -> sublanes so the result is stored to HBM once, already in
        # NCHW order (lane dim = H*W); no wrapper-side slice+transpose needed.
        out_ref[0] = jnp.transpose(acc)[:Cout, :]

    out = pl.pallas_call(
        fused_kernel,
        out_shape=jax.ShapeDtypeStruct((N, Cout, HW), f32),
        grid=(n_par, n_per),
        in_specs=[
            pl.BlockSpec((1, Hp, Wp, Cin),
                         lambda cpar, n: (cpar * n_per + n, 0, 0, 0)),
            pl.BlockSpec(memory_space=pl.ANY),
            pl.BlockSpec((1, Cp), lambda cpar, n: (0, 0)),
        ],
        out_specs=pl.BlockSpec((1, Cout, HW),
                               lambda cpar, n: (cpar * n_per + n, 0, 0)),
        scratch_shapes=[pltpu.VMEM((K, K, Cin, Cp), dot_dtype)],
        compiler_params=pltpu.CompilerParams(
            dimension_semantics=("parallel", "arbitrary"),
            vmem_limit_bytes=vmem_limit),
    )(xpad, w_eff, bias_eff)

    # Contiguous last-dim split -> metadata-only reshape, no HBM traffic.
    return out.reshape(N, Cout, H, W)


# -----------------------------------------------------------------------------
# Pure-JAX reference (mirrors the PyTorch forward in NCHW) for validation.
# -----------------------------------------------------------------------------
def acblock_reference(x, params, kernel_size, padding, eps=1e-5):
    dn = ("NCHW", "OIHW", "NCHW")
    co = padding - kernel_size // 2  # center_offset_from_origin_border (== 0 here)
    sq = lax.conv_general_dilated(x, params["w_sq"], (1, 1),
                                  [(padding, padding), (padding, padding)],
                                  dimension_numbers=dn)
    ver = lax.conv_general_dilated(x, params["w_ver"], (1, 1),
                                   [(padding, padding), (co, co)],
                                   dimension_numbers=dn)
    hor = lax.conv_general_dilated(x, params["w_hor"], (1, 1),
                                   [(co, co), (padding, padding)],
                                   dimension_numbers=dn)

    def bn(y, g, bta):
        mean = jnp.mean(y, axis=(0, 2, 3), keepdims=True)
        var = jnp.var(y, axis=(0, 2, 3), keepdims=True)
        return ((y - mean) * lax.rsqrt(var + eps) * g.reshape(1, -1, 1, 1)
                + bta.reshape(1, -1, 1, 1))

    return (bn(sq, params["g_sq"], params["b_sq"])
            + bn(ver, params["g_ver"], params["b_ver"])
            + bn(hor, params["g_hor"], params["b_hor"]))


if __name__ == "__main__":
    N, Cin, Cout, H, W = 2, 4, 8, 16, 16
    K, pad = 3, 1

    key = jax.random.PRNGKey(0)
    keys = jax.random.split(key, 10)

    params = {
        # Conv weights in PyTorch OIHW layout (deterministic synthetic init).
        "w_sq": 0.1 * jax.random.normal(keys[0], (Cout, Cin, K, K), jnp.float32),
        "w_ver": 0.1 * jax.random.normal(keys[1], (Cout, Cin, K, 1), jnp.float32),
        "w_hor": 0.1 * jax.random.normal(keys[2], (Cout, Cin, 1, K), jnp.float32),
        # BatchNorm affine parameters (use_affine=True).
        "g_sq": 1.0 + 0.1 * jax.random.normal(keys[3], (Cout,), jnp.float32),
        "b_sq": 0.1 * jax.random.normal(keys[4], (Cout,), jnp.float32),
        "g_ver": 1.0 + 0.1 * jax.random.normal(keys[5], (Cout,), jnp.float32),
        "b_ver": 0.1 * jax.random.normal(keys[6], (Cout,), jnp.float32),
        "g_hor": 1.0 + 0.1 * jax.random.normal(keys[7], (Cout,), jnp.float32),
        "b_hor": 0.1 * jax.random.normal(keys[8], (Cout,), jnp.float32),
    }

    x = jax.random.normal(keys[9], (N, Cin, H, W), jnp.float32)

    out = acblock_forward(x, params, kernel_size=K, padding=pad)
    out = jax.block_until_ready(out)

    ref = jax.block_until_ready(acblock_reference(x, params, K, pad))

    np.testing.assert_allclose(np.asarray(out), np.asarray(ref),
                               rtol=2e-4, atol=2e-4)
    print("KERNEL_OK")
</pallas_src>

<mosaic_0001>
module attributes {stable_mosaic.version = 11 : i64} {
  func.func @stats_kernel(%arg0: i32, %arg1: i32, %arg2: memref<1x18x18x4xf32, #tpu.memory_space<vmem>>, %arg3: memref<3x3x4x384xf32, #tpu.memory_space<any>>, %arg4: memref<1x384xf32, #tpu.memory_space<vmem>>, %arg5: memref<1x384xf32, #tpu.memory_space<vmem>>, %arg6: memref<3x3x4x384xf32, #tpu.memory_space<vmem>>) attributes {dimension_semantics = [#tpu.dimension_semantics<parallel>, #tpu.dimension_semantics<arbitrary>], iteration_bounds = array<i64: 2, 1>, scalar_prefetch = 0 : i64, scratch_operands = 1 : i64, tpu.core_type = #tpu.core_type<tc>, window_params = [{transform_indices = @transform_0, window_bounds = array<i64: 1, 18, 18, 4>}, {}, {transform_indices = @transform_2, window_bounds = array<i64: 1, 384>}, {transform_indices = @transform_3, window_bounds = array<i64: 1, 384>}]} {
    %c0_i32 = arith.constant 0 : i32
    %0 = arith.cmpi eq, %arg1, %c0_i32 : i32
    %1 = arith.extui %0 : i1 to i32
    %c0_i32_0 = arith.constant 0 : i32
    %2 = arith.cmpi ne, %1, %c0_i32_0 : i32
    scf.if %2 {
      "tpu.region"() ({
        %106 = tpu.sem_alloc : memref<!tpu.dma_semaphore, #tpu.memory_space<semaphore_mem>>
        tpu.enqueue_dma source(%arg3 : memref<3x3x4x384xf32, #tpu.memory_space<any>>) target(%arg6 : memref<3x3x4x384xf32, #tpu.memory_space<vmem>>) target_semaphore(%106 : memref<!tpu.dma_semaphore, #tpu.memory_space<semaphore_mem>>)
        tpu.wait_dma2 semaphore(%106 : memref<!tpu.dma_semaphore, #tpu.memory_space<semaphore_mem>>) src(%arg3 : memref<3x3x4x384xf32, #tpu.memory_space<any>>) dst(%arg6 : memref<3x3x4x384xf32, #tpu.memory_space<vmem>>)
        tpu.yield
      }) : () -> ()
    } else {
    }
    %c0 = arith.constant 0 : index
    %c0_1 = arith.constant 0 : index
    %c0_2 = arith.constant 0 : index
    %c0_3 = arith.constant 0 : index
    %3 = vector.load %arg2[%c0, %c0_1, %c0_2, %c0_3] : memref<1x18x18x4xf32, #tpu.memory_space<vmem>>, vector<1x18x18x4xf32>
    %4 = vector.shape_cast %3 : vector<1x18x18x4xf32> to vector<18x18x4xf32>
    %5 = vector.extract_strided_slice %4 {offsets = [0, 0, 0], sizes = [18, 16, 4], strides = [1, 1, 1]} : vector<18x18x4xf32> to vector<18x16x4xf32>
    %6 = vector.shape_cast %5 : vector<18x16x4xf32> to vector<288x4xf32>
    %7 = vector.extract_strided_slice %6 {offsets = [0, 0], sizes = [256, 4], strides = [1, 1]} : vector<288x4xf32> to vector<256x4xf32>
    %c0_4 = arith.constant 0 : index
    %c0_5 = arith.constant 0 : index
    %c0_6 = arith.constant 0 : index
    %c128 = arith.constant 128 : index
    %8 = vector.load %arg6[%c0_4, %c0_5, %c0_6, %c128] : memref<3x3x4x384xf32, #tpu.memory_space<vmem>>, vector<1x1x4x128xf32>
    %9 = vector.shape_cast %8 : vector<1x1x4x128xf32> to vector<4x128xf32>
    %cst = arith.constant dense<0.000000e+00> : vector<256x128xf32>
    %10 = tpu.matmul %7, %9, %cst {dimension_numbers = #tpu.dot_dimension_numbers<[1], [0], [0], [1], [0, 0, 1, 1], [], []>} : vector<256x4xf32>, vector<4x128xf32>, vector<256x128xf32> -> vector<256x128xf32>
    %11 = vector.extract_strided_slice %6 {offsets = [16, 0], sizes = [256, 4], strides = [1, 1]} : vector<288x4xf32> to vector<256x4xf32>
    %c1 = arith.constant 1 : index
    %c0_7 = arith.constant 0 : index
    %c0_8 = arith.constant 0 : index
    %c128_9 = arith.constant 128 : index
    %12 = vector.load %arg6[%c1, %c0_7, %c0_8, %c128_9] : memref<3x3x4x384xf32, #tpu.memory_space<vmem>>, vector<1x1x4x256xf32>
    %13 = vector.shape_cast %12 : vector<1x1x4x256xf32> to vector<4x256xf32>
    %cst_10 = arith.constant dense<0.000000e+00> : vector<256x256xf32>
    %14 = tpu.matmul %11, %13, %cst_10 {dimension_numbers = #tpu.dot_dimension_numbers<[1], [0], [0], [1], [0, 0, 1, 1], [], []>} : vector<256x4xf32>, vector<4x256xf32>, vector<256x256xf32> -> vector<256x256xf32>
    %15 = vector.extract_strided_slice %14 {offsets = [0, 0], sizes = [256, 128], strides = [1, 1]} : vector<256x256xf32> to vector<256x128xf32>
    %16 = arith.addf %10, %15 : vector<256x128xf32>
    %17 = vector.extract_strided_slice %14 {offsets = [0, 128], sizes = [256, 128], strides = [1, 1]} : vector<256x256xf32> to vector<256x128xf32>
    %18 = vector.extract_strided_slice %6 {offsets = [32, 0], sizes = [256, 4], strides = [1, 1]} : vector<288x4xf32> to vector<256x4xf32>
    %c2 = arith.constant 2 : index
    %c0_11 = arith.constant 0 : index
    %c0_12 = arith.constant 0 : index
    %c128_13 = arith.constant 128 : index
    %19 = vector.load %arg6[%c2, %c0_11, %c0_12, %c128_13] : memref<3x3x4x384xf32, #tpu.memory_space<vmem>>, vector<1x1x4x128xf32>
    %20 = vector.shape_cast %19 : vector<1x1x4x128xf32> to vector<4x128xf32>
    %cst_14 = arith.constant dense<0.000000e+00> : vector<256x128xf32>
    %21 = tpu.matmul %18, %20, %cst_14 {dimension_numbers = #tpu.dot_dimension_numbers<[1], [0], [0], [1], [0, 0, 1, 1], [], []>} : vector<256x4xf32>, vector<4x128xf32>, vector<256x128xf32> -> vector<256x128xf32>
    %22 = arith.addf %16, %21 : vector<256x128xf32>
    %23 = vector.extract_strided_slice %4 {offsets = [0, 1, 0], sizes = [18, 16, 4], strides = [1, 1, 1]} : vector<18x18x4xf32> to vector<18x16x4xf32>
    %24 = vector.shape_cast %23 : vector<18x16x4xf32> to vector<288x4xf32>
    %25 = vector.extract_strided_slice %24 {offsets = [0, 0], sizes = [256, 4], strides = [1, 1]} : vector<288x4xf32> to vector<256x4xf32>
    %c0_15 = arith.constant 0 : index
    %c1_16 = arith.constant 1 : index
    %c0_17 = arith.constant 0 : index
    %c0_18 = arith.constant 0 : index
    %26 = vector.load %arg6[%c0_15, %c1_16, %c0_17, %c0_18] : memref<3x3x4x384xf32, #tpu.memory_space<vmem>>, vector<1x1x4x256xf32>
    %27 = vector.shape_cast %26 : vector<1x1x4x256xf32> to vector<4x256xf32>
    %cst_19 = arith.constant dense<0.000000e+00> : vector<256x256xf32>
    %28 = tpu.matmul %25, %27, %cst_19 {dimension_numbers = #tpu.dot_dimension_numbers<[1], [0], [0], [1], [0, 0, 1, 1], [], []>} : vector<256x4xf32>, vector<4x256xf32>, vector<256x256xf32> -> vector<256x256xf32>
    %29 = vector.extract_strided_slice %28 {offsets = [0, 0], sizes = [256, 128], strides = [1, 1]} : vector<256x256xf32> to vector<256x128xf32>
    %30 = vector.extract_strided_slice %28 {offsets = [0, 128], sizes = [256, 128], strides = [1, 1]} : vector<256x256xf32> to vector<256x128xf32>
    %31 = arith.addf %22, %30 : vector<256x128xf32>
    %32 = vector.extract_strided_slice %24 {offsets = [16, 0], sizes = [256, 4], strides = [1, 1]} : vector<288x4xf32> to vector<256x4xf32>
    %c1_20 = arith.constant 1 : index
    %c1_21 = arith.constant 1 : index
    %c0_22 = arith.constant 0 : index
    %c0_23 = arith.constant 0 : index
    %33 = vector.load %arg6[%c1_20, %c1_21, %c0_22, %c0_23] : memref<3x3x4x384xf32, #tpu.memory_space<vmem>>, vector<1x1x4x384xf32>
    %34 = vector.shape_cast %33 : vector<1x1x4x384xf32> to vector<4x384xf32>
    %cst_24 = arith.constant dense<0.000000e+00> : vector<256x384xf32>
    %35 = tpu.matmul %32, %34, %cst_24 {dimension_numbers = #tpu.dot_dimension_numbers<[1], [0], [0], [1], [0, 0, 1, 1], [], []>} : vector<256x4xf32>, vector<4x384xf32>, vector<256x384xf32> -> vector<256x384xf32>
    %36 = vector.extract_strided_slice %35 {offsets = [0, 0], sizes = [256, 128], strides = [1, 1]} : vector<256x384xf32> to vector<256x128xf32>
    %37 = arith.addf %29, %36 : vector<256x128xf32>
    %38 = vector.extract_strided_slice %35 {offsets = [0, 128], sizes = [256, 128], strides = [1, 1]} : vector<256x384xf32> to vector<256x128xf32>
    %39 = arith.addf %31, %38 : vector<256x128xf32>
    %40 = vector.extract_strided_slice %35 {offsets = [0, 256], sizes = [256, 128], strides = [1, 1]} : vector<256x384xf32> to vector<256x128xf32>
    %41 = arith.addf %17, %40 : vector<256x128xf32>
    %42 = vector.extract_strided_slice %24 {offsets = [32, 0], sizes = [256, 4], strides = [1, 1]} : vector<288x4xf32> to vector<256x4xf32>
    %c2_25 = arith.constant 2 : index
    %c1_26 = arith.constant 1 : index
    %c0_27 = arith.constant 0 : index
    %c0_28 = arith.constant 0 : index
    %43 = vector.load %arg6[%c2_25, %c1_26, %c0_27, %c0_28] : memref<3x3x4x384xf32, #tpu.memory_space<vmem>>, vector<1x1x4x256xf32>
    %44 = vector.shape_cast %43 : vector<1x1x4x256xf32> to vector<4x256xf32>
    %cst_29 = arith.constant dense<0.000000e+00> : vector<256x256xf32>
    %45 = tpu.matmul %42, %44, %cst_29 {dimension_numbers = #tpu.dot_dimension_numbers<[1], [0], [0], [1], [0, 0, 1, 1], [], []>} : vector<256x4xf32>, vector<4x256xf32>, vector<256x256xf32> -> vector<256x256xf32>
    %46 = vector.extract_strided_slice %45 {offsets = [0, 0], sizes = [256, 128], strides = [1, 1]} : vector<256x256xf32> to vector<256x128xf32>
    %47 = arith.addf %37, %46 : vector<256x128xf32>
    %48 = vector.extract_strided_slice %45 {offsets = [0, 128], sizes = [256, 128], strides = [1, 1]} : vector<256x256xf32> to vector<256x128xf32>
    %49 = arith.addf %39, %48 : vector<256x128xf32>
    %50 = vector.extract_strided_slice %4 {offsets = [0, 2, 0], sizes = [18, 16, 4], strides = [1, 1, 1]} : vector<18x18x4xf32> to vector<18x16x4xf32>
    %51 = vector.shape_cast %50 : vector<18x16x4xf32> to vector<288x4xf32>
    %52 = vector.extract_strided_slice %51 {offsets = [0, 0], sizes = [256, 4], strides = [1, 1]} : vector<288x4xf32> to vector<256x4xf32>
    %c0_30 = arith.constant 0 : index
    %c2_31 = arith.constant 2 : index
    %c0_32 = arith.constant 0 : index
    %c128_33 = arith.constant 128 : index
    %53 = vector.load %arg6[%c0_30, %c2_31, %c0_32, %c128_33] : memref<3x3x4x384xf32, #tpu.memory_space<vmem>>, vector<1x1x4x128xf32>
    %54 = vector.shape_cast %53 : vector<1x1x4x128xf32> to vector<4x128xf32>
    %cst_34 = arith.constant dense<0.000000e+00> : vector<256x128xf32>
    %55 = tpu.matmul %52, %54, %cst_34 {dimension_numbers = #tpu.dot_dimension_numbers<[1], [0], [0], [1], [0, 0, 1, 1], [], []>} : vector<256x4xf32>, vector<4x128xf32>, vector<256x128xf32> -> vector<256x128xf32>
    %56 = arith.addf %49, %55 : vector<256x128xf32>
    %57 = vector.extract_strided_slice %51 {offsets = [16, 0], sizes = [256, 4], strides = [1, 1]} : vector<288x4xf32> to vector<256x4xf32>
    %c1_35 = arith.constant 1 : index
    %c2_36 = arith.constant 2 : index
    %c0_37 = arith.constant 0 : index
    %c128_38 = arith.constant 128 : index
    %58 = vector.load %arg6[%c1_35, %c2_36, %c0_37, %c128_38] : memref<3x3x4x384xf32, #tpu.memory_space<vmem>>, vector<1x1x4x256xf32>
    %59 = vector.shape_cast %58 : vector<1x1x4x256xf32> to vector<4x256xf32>
    %cst_39 = arith.constant dense<0.000000e+00> : vector<256x256xf32>
    %60 = tpu.matmul %57, %59, %cst_39 {dimension_numbers = #tpu.dot_dimension_numbers<[1], [0], [0], [1], [0, 0, 1, 1], [], []>} : vector<256x4xf32>, vector<4x256xf32>, vector<256x256xf32> -> vector<256x256xf32>
    %61 = vector.extract_strided_slice %60 {offsets = [0, 0], sizes = [256, 128], strides = [1, 1]} : vector<256x256xf32> to vector<256x128xf32>
    %62 = arith.addf %56, %61 : vector<256x128xf32>
    %63 = vector.extract_strided_slice %60 {offsets = [0, 128], sizes = [256, 128], strides = [1, 1]} : vector<256x256xf32> to vector<256x128xf32>
    %64 = arith.addf %41, %63 : vector<256x128xf32>
    %65 = vector.extract_strided_slice %51 {offsets = [32, 0], sizes = [256, 4], strides = [1, 1]} : vector<288x4xf32> to vector<256x4xf32>
    %c2_40 = arith.constant 2 : index
    %c2_41 = arith.constant 2 : index
    %c0_42 = arith.constant 0 : index
    %c128_43 = arith.constant 128 : index
    %66 = vector.load %arg6[%c2_40, %c2_41, %c0_42, %c128_43] : memref<3x3x4x384xf32, #tpu.memory_space<vmem>>, vector<1x1x4x128xf32>
    %67 = vector.shape_cast %66 : vector<1x1x4x128xf32> to vector<4x128xf32>
    %cst_44 = arith.constant dense<0.000000e+00> : vector<256x128xf32>
    %68 = tpu.matmul %65, %67, %cst_44 {dimension_numbers = #tpu.dot_dimension_numbers<[1], [0], [0], [1], [0, 0, 1, 1], [], []>} : vector<256x4xf32>, vector<4x128xf32>, vector<256x128xf32> -> vector<256x128xf32>
    %69 = arith.addf %62, %68 : vector<256x128xf32>
    %c0_i32_45 = arith.constant 0 : i32
    %70 = arith.cmpi eq, %arg1, %c0_i32_45 : i32
    %71 = arith.extui %70 : i1 to i32
    %c0_i32_46 = arith.constant 0 : i32
    %72 = arith.cmpi ne, %71, %c0_i32_46 : i32
    scf.if %72 {
      %cst_76 = arith.constant 0.000000e+00 : f32
      %106 = vector.broadcast %cst_76 : f32 to vector<1x384xf32>
      %c0_77 = arith.constant 0 : index
      %c0_78 = arith.constant 0 : index
      %107 = vector.load %arg4[%c0_77, %c0_78] : memref<1x384xf32, #tpu.memory_space<vmem>>, vector<1x384xf32>
      tpu.vector_store %arg4[%c0_77, %c0_78], %106 {strides = array<i32>} : memref<1x384xf32, #tpu.memory_space<vmem>>, vector<1x384xf32>,
      %cst_79 = arith.constant 0.000000e+00 : f32
      %108 = vector.broadcast %cst_79 : f32 to vector<1x384xf32>
      %c0_80 = arith.constant 0 : index
      %c0_81 = arith.constant 0 : index
      %109 = vector.load %arg5[%c0_80, %c0_81] : memref<1x384xf32, #tpu.memory_space<vmem>>, vector<1x384xf32>
      tpu.vector_store %arg5[%c0_80, %c0_81], %108 {strides = array<i32>} : memref<1x384xf32, #tpu.memory_space<vmem>>, vector<1x384xf32>,
    } else {
    }
    %c0_47 = arith.constant 0 : index
    %c0_48 = arith.constant 0 : index
    %73 = vector.load %arg4[%c0_47, %c0_48] : memref<1x384xf32, #tpu.memory_space<vmem>>, vector<1x128xf32>
    %cst_49 = arith.constant dense<0.000000e+00> : vector<128xf32>
    %74 = vector.multi_reduction <add>, %47, %cst_49 [0] : vector<256x128xf32> to vector<128xf32>
    %75 = vector.shape_cast %74 : vector<128xf32> to vector<1x128xf32>
    %76 = arith.addf %73, %75 : vector<1x128xf32>
    %c0_50 = arith.constant 0 : index
    %c0_51 = arith.constant 0 : index
    %77 = vector.load %arg4[%c0_50, %c0_51] : memref<1x384xf32, #tpu.memory_space<vmem>>, vector<1x128xf32>
    tpu.vector_store %arg4[%c0_50, %c0_51], %76 {strides = array<i32>} : memref<1x384xf32, #tpu.memory_space<vmem>>, vector<1x128xf32>,
    %c0_52 = arith.constant 0 : index
    %c0_53 = arith.constant 0 : index
    %78 = vector.load %arg5[%c0_52, %c0_53] : memref<1x384xf32, #tpu.memory_space<vmem>>, vector<1x128xf32>
    %79 = arith.mulf %47, %47 : vector<256x128xf32>
    %cst_54 = arith.constant dense<0.000000e+00> : vector<128xf32>
    %80 = vector.multi_reduction <add>, %79, %cst_54 [0] : vector<256x128xf32> to vector<128xf32>
    %81 = vector.shape_cast %80 : vector<128xf32> to vector<1x128xf32>
    %82 = arith.addf %78, %81 : vector<1x128xf32>
    %c0_55 = arith.constant 0 : index
    %c0_56 = arith.constant 0 : index
    %83 = vector.load %arg5[%c0_55, %c0_56] : memref<1x384xf32, #tpu.memory_space<vmem>>, vector<1x128xf32>
    tpu.vector_store %arg5[%c0_55, %c0_56], %82 {strides = array<i32>} : memref<1x384xf32, #tpu.memory_space<vmem>>, vector<1x128xf32>,
    %c0_57 = arith.constant 0 : index
    %c128_58 = arith.constant 128 : index
    %84 = vector.load %arg4[%c0_57, %c128_58] : memref<1x384xf32, #tpu.memory_space<vmem>>, vector<1x128xf32>
    %cst_59 = arith.constant dense<0.000000e+00> : vector<128xf32>
    %85 = vector.multi_reduction <add>, %69, %cst_59 [0] : vector<256x128xf32> to vector<128xf32>
    %86 = vector.shape_cast %85 : vector<128xf32> to vector<1x128xf32>
    %87 = arith.addf %84, %86 : vector<1x128xf32>
    %c0_60 = arith.constant 0 : index
    %c128_61 = arith.constant 128 : index
    %88 = vector.load %arg4[%c0_60, %c128_61] : memref<1x384xf32, #tpu.memory_space<vmem>>, vector<1x128xf32>
    tpu.vector_store %arg4[%c0_60, %c128_61], %87 {strides = array<i32>} : memref<1x384xf32, #tpu.memory_space<vmem>>, vector<1x128xf32>,
    %c0_62 = arith.constant 0 : index
    %c128_63 = arith.constant 128 : index
    %89 = vector.load %arg5[%c0_62, %c128_63] : memref<1x384xf32, #tpu.memory_space<vmem>>, vector<1x128xf32>
    %90 = arith.mulf %69, %69 : vector<256x128xf32>
    %cst_64 = arith.constant dense<0.000000e+00> : vector<128xf32>
    %91 = vector.multi_reduction <add>, %90, %cst_64 [0] : vector<256x128xf32> to vector<128xf32>
    %92 = vector.shape_cast %91 : vector<128xf32> to vector<1x128xf32>
    %93 = arith.addf %89, %92 : vector<1x128xf32>
    %c0_65 = arith.constant 0 : index
    %c128_66 = arith.constant 128 : index
    %94 = vector.load %arg5[%c0_65, %c128_66] : memref<1x384xf32, #tpu.memory_space<vmem>>, vector<1x128xf32>
    tpu.vector_store %arg5[%c0_65, %c128_66], %93 {strides = array<i32>} : memref<1x384xf32, #tpu.memory_space<vmem>>, vector<1x128xf32>,
    %c0_67 = arith.constant 0 : index
    %c256 = arith.constant 256 : index
    %95 = vector.load %arg4[%c0_67, %c256] : memref<1x384xf32, #tpu.memory_space<vmem>>, vector<1x128xf32>
    %cst_68 = arith.constant dense<0.000000e+00> : vector<128xf32>
    %96 = vector.multi_reduction <add>, %64, %cst_68 [0] : vector<256x128xf32> to vector<128xf32>
    %97 = vector.shape_cast %96 : vector<128xf32> to vector<1x128xf32>
    %98 = arith.addf %95, %97 : vector<1x128xf32>
    %c0_69 = arith.constant 0 : index
    %c256_70 = arith.constant 256 : index
    %99 = vector.load %arg4[%c0_69, %c256_70] : memref<1x384xf32, #tpu.memory_space<vmem>>, vector<1x128xf32>
    tpu.vector_store %arg4[%c0_69, %c256_70], %98 {strides = array<i32>} : memref<1x384xf32, #tpu.memory_space<vmem>>, vector<1x128xf32>,
    %c0_71 = arith.constant 0 : index
    %c256_72 = arith.constant 256 : index
    %100 = vector.load %arg5[%c0_71, %c256_72] : memref<1x384xf32, #tpu.memory_space<vmem>>, vector<1x128xf32>
    %101 = arith.mulf %64, %64 : vector<256x128xf32>
    %cst_73 = arith.constant dense<0.000000e+00> : vector<128xf32>
    %102 = vector.multi_reduction <add>, %101, %cst_73 [0] : vector<256x128xf32> to vector<128xf32>
    %103 = vector.shape_cast %102 : vector<128xf32> to vector<1x128xf32>
    %104 = arith.addf %100, %103 : vector<1x128xf32>
    %c0_74 = arith.constant 0 : index
    %c256_75 = arith.constant 256 : index
    %105 = vector.load %arg5[%c0_74, %c256_75] : memref<1x384xf32, #tpu.memory_space<vmem>>, vector<1x128xf32>
    tpu.vector_store %arg5[%c0_74, %c256_75], %104 {strides = array<i32>} : memref<1x384xf32, #tpu.memory_space<vmem>>, vector<1x128xf32>,
    return
  }
  func.func @transform_0(%arg0: i32, %arg1: i32) -> (i32, i32, i32, i32) {
    %c1_i32 = arith.constant 1 : i32
    %0 = arith.muli %arg0, %c1_i32 : i32
    %1 = arith.addi %0, %arg1 : i32
    %c0_i32 = arith.constant 0 : i32
    %c0_i32_0 = arith.constant 0 : i32
    %c0_i32_1 = arith.constant 0 : i32
    %c0_i32_2 = arith.constant 0 : i32
    return %1, %c0_i32, %c0_i32_0, %c0_i32_1 : i32, i32, i32, i32
  }
  func.func @transform_2(%arg0: i32, %arg1: i32) -> (i32, i32) {
    %c0_i32 = arith.constant 0 : i32
    %c0_i32_0 = arith.constant 0 : i32
    return %c0_i32, %arg0 : i32, i32
  }
  func.func @transform_3(%arg0: i32, %arg1: i32) -> (i32, i32) {
    %c0_i32 = arith.constant 0 : i32
    %c0_i32_0 = arith.constant 0 : i32
    return %c0_i32, %arg0 : i32, i32
  }
}

</mosaic_0001>

<llo_original>
// kernel: tpu_custom_call.1
$region0: #{tpu_custom_call.1}
  #allocation0 [shape = 'u32[]', space=smem, size = 0x4, offset = 0x4, fixed_abs, tag = 'smem constant byte address 0x4 - core index']
  #allocation1 [shape = 'u32[144,128]{1,0:T(1,128)}', space=vmem, size = 0x12000, scoped, tag = 'internal scratch']
  #allocation2 [shape = 'f32[3,3,4,384]{3,2,1,0:T(4,128)}', space=vmem, size = 0xd800, scoped, tag = 'scratch operand']
  #allocation8 [shape = 's32[]', space=sflag, size = 0x4, offset = 0, fixed_abs, tag = 'sflag constant byte address 0x0 - dummy sync flag']
  %s0 = inlined_call_operand.vmem [shape: f32[2,18,18,4], index: 0, kind: input, shape index: {}]
  %s1 = inlined_call_operand.vmem [shape: f32[3,3,4,384], index: 1, kind: input, shape index: {}]
  %s2 = inlined_call_operand.hbm [shape: f32[1,768], index: 2, kind: output, shape index: {0}]
  %s3 = inlined_call_operand.hbm [shape: f32[1,768], index: 3, kind: output, shape index: {1}]
  %4 = xla_tuple %s2, %s3
  %s5 = sld [smem:[#allocation0]]
  $region91: #{tpu_custom_call.1} parent=0
    _
  %s7 = ssub.s32 1, %s5
  %s8 = scalar_select 0, %s7, %s5
  $region1: #{tpu_custom_call.1} parent=0
    #allocation3 [shape = 'u8[3072]{0}', space=vmem, size = 0xc00, scoped, tag = 'output window, operand 0']
    #allocation4 [shape = 's32[2]{0}', space=sflag, size = 0x8, scoped, tag = 'scoped memory for tpu_custom_call.1']
    #allocation5 [shape = 'u8[3072]{0}', space=vmem, size = 0xc00, scoped, tag = 'output window, operand 1']
    #allocation6 [shape = 's32[2]{0}', space=sflag, size = 0x8, scoped, tag = 'scoped memory for tpu_custom_call.1']
    %9 = vsyncpa [#allocation4], 0
    %s10 = scalar_lea.sflag [#allocation4], 1
    %11 = vsyncpa %s10, 0
    %12 = vsyncpa [#allocation6], 0
    %s13 = scalar_lea.sflag [#allocation6], 1
    %14 = vsyncpa %s13, 0
    loop: start=0, step=1, limit=4
    $region2: #{tpu_custom_call.1} parent=1 // loop_pre_header
      _
    $region3: #{tpu_custom_call.1} parent=1 // loop_header
      %s16 = sphi 0, %s20
      %p17 = scmp.ge.s32.totalorder %s16, 4
      %s23 = sphi 0, %s35
      %s24 = sphi 0, %s31
      %s25 = sphi 0, %s23
      %s26 = sphi 0, %s24
      %s27 = sphi 0, %s25
      %s28 = sphi 0, %s26
      %s40 = sphi 0, %s42
      %s43 = sphi 0, %s40
      %s44 = sphi 0, %s43
      %s60 = sphi 0, %s44
      %s66 = sphi 0, %s68
      %s69 = sphi 0, %s66
      %s70 = sphi 0, %s69
      %s86 = sphi 0, %s70
      %s92 = sphi 0, %s94
      %s95 = sphi 0, %s92
      %s96 = sphi 0, %s95
      %s112 = sphi 0, %s96
    $region4: #{tpu_custom_call.1} parent=1 // loop_header_branch
      %19 = sbr.rel (%p17) target = $region8
    $region5: #{tpu_custom_call.1} parent=1 // loop_body
      %s21 = ssub.s32 %s16, 1
      %s22 = ssub.s32 %s16, 2
      %s29 = sadd.s32 1, %s24
      %p30 = scmp.ge.s32.totalorder %s29, 1
      %s31 = scalar_select %p30, 0, %s29
      %s32 = sadd.s32 1, %s23
      %s33 = scalar_select %p30, %s32, %s23
      %p34 = scmp.ge.s32.totalorder %s33, 2
      %s35 = scalar_select %p34, 0, %s33
      %s36 = sadd.s32 %s23, %s24
      %s37 = sadd.s32 %s35, %s31
      %s38 = ssub.s32 %s36, %s37
      %p39 = scmp.eq.s32.totalorder %s38, 0
      %s41 = sadd.s32 %s40, 1
      %s42 = scalar_select %p39, %s40, %s41
      %p45 = pneg %p39
      %p46 = scmp.eq.s32.totalorder %s16, 1
      %p47 = por %p45, %p46
      %p48 = scmp.ne.s32.totalorder %s40, %s43
      %p49 = scmp.eq.s32.totalorder %s16, 0
      %p50 = por %p48, %p49
      %p51 = scmp.ne.s32.totalorder %s40, %s43
      %p52 = scmp.eq.s32.totalorder %s21, 1
      %p53 = por %p51, %p52
      %p54 = scmp.ne.s32.totalorder %s43, %s44
      %p55 = scmp.eq.s32.totalorder %s21, 0
      %p56 = por %p54, %p55
      %p57 = scmp.ne.s32.totalorder %s43, %s44
      %p58 = scmp.eq.s32.totalorder %s22, 1
      %p59 = por %p57, %p58
      %p61 = scmp.ne.s32.totalorder %s44, %s60
      %p62 = scmp.eq.s32.totalorder %s22, 0
      %p63 = por %p61, %p62
      %s64 = ssub.s32 %s23, %s35
      %p65 = scmp.eq.s32.totalorder %s64, 0
      %s67 = sadd.s32 %s66, 1
      %s68 = scalar_select %p65, %s66, %s67
      %p71 = pneg %p65
      %p72 = scmp.eq.s32.totalorder %s16, 1
      %p73 = por %p71, %p72
      %p74 = scmp.ne.s32.totalorder %s66, %s69
      %p75 = scmp.eq.s32.totalorder %s16, 0
      %p76 = por %p74, %p75
      %p77 = scmp.ne.s32.totalorder %s66, %s69
      %p78 = scmp.eq.s32.totalorder %s21, 1
      %p79 = por %p77, %p78
      %p80 = scmp.ne.s32.totalorder %s69, %s70
      %p81 = scmp.eq.s32.totalorder %s21, 0
      %p82 = por %p80, %p81
      %p83 = scmp.ne.s32.totalorder %s69, %s70
      %p84 = scmp.eq.s32.totalorder %s22, 1
      %p85 = por %p83, %p84
      %p87 = scmp.ne.s32.totalorder %s70, %s86
      %p88 = scmp.eq.s32.totalorder %s22, 0
      %p89 = por %p87, %p88
      %s90 = ssub.s32 %s23, %s35
      %p91 = scmp.eq.s32.totalorder %s90, 0
      %s93 = sadd.s32 %s92, 1
      %s94 = scalar_select %p91, %s92, %s93
      %p97 = pneg %p91
      %p98 = scmp.eq.s32.totalorder %s16, 1
      %p99 = por %p97, %p98
      %p100 = scmp.ne.s32.totalorder %s92, %s95
      %p101 = scmp.eq.s32.totalorder %s16, 0
      %p102 = por %p100, %p101
      %p103 = scmp.ne.s32.totalorder %s92, %s95
      %p104 = scmp.eq.s32.totalorder %s21, 1
      %p105 = por %p103, %p104
      %p106 = scmp.ne.s32.totalorder %s95, %s96
      %p107 = scmp.eq.s32.totalorder %s21, 0
      %p108 = por %p106, %p107
      %p109 = scmp.ne.s32.totalorder %s95, %s96
      %p110 = scmp.eq.s32.totalorder %s22, 1
      %p111 = por %p109, %p110
      %p113 = scmp.ne.s32.totalorder %s96, %s112
      %p114 = scmp.eq.s32.totalorder %s22, 0
      %p115 = por %p113, %p114
      %p116 = scmp.le.s32.totalorder 1, %s16
      %p117 = scmp.lt.s32.totalorder %s16, 3
      %p118 = pnand %p116, %p117
      %p119 = pneg %p118
      // Predicated region
      $region9: #{tpu_custom_call.1} parent=5 // pred_check
        _
      $region10: #{tpu_custom_call.1} parent=5 // pred_check_branch
        %121 = sbr.rel (%p118) target = $region12
      $region11: #{tpu_custom_call.1} parent=5 // pred_region
        %s122 = ssub.s32 %s16, 1
      $region12: #{tpu_custom_call.1} parent=5 // pred_fallthru
        _
      %p123 = scmp.lt.s32.totalorder %s16, 2
      // Predicated region
      $region13: #{tpu_custom_call.1} parent=5 // pred_check
        %p124 = pneg %p123
      $region14: #{tpu_custom_call.1} parent=5 // pred_check_branch
        %126 = sbr.rel (%p124) target = $region16
      $region15: #{tpu_custom_call.1} parent=5 // pred_region
        // Predicated region
        $region17: #{tpu_custom_call.1} parent=15 // pred_check
          %p127 = pneg %p50
        $region18: #{tpu_custom_call.1} parent=15 // pred_check_branch
          %129 = sbr.rel (%p127) target = $region20
        $region19: #{tpu_custom_call.1} parent=15 // pred_region
          %s130 = sadd.s32 %s23, %s24
          %p131 = scmp.lt.s32.totalorder %s130, 1
          %s132 = scalar_select %p131, %s130, 1
          %s133 = smul.addr %s132, 54
          %s134 = smul.addr %s133, 8
          %s135 = scalar_lea.vmem %s0, %s134
          %s136 = sadd.s32 %s23, %s24
        $region20: #{tpu_custom_call.1} parent=15 // pred_fallthru
          _
      $region16: #{tpu_custom_call.1} parent=5 // pred_fallthru
        _
      %p137 = scmp.le.s32.totalorder 1, %s16
      %p138 = scmp.lt.s32.totalorder %s16, 3
      %p139 = pnand %p137, %p138
      %p140 = pneg %p139
      // Predicated region
      $region21: #{tpu_custom_call.1} parent=5 // pred_check
        _
      $region22: #{tpu_custom_call.1} parent=5 // pred_check_branch
        %142 = sbr.rel (%p139) target = $region24
      $region23: #{tpu_custom_call.1} parent=5 // pred_region
        %s143 = ssub.s32 %s16, 1
        %s144 = sadd.s32 %s25, %s26
        %p145 = scmp.lt.s32.totalorder %s144, 1
        %s146 = scalar_select %p145, %s144, 1
        %s147 = smul.addr %s146, 54
        %s148 = smul.addr %s147, 8
        %s149 = scalar_lea.vmem %s0, %s148
        %p150 = pneg %p56
        %p151 = pneg %p53
        %p152 = pneg %p82
        %p153 = pneg %p79
        %s154 = sand.u32 %s69, 1
        %s155 = scalar_lea.sflag [#allocation4], %s154
        %s156 = sand.u32 %s69, 1
        %s157 = smul.addr %s156, 3
        %s158 = scalar_lea.vmem [#allocation3], %s157
        %p159 = pneg %p108
        %p160 = pneg %p105
        %s161 = sand.u32 %s95, 1
        %s162 = scalar_lea.sflag [#allocation6], %s161
        %s163 = sand.u32 %s95, 1
        %s164 = smul.addr %s163, 3
        %s165 = scalar_lea.vmem [#allocation5], %s164
        %s166 = sadd.s32 %s25, %s26
        %p167 = scmp.lt.s32.totalorder %s166, 1
        %s168 = scalar_select %p167, %s166, 1
        %s169 = smul.addr %s168, 54
        %s170 = smul.addr %s169, 8
        %s171 = scalar_lea.vmem %s0, %s170
        %s172 = sadd.s32 %s25, %s26
        %s173 = smul.u32 3, %s25
        %s174 = smul.u32 3, %s25
        %p175 = scmp.eq.s32.totalorder %s26, 0
        // Predicated region
        $region25: #{tpu_custom_call.1} parent=23 // pred_check
          %p176 = pneg %p175
        $region26: #{tpu_custom_call.1} parent=23 // pred_check_branch
          %178 = sbr.rel (%p176) target = $region28
        $region27: #{tpu_custom_call.1} parent=23 // pred_region
          $region29: #{tpu_custom_call.1} parent=27
            #allocation7 [shape = 's32[1]{0}', space=sflag, size = 0x4, scoped, tag = 'scoped memory for tpu_custom_call.1']
            %p180 = scmp.lt.u32.totalorder 108, 8
            %p181 = pneg %p180
            // Predicated region
            $region30: #{tpu_custom_call.1} parent=29 // pred_check
              _
            $region31: #{tpu_custom_call.1} parent=29 // pred_check_branch
              %183 = sbr.rel (%p180) target = $region33
            $region32: #{tpu_custom_call.1} parent=29 // pred_region
              %s198 = sand.u32 108, 7
              %p199 = scmp.eq.s32.totalorder %s198, 0
              %p200 = pneg %p199
              // Predicated region
              $region45: #{tpu_custom_call.1} parent=32 // pred_check
                _
              $region46: #{tpu_custom_call.1} parent=32 // pred_check_branch
                %202 = sbr.rel (%p199) target = $region48
              $region47: #{tpu_custom_call.1} parent=32 // pred_region
                %s203 = sand.u32 108, 7
                %s204 = ssub.s32 108, %s203
                %s205 = scalar_lea.vmem %s1, %s204
                %s206 = ssub.s32 108, %s203
                %s207 = scalar_lea.vmem [#allocation2], %s206
                loop: start=0, step=1, limit=1
                $region49: #{tpu_custom_call.1} parent=47 // loop_pre_header
                  _
                $region50: #{tpu_custom_call.1} parent=47 // loop_header
                  %s209 = sphi 0, %s213
                  %p210 = scmp.ge.s32.totalorder %s209, 1
                  %s214 = sphi %s1, %s1
                  %s215 = sphi [#allocation2], [#allocation2]
                $region51: #{tpu_custom_call.1} parent=47 // loop_header_branch
                  %212 = sbr.rel (%p210) target = $region55
                $region52: #{tpu_custom_call.1} parent=47 // loop_body
                  %v216 = vld [vmem:[%s214] sm:$0xff]
                  %217 = vst [vmem:[%s215] sm:$0xff] %v216
                  %v218 = vld [vmem:[%s214 + $0x8] sm:$0xff]
                  %219 = vst [vmem:[%s215 + $0x8] sm:$0xff] %v218
                  %v220 = vld [vmem:[%s214 + $0x10] sm:$0xff]
                  %221 = vst [vmem:[%s215 + $0x10] sm:$0xff] %v220
                  %v222 = vld [vmem:[%s214 + $0x18] sm:$0xff]
                  %223 = vst [vmem:[%s215 + $0x18] sm:$0xff] %v222
                  %v224 = vld [vmem:[%s214 + $0x20] sm:$0xff]
                  %225 = vst [vmem:[%s215 + $0x20] sm:$0xff] %v224
                  %v226 = vld [vmem:[%s214 + $0x28] sm:$0xff]
                  %227 = vst [vmem:[%s215 + $0x28] sm:$0xff] %v226
                  %v228 = vld [vmem:[%s214 + $0x30] sm:$0xff]
                  %229 = vst [vmem:[%s215 + $0x30] sm:$0xff] %v228
                  %v230 = vld [vmem:[%s214 + $0x38] sm:$0xff]
                  %231 = vst [vmem:[%s215 + $0x38] sm:$0xff] %v230
                  %v232 = vld [vmem:[%s214 + $0x40] sm:$0xff]
                  %233 = vst [vmem:[%s215 + $0x40] sm:$0xff] %v232
                  %v234 = vld [vmem:[%s214 + $0x48] sm:$0xff]
                  %235 = vst [vmem:[%s215 + $0x48] sm:$0xff] %v234
                  %v236 = vld [vmem:[%s214 + $0x50] sm:$0xff]
                  %237 = vst [vmem:[%s215 + $0x50] sm:$0xff] %v236
                  %v238 = vld [vmem:[%s214 + $0x58] sm:$0xff]
                  %239 = vst [vmem:[%s215 + $0x58] sm:$0xff] %v238
                  %v240 = vld [vmem:[%s214 + $0x60] sm:$0xff]
                  %241 = vst [vmem:[%s215 + $0x60] sm:$0xff] %v240
                $region53: #{tpu_custom_call.1} parent=47 // loop_footer
                  %s213 = sadd.s32 1, %s209
                $region54: #{tpu_custom_call.1} parent=47 // loop_footer_branch
                  %208 = sbr.rel target = $region50
                $region55: #{tpu_custom_call.1} parent=47 // loop_exit
                  _
                %s242 = sshllo.u32 0, %s203
                loop: start=0, step=1, limit=1
                $region56: #{tpu_custom_call.1} parent=47 // loop_pre_header
                  _
                $region57: #{tpu_custom_call.1} parent=47 // loop_header
                  %s244 = sphi 0, %s248
                  %p245 = scmp.ge.s32.totalorder %s244, 1
                  %s249 = sphi %s205, %s205
                  %s250 = sphi %s207, %s207
                $region58: #{tpu_custom_call.1} parent=47 // loop_header_branch
                  %247 = sbr.rel (%p245) target = $region62
                $region59: #{tpu_custom_call.1} parent=47 // loop_body
                  %v251 = vld [vmem:[%s249] sm:%s242]
                  %252 = vst [vmem:[%s250] sm:%s242] %v251
                $region60: #{tpu_custom_call.1} parent=47 // loop_footer
                  %s248 = sadd.s32 1, %s244
                $region61: #{tpu_custom_call.1} parent=47 // loop_footer_branch
                  %243 = sbr.rel target = $region57
                $region62: #{tpu_custom_call.1} parent=47 // loop_exit
                  _
              $region48: #{tpu_custom_call.1} parent=32 // pred_fallthru
                _
            $region33: #{tpu_custom_call.1} parent=29 // pred_fallthru
              _
            // Predicated region
            $region34: #{tpu_custom_call.1} parent=29 // pred_check
              %p184 = pneg %p180
            $region35: #{tpu_custom_call.1} parent=29 // pred_check_branch
              %186 = sbr.rel (%p184) target = $region37
            $region36: #{tpu_custom_call.1} parent=29 // pred_region
              %s187 = sshllo.u32 0, 108
              loop: start=0, step=1, limit=1
              $region38: #{tpu_custom_call.1} parent=36 // loop_pre_header
                _
              $region39: #{tpu_custom_call.1} parent=36 // loop_header
                %s189 = sphi 0, %s193
                %p190 = scmp.ge.s32.totalorder %s189, 1
                %s194 = sphi %s1, %s1
                %s195 = sphi [#allocation2], [#allocation2]
              $region40: #{tpu_custom_call.1} parent=36 // loop_header_branch
                %192 = sbr.rel (%p190) target = $region44
              $region41: #{tpu_custom_call.1} parent=36 // loop_body
                %v196 = vld [vmem:[%s194] sm:%s187]
                %197 = vst [vmem:[%s195] sm:%s187] %v196
              $region42: #{tpu_custom_call.1} parent=36 // loop_footer
                %s193 = sadd.s32 1, %s189
              $region43: #{tpu_custom_call.1} parent=36 // loop_footer_branch
                %188 = sbr.rel target = $region39
              $region44: #{tpu_custom_call.1} parent=36 // loop_exit
                _
            $region37: #{tpu_custom_call.1} parent=29 // pred_fallthru
              _
            // Predicated region
            $region63: #{tpu_custom_call.1} parent=29 // pred_check
              _
            $region64: #{tpu_custom_call.1} parent=29 // pred_check_branch
              %255 = sbr.rel (0) target = $region66
            $region65: #{tpu_custom_call.1} parent=29 // pred_region
              %256 = vsyncadd [#allocation7], 1728
            $region66: #{tpu_custom_call.1} parent=29 // pred_fallthru
              _
            %s257 = smul.u32 4, 3
            %s258 = smul.u32 %s257, 3
            %s259 = smul.u32 %s258, 1
            %s260 = smul.u32 %s259, 3
            %s261 = sshll.u32 %s260, 4
            %262 = dma.done [#allocation7], %s261
        $region28: #{tpu_custom_call.1} parent=23 // pred_fallthru
          _
        %v263 = vld [vmem:[%s171] sm:$0xff]
        %v264 = vld [vmem:[%s171 + $0x8] sm:$0xff]
        %v265 = vld [vmem:[%s171 + $0x10] sm:$0x3]
        %v266 = vld [vmem:[%s171 + $0x18] sm:$0xff]
        %v267 = vld [vmem:[%s171 + $0x20] sm:$0xff]
        %v268 = vld [vmem:[%s171 + $0x28] sm:$0x3]
        %v269 = vld [vmem:[%s171 + $0x30] sm:$0xff]
        %v270 = vld [vmem:[%s171 + $0x38] sm:$0xff]
        %v271 = vld [vmem:[%s171 + $0x40] sm:$0x3]
        %v272 = vld [vmem:[%s171 + $0x48] sm:$0xff]
        %v273 = vld [vmem:[%s171 + $0x50] sm:$0xff]
        %v274 = vld [vmem:[%s171 + $0x58] sm:$0x3]
        %v275 = vld [vmem:[%s171 + $0x60] sm:$0xff]
        %v276 = vld [vmem:[%s171 + $0x68] sm:$0xff]
        %v277 = vld [vmem:[%s171 + $0x70] sm:$0x3]
        %v278 = vld [vmem:[%s171 + $0x78] sm:$0xff]
        %v279 = vld [vmem:[%s171 + $0x80] sm:$0xff]
        %v280 = vld [vmem:[%s171 + $0x88] sm:$0x3]
        %v281 = vld [vmem:[%s171 + $0x90] sm:$0xff]
        %v282 = vld [vmem:[%s171 + $0x98] sm:$0xff]
        %v283 = vld [vmem:[%s171 + $0xa0] sm:$0x3]
        %v284 = vld [vmem:[%s171 + $0xa8] sm:$0xff]
        %v285 = vld [vmem:[%s171 + $0xb0] sm:$0xff]
        %v286 = vld [vmem:[%s171 + $0xb8] sm:$0x3]
        %v287 = vld [vmem:[%s171 + $0xc0] sm:$0xff]
        %v288 = vld [vmem:[%s171 + $0xc8] sm:$0xff]
        %v289 = vld [vmem:[%s171 + $0xd0] sm:$0x3]
        %v290 = vld [vmem:[%s171 + $0xd8] sm:$0xff]
        %v291 = vld [vmem:[%s171 + $0xe0] sm:$0xff]
        %v292 = vld [vmem:[%s171 + $0xe8] sm:$0x3]
        %v293 = vld [vmem:[%s171 + $0xf0] sm:$0xff]
        %v294 = vld [vmem:[%s171 + $0xf8] sm:$0xff]
        %v295 = vld [vmem:[%s171 + $0x100] sm:$0x3]
        %v296 = vld [vmem:[%s171 + $0x108] sm:$0xff]
        %v297 = vld [vmem:[%s171 + $0x110] sm:$0xff]
        %v298 = vld [vmem:[%s171 + $0x118] sm:$0x3]
        %v299 = vld [vmem:[%s171 + $0x120] sm:$0xff]
        %v300 = vld [vmem:[%s171 + $0x128] sm:$0xff]
        %v301 = vld [vmem:[%s171 + $0x130] sm:$0x3]
        %v302 = vld [vmem:[%s171 + $0x138] sm:$0xff]
        %v303 = vld [vmem:[%s171 + $0x140] sm:$0xff]
        %v304 = vld [vmem:[%s171 + $0x148] sm:$0x3]
        %v305 = vld [vmem:[%s171 + $0x150] sm:$0xff]
        %v306 = vld [vmem:[%s171 + $0x158] sm:$0xff]
        %v307 = vld [vmem:[%s171 + $0x160] sm:$0x3]
        %v308 = vld [vmem:[%s171 + $0x168] sm:$0xff]
        %v309 = vld [vmem:[%s171 + $0x170] sm:$0xff]
        %v310 = vld [vmem:[%s171 + $0x178] sm:$0x3]
        %v311 = vld [vmem:[%s171 + $0x180] sm:$0xff]
        %v312 = vld [vmem:[%s171 + $0x188] sm:$0xff]
        %v313 = vld [vmem:[%s171 + $0x190] sm:$0x3]
        %v314 = vld [vmem:[%s171 + $0x198] sm:$0xff]
        %v315 = vld [vmem:[%s171 + $0x1a0] sm:$0xff]
        %v316 = vld [vmem:[%s171 + $0x1a8] sm:$0x3]
        %v317 = vld [vmem:[#allocation2 + $0x4] sm:$0xf]
        %s318 = scalar_lea.vmem [#allocation2], 36
        %v319 = vld [vmem:[%s318 + $0x4] sm:$0xff]
        %v321 = vcombine.high %v319, %v319
        %vm322 = vcmask 31744
        %v324 = vsel %vm322, %v266, 0
        %v327 = vsel %vm322, %v267, 0
        %v330 = vsel %vm322, %v269, 0
        %v333 = vsel %vm322, %v270, 0
        %v336 = vsel %vm322, %v272, 0
        %v339 = vsel %vm322, %v273, 0
        %v342 = vsel %vm322, %v275, 0
        %v345 = vsel %vm322, %v276, 0
        %v348 = vsel %vm322, %v278, 0
        %v351 = vsel %vm322, %v279, 0
        %v354 = vsel %vm322, %v281, 0
        %v357 = vsel %vm322, %v282, 0
        %v360 = vsel %vm322, %v284, 0
        %v363 = vsel %vm322, %v285, 0
        %v366 = vsel %vm322, %v287, 0
        %v369 = vsel %vm322, %v288, 0
        %v372 = vsel %vm322, %v290, 0
        %v375 = vsel %vm322, %v291, 0
        %v378 = vsel %vm322, %v293, 0
        %v381 = vsel %vm322, %v294, 0
        %v384 = vsel %vm322, %v296, 0
        %v387 = vsel %vm322, %v297, 0
        %v390 = vsel %vm322, %v299, 0
        %v393 = vsel %vm322, %v300, 0
        %v396 = vsel %vm322, %v302, 0
        %v399 = vsel %vm322, %v303, 0
        %v402 = vsel %vm322, %v305, 0
        %v405 = vsel %vm322, %v306, 0
        %v408 = vsel %vm322, %v308, 0
        %v411 = vsel %vm322, %v309, 0
        %v414 = vsel %vm322, %v311, 0
        %v417 = vsel %vm322, %v312, 0
        %vm419 = vcmask 1043456
        %v420 = vsel %vm419, %v319, 0
        %v422 = vsel %vm419, %v321, 0
        %424 = vmatprep.subr.mxu0 %v422
        %425 = vmatpush1.msra.mxu0 %v420
        %426 = vmatprep.subr.mxu0 0.0
        %427 = vmatpush1.msra.mxu0 0.0
        %428 = vmatprep.subr.mxu0 0.0
        %429 = vmatpush1.msra.mxu0 0.0
        %430 = vmatprep.subr.mxu0 0.0
        %431 = vmatpush1.msra.mxu0 0.0
        %432 = vmatprep.subr.mxu0 0.0
        %433 = vmatpush1.msra.mxu0 0.0
        %434 = vmatprep.subr.mxu0 0.0
        %435 = vmatpush1.msra.mxu0 0.0
        %436 = vmatprep.subr.mxu0 0.0
        %437 = vmatpush1.msra.mxu0 0.0
        %438 = vmatprep.subr.mxu0 0.0
        %439 = vmatpush1.msra.mxu0 0.0
        %440 = vmatprep.subr.mxu0 0.0
        %441 = vmatpush1.msra.mxu0 0.0
        %442 = vmatprep.subr.mxu0 0.0
        %443 = vmatpush1.msra.mxu0 0.0
        %444 = vmatprep.subr.mxu0 0.0
        %445 = vmatpush1.msra.mxu0 0.0
        %446 = vmatprep.subr.mxu0 0.0
        %447 = vmatpush1.msra.mxu0 0.0
        %448 = vmatprep.subr.mxu0 0.0
        %449 = vmatpush1.msra.mxu0 0.0
        %450 = vmatprep.subr.mxu0 0.0
        %451 = vmatpush1.msra.mxu0 0.0
        %452 = vmatprep.subr.mxu0 0.0
        %453 = vmatpush1.msra.mxu0 0.0
        %454 = vmatprep.subr.mxu0 0.0
        %455 = vmatpush1.msra.mxu0 0.0
        %456 = vmatprep.subr.mxu0 0.0
        %457 = vmatpush1.msra.mxu0 0.0
        %458 = vmatprep.subr.mxu0 0.0
        %459 = vmatpush1.msra.mxu0 0.0
        %460 = vmatprep.subr.mxu0 0.0
        %461 = vmatpush1.msra.mxu0 0.0
        %462 = vmatprep.subr.mxu0 0.0
        %463 = vmatpush1.msra.mxu0 0.0
        %464 = vmatprep.subr.mxu0 0.0
        %465 = vmatpush1.msra.mxu0 0.0
        %466 = vmatprep.subr.mxu0 0.0
        %467 = vmatpush1.msra.mxu0 0.0
        %468 = vmatprep.subr.mxu0 0.0
        %469 = vmatpush1.msra.mxu0 0.0
        %470 = vmatprep.subr.mxu0 0.0
        %471 = vmatpush1.msra.mxu0 0.0
        %472 = vmatprep.subr.mxu0 0.0
        %473 = vmatpush1.msra.mxu0 0.0
        %474 = vmatprep.subr.mxu0 0.0
        %475 = vmatpush1.msra.mxu0 0.0
        %476 = vmatprep.subr.mxu0 0.0
        %477 = vmatpush1.msra.mxu0 0.0
        %478 = vmatprep.subr.mxu0 0.0
        %479 = vmatpush1.msra.mxu0 0.0
        %480 = vmatprep.subr.mxu0 0.0
        %481 = vmatpush1.msra.mxu0 0.0
        %482 = vmatprep.subr.mxu0 0.0
        %483 = vmatpush1.msra.mxu0 0.0
        %484 = vmatprep.subr.mxu0 0.0
        %485 = vmatpush1.msra.mxu0 0.0
        %486 = vmatprep.subr.mxu0 0.0
        %487 = vmatpush1.msra.mxu0 0.0
        %488 = vmatprep.mubr.f32.mxu0 0.0
        %489 = vmatmul.mubr.f32.gmra.mrb[0].mxu0 %v324
        %v490 = vpop.f32.mrb[0].mxu0
        %v491 = vadd.f32 0.0, %v490
        %v492 = vpop.f32.mrb[0].mxu0
        %v493 = vadd.f32 0.0, %v492
        %494 = vmatprep.mubr.f32.mxu0 0.0
        %495 = vmatmul.mubr.f32.gmra.mrb[0].mxu0 %v327
        %v496 = vpop.f32.mrb[0].mxu0
        %v497 = vadd.f32 0.0, %v496
        %v498 = vpop.f32.mrb[0].mxu0
        %v499 = vadd.f32 0.0, %v498
        %500 = vmatprep.mubr.f32.mxu0 0.0
        %501 = vmatmul.mubr.f32.gmra.mrb[0].mxu0 %v330
        %v502 = vpop.f32.mrb[0].mxu0
        %v503 = vadd.f32 0.0, %v502
        %v504 = vpop.f32.mrb[0].mxu0
        %v505 = vadd.f32 0.0, %v504
        %506 = vmatprep.mubr.f32.mxu0 0.0
        %507 = vmatmul.mubr.f32.gmra.mrb[0].mxu0 %v333
        %v508 = vpop.f32.mrb[0].mxu0
        %v509 = vadd.f32 0.0, %v508
        %v510 = vpop.f32.mrb[0].mxu0
        %v511 = vadd.f32 0.0, %v510
        %512 = vmatprep.mubr.f32.mxu0 0.0
        %513 = vmatmul.mubr.f32.gmra.mrb[0].mxu0 %v336
        %v514 = vpop.f32.mrb[0].mxu0
        %v515 = vadd.f32 0.0, %v514
        %v516 = vpop.f32.mrb[0].mxu0
        %v517 = vadd.f32 0.0, %v516
        %518 = vmatprep.mubr.f32.mxu0 0.0
        %519 = vmatmul.mubr.f32.gmra.mrb[0].mxu0 %v339
        %v520 = vpop.f32.mrb[0].mxu0
        %v521 = vadd.f32 0.0, %v520
        %v522 = vpop.f32.mrb[0].mxu0
        %v523 = vadd.f32 0.0, %v522
        %524 = vmatprep.mubr.f32.mxu0 0.0
        %525 = vmatmul.mubr.f32.gmra.mrb[0].mxu0 %v342
        %v526 = vpop.f32.mrb[0].mxu0
        %v527 = vadd.f32 0.0, %v526
        %v528 = vpop.f32.mrb[0].mxu0
        %v529 = vadd.f32 0.0, %v528
        %530 = vmatprep.mubr.f32.mxu0 0.0
        %531 = vmatmul.mubr.f32.gmra.mrb[0].mxu0 %v345
        %v532 = vpop.f32.mrb[0].mxu0
        %v533 = vadd.f32 0.0, %v532
        %v534 = vpop.f32.mrb[0].mxu0
        %v535 = vadd.f32 0.0, %v534
        %536 = vmatprep.mubr.f32.mxu0 0.0
        %537 = vmatmul.mubr.f32.gmra.mrb[0].mxu0 %v348
        %v538 = vpop.f32.mrb[0].mxu0
        %v539 = vadd.f32 0.0, %v538
        %v540 = vpop.f32.mrb[0].mxu0
        %v541 = vadd.f32 0.0, %v540
        %542 = vmatprep.mubr.f32.mxu0 0.0
        %543 = vmatmul.mubr.f32.gmra.mrb[0].mxu0 %v351
        %v544 = vpop.f32.mrb[0].mxu0
        %v545 = vadd.f32 0.0, %v544
        %v546 = vpop.f32.mrb[0].mxu0
        %v547 = vadd.f32 0.0, %v546
        %548 = vmatprep.mubr.f32.mxu0 0.0
        %549 = vmatmul.mubr.f32.gmra.mrb[0].mxu0 %v354
        %v550 = vpop.f32.mrb[0].mxu0
        %v551 = vadd.f32 0.0, %v550
        %v552 = vpop.f32.mrb[0].mxu0
        %v553 = vadd.f32 0.0, %v552
        %554 = vmatprep.mubr.f32.mxu0 0.0
        %555 = vmatmul.mubr.f32.gmra.mrb[0].mxu0 %v357
        %v556 = vpop.f32.mrb[0].mxu0
        %v557 = vadd.f32 0.0, %v556
        %v558 = vpop.f32.mrb[0].mxu0
        %v559 = vadd.f32 0.0, %v558
        %560 = vmatprep.mubr.f32.mxu0 0.0
        %561 = vmatmul.mubr.f32.gmra.mrb[0].mxu0 %v360
        %v562 = vpop.f32.mrb[0].mxu0
        %v563 = vadd.f32 0.0, %v562
        %v564 = vpop.f32.mrb[0].mxu0
        %v565 = vadd.f32 0.0, %v564
        %566 = vmatprep.mubr.f32.mxu0 0.0
        %567 = vmatmul.mubr.f32.gmra.mrb[0].mxu0 %v363
        %v568 = vpop.f32.mrb[0].mxu0
        %v569 = vadd.f32 0.0, %v568
        %v570 = vpop.f32.mrb[0].mxu0
        %v571 = vadd.f32 0.0, %v570
        %572 = vmatprep.mubr.f32.mxu0 0.0
        %573 = vmatmul.mubr.f32.gmra.mrb[0].mxu0 %v366
        %v574 = vpop.f32.mrb[0].mxu0
        %v575 = vadd.f32 0.0, %v574
        %v576 = vpop.f32.mrb[0].mxu0
        %v577 = vadd.f32 0.0, %v576
        %578 = vmatprep.mubr.f32.mxu0 0.0
        %579 = vmatmul.mubr.f32.gmra.mrb[0].mxu0 %v369
        %v580 = vpop.f32.mrb[0].mxu0
        %v581 = vadd.f32 0.0, %v580
        %v582 = vpop.f32.mrb[0].mxu0
        %v583 = vadd.f32 0.0, %v582
        %584 = vmatprep.mubr.f32.mxu0 0.0
        %585 = vmatmul.mubr.f32.gmra.mrb[0].mxu0 %v372
        %v586 = vpop.f32.mrb[0].mxu0
        %v587 = vadd.f32 0.0, %v586
        %v588 = vpop.f32.mrb[0].mxu0
        %v589 = vadd.f32 0.0, %v588
        %590 = vmatprep.mubr.f32.mxu0 0.0
        %591 = vmatmul.mubr.f32.gmra.mrb[0].mxu0 %v375
        %v592 = vpop.f32.mrb[0].mxu0
        %v593 = vadd.f32 0.0, %v592
        %v594 = vpop.f32.mrb[0].mxu0
        %v595 = vadd.f32 0.0, %v594
        %596 = vmatprep.mubr.f32.mxu0 0.0
        %597 = vmatmul.mubr.f32.gmra.mrb[0].mxu0 %v378
        %v598 = vpop.f32.mrb[0].mxu0
        %v599 = vadd.f32 0.0, %v598
        %v600 = vpop.f32.mrb[0].mxu0
        %v601 = vadd.f32 0.0, %v600
        %602 = vmatprep.mubr.f32.mxu0 0.0
        %603 = vmatmul.mubr.f32.gmra.mrb[0].mxu0 %v381
        %v604 = vpop.f32.mrb[0].mxu0
        %v605 = vadd.f32 0.0, %v604
        %v606 = vpop.f32.mrb[0].mxu0
        %v607 = vadd.f32 0.0, %v606
        %608 = vmatprep.mubr.f32.mxu0 0.0
        %609 = vmatmul.mubr.f32.gmra.mrb[0].mxu0 %v384
        %v610 = vpop.f32.mrb[0].mxu0
        %v611 = vadd.f32 0.0, %v610
        %v612 = vpop.f32.mrb[0].mxu0
        %v613 = vadd.f32 0.0, %v612
        %614 = vmatprep.mubr.f32.mxu0 0.0
        %615 = vmatmul.mubr.f32.gmra.mrb[0].mxu0 %v387
        %v616 = vpop.f32.mrb[0].mxu0
        %v617 = vadd.f32 0.0, %v616
        %v618 = vpop.f32.mrb[0].mxu0
        %v619 = vadd.f32 0.0, %v618
        %620 = vmatprep.mubr.f32.mxu0 0.0
        %621 = vmatmul.mubr.f32.gmra.mrb[0].mxu0 %v390
        %v622 = vpop.f32.mrb[0].mxu0
        %v623 = vadd.f32 0.0, %v622
        %v624 = vpop.f32.mrb[0].mxu0
        %v625 = vadd.f32 0.0, %v624
        %626 = vmatprep.mubr.f32.mxu0 0.0
        %627 = vmatmul.mubr.f32.gmra.mrb[0].mxu0 %v393
        %v628 = vpop.f32.mrb[0].mxu0
        %v629 = vadd.f32 0.0, %v628
        %v630 = vpop.f32.mrb[0].mxu0
        %v631 = vadd.f32 0.0, %v630
        %632 = vmatprep.mubr.f32.mxu0 0.0
        %633 = vmatmul.mubr.f32.gmra.mrb[0].mxu0 %v396
        %v634 = vpop.f32.mrb[0].mxu0
        %v635 = vadd.f32 0.0, %v634
        %v636 = vpop.f32.mrb[0].mxu0
        %v637 = vadd.f32 0.0, %v636
        %638 = vmatprep.mubr.f32.mxu0 0.0
        %639 = vmatmul.mubr.f32.gmra.mrb[0].mxu0 %v399
        %v640 = vpop.f32.mrb[0].mxu0
        %v641 = vadd.f32 0.0, %v640
        %v642 = vpop.f32.mrb[0].mxu0
        %v643 = vadd.f32 0.0, %v642
        %644 = vmatprep.mubr.f32.mxu0 0.0
        %645 = vmatmul.mubr.f32.gmra.mrb[0].mxu0 %v402
        %v646 = vpop.f32.mrb[0].mxu0
        %v647 = vadd.f32 0.0, %v646
        %v648 = vpop.f32.mrb[0].mxu0
        %v649 = vadd.f32 0.0, %v648
        %650 = vmatprep.mubr.f32.mxu0 0.0
        %651 = vmatmul.mubr.f32.gmra.mrb[0].mxu0 %v405
        %v652 = vpop.f32.mrb[0].mxu0
        %v653 = vadd.f32 0.0, %v652
        %v654 = vpop.f32.mrb[0].mxu0
        %v655 = vadd.f32 0.0, %v654
        %656 = vmatprep.mubr.f32.mxu0 0.0
        %657 = vmatmul.mubr.f32.gmra.mrb[0].mxu0 %v408
        %v658 = vpop.f32.mrb[0].mxu0
        %v659 = vadd.f32 0.0, %v658
        %v660 = vpop.f32.mrb[0].mxu0
        %v661 = vadd.f32 0.0, %v660
        %662 = vmatprep.mubr.f32.mxu0 0.0
        %663 = vmatmul.mubr.f32.gmra.mrb[0].mxu0 %v411
        %v664 = vpop.f32.mrb[0].mxu0
        %v665 = vadd.f32 0.0, %v664
        %v666 = vpop.f32.mrb[0].mxu0
        %v667 = vadd.f32 0.0, %v666
        %668 = vmatprep.mubr.f32.mxu0 0.0
        %669 = vmatmul.mubr.f32.gmra.mrb[0].mxu0 %v414
        %v670 = vpop.f32.mrb[0].mxu0
        %v671 = vadd.f32 0.0, %v670
        %v672 = vpop.f32.mrb[0].mxu0
        %v673 = vadd.f32 0.0, %v672
        %674 = vmatprep.mubr.f32.mxu0 0.0
        %675 = vmatmul.mubr.f32.gmra.mrb[0].mxu0 %v417
        %v676 = vpop.f32.mrb[0].mxu0
        %v677 = vadd.f32 0.0, %v676
        %v678 = vpop.f32.mrb[0].mxu0
        %v679 = vadd.f32 0.0, %v678
        %680 = vdwg.mxu0
        %v682 = vsel %vm322, %v263, 0
        %v685 = vsel %vm322, %v264, 0
        %v688 = vsel %vm419, %v317, 0
        %690 = vmatprep.subr.mxu0 0.0
        %691 = vmatpush1.msra.mxu0 %v688
        %692 = vmatprep.subr.mxu0 0.0
        %693 = vmatpush1.msra.mxu0 0.0
        %694 = vmatprep.subr.mxu0 0.0
        %695 = vmatpush1.msra.mxu0 0.0
        %696 = vmatprep.subr.mxu0 0.0
        %697 = vmatpush1.msra.mxu0 0.0
        %698 = vmatprep.subr.mxu0 0.0
        %699 = vmatpush1.msra.mxu0 0.0
        %700 = vmatprep.subr.mxu0 0.0
        %701 = vmatpush1.msra.mxu0 0.0
        %702 = vmatprep.subr.mxu0 0.0
        %703 = vmatpush1.msra.mxu0 0.0
        %704 = vmatprep.subr.mxu0 0.0
        %705 = vmatpush1.msra.mxu0 0.0
        %706 = vmatprep.subr.mxu0 0.0
        %707 = vmatpush1.msra.mxu0 0.0
        %708 = vmatprep.subr.mxu0 0.0
        %709 = vmatpush1.msra.mxu0 0.0
        %710 = vmatprep.subr.mxu0 0.0
        %711 = vmatpush1.msra.mxu0 0.0
        %712 = vmatprep.subr.mxu0 0.0
        %713 = vmatpush1.msra.mxu0 0.0
        %714 = vmatprep.subr.mxu0 0.0
        %715 = vmatpush1.msra.mxu0 0.0
        %716 = vmatprep.subr.mxu0 0.0
        %717 = vmatpush1.msra.mxu0 0.0
        %718 = vmatprep.subr.mxu0 0.0
        %719 = vmatpush1.msra.mxu0 0.0
        %720 = vmatprep.subr.mxu0 0.0
        %721 = vmatpush1.msra.mxu0 0.0
        %722 = vmatprep.subr.mxu0 0.0
        %723 = vmatpush1.msra.mxu0 0.0
        %724 = vmatprep.subr.mxu0 0.0
        %725 = vmatpush1.msra.mxu0 0.0
        %726 = vmatprep.subr.mxu0 0.0
        %727 = vmatpush1.msra.mxu0 0.0
        %728 = vmatprep.subr.mxu0 0.0
        %729 = vmatpush1.msra.mxu0 0.0
        %730 = vmatprep.subr.mxu0 0.0
        %731 = vmatpush1.msra.mxu0 0.0
        %732 = vmatprep.subr.mxu0 0.0
        %733 = vmatpush1.msra.mxu0 0.0
        %734 = vmatprep.subr.mxu0 0.0
        %735 = vmatpush1.msra.mxu0 0.0
        %736 = vmatprep.subr.mxu0 0.0
        %737 = vmatpush1.msra.mxu0 0.0
        %738 = vmatprep.subr.mxu0 0.0
        %739 = vmatpush1.msra.mxu0 0.0
        %740 = vmatprep.subr.mxu0 0.0
        %741 = vmatpush1.msra.mxu0 0.0
        %742 = vmatprep.subr.mxu0 0.0
        %743 = vmatpush1.msra.mxu0 0.0
        %744 = vmatprep.subr.mxu0 0.0
        %745 = vmatpush1.msra.mxu0 0.0
        %746 = vmatprep.subr.mxu0 0.0
        %747 = vmatpush1.msra.mxu0 0.0
        %748 = vmatprep.subr.mxu0 0.0
        %749 = vmatpush1.msra.mxu0 0.0
        %750 = vmatprep.subr.mxu0 0.0
        %751 = vmatpush1.msra.mxu0 0.0
        %752 = vmatprep.subr.mxu0 0.0
        %753 = vmatpush1.msra.mxu0 0.0
        %754 = vmatprep.mubr.f32.mxu0 0.0
        %755 = vmatmul.mubr.f32.gmra.mrb[0].mxu0 %v682
        %v756 = vpop.f32.mrb[0].mxu0
        %v757 = vadd.f32 %v491, %v756
        %v758 = vpop.f32.mrb[0].mxu0
        %759 = vmatprep.mubr.f32.mxu0 0.0
        %760 = vmatmul.mubr.f32.gmra.mrb[0].mxu0 %v685
        %v761 = vpop.f32.mrb[0].mxu0
        %v762 = vadd.f32 %v497, %v761
        %v763 = vpop.f32.mrb[0].mxu0
        %764 = vmatprep.mubr.f32.mxu0 0.0
        %765 = vmatmul.mubr.f32.gmra.mrb[0].mxu0 %v324
        %v766 = vpop.f32.mrb[0].mxu0
        %v767 = vadd.f32 %v503, %v766
        %v768 = vpop.f32.mrb[0].mxu0
        %769 = vmatprep.mubr.f32.mxu0 0.0
        %770 = vmatmul.mubr.f32.gmra.mrb[0].mxu0 %v327
        %v771 = vpop.f32.mrb[0].mxu0
        %v772 = vadd.f32 %v509, %v771
        %v773 = vpop.f32.mrb[0].mxu0
        %774 = vmatprep.mubr.f32.mxu0 0.0
        %775 = vmatmul.mubr.f32.gmra.mrb[0].mxu0 %v330
        %v776 = vpop.f32.mrb[0].mxu0
        %v777 = vadd.f32 %v515, %v776
        %v778 = vpop.f32.mrb[0].mxu0
        %779 = vmatprep.mubr.f32.mxu0 0.0
        %780 = vmatmul.mubr.f32.gmra.mrb[0].mxu0 %v333
        %v781 = vpop.f32.mrb[0].mxu0
        %v782 = vadd.f32 %v521, %v781
        %v783 = vpop.f32.mrb[0].mxu0
        %784 = vmatprep.mubr.f32.mxu0 0.0
        %785 = vmatmul.mubr.f32.gmra.mrb[0].mxu0 %v336
        %v786 = vpop.f32.mrb[0].mxu0
        %v787 = vadd.f32 %v527, %v786
        %v788 = vpop.f32.mrb[0].mxu0
        %789 = vmatprep.mubr.f32.mxu0 0.0
        %790 = vmatmul.mubr.f32.gmra.mrb[0].mxu0 %v339
        %v791 = vpop.f32.mrb[0].mxu0
        %v792 = vadd.f32 %v533, %v791
        %v793 = vpop.f32.mrb[0].mxu0
        %794 = vmatprep.mubr.f32.mxu0 0.0
        %795 = vmatmul.mubr.f32.gmra.mrb[0].mxu0 %v342
        %v796 = vpop.f32.mrb[0].mxu0
        %v797 = vadd.f32 %v539, %v796
        %v798 = vpop.f32.mrb[0].mxu0
        %799 = vmatprep.mubr.f32.mxu0 0.0
        %800 = vmatmul.mubr.f32.gmra.mrb[0].mxu0 %v345
        %v801 = vpop.f32.mrb[0].mxu0
        %v802 = vadd.f32 %v545, %v801
        %v803 = vpop.f32.mrb[0].mxu0
        %804 = vmatprep.mubr.f32.mxu0 0.0
        %805 = vmatmul.mubr.f32.gmra.mrb[0].mxu0 %v348
        %v806 = vpop.f32.mrb[0].mxu0
        %v807 = vadd.f32 %v551, %v806
        %v808 = vpop.f32.mrb[0].mxu0
        %809 = vmatprep.mubr.f32.mxu0 0.0
        %810 = vmatmul.mubr.f32.gmra.mrb[0].mxu0 %v351
        %v811 = vpop.f32.mrb[0].mxu0
        %v812 = vadd.f32 %v557, %v811
        %v813 = vpop.f32.mrb[0].mxu0
        %814 = vmatprep.mubr.f32.mxu0 0.0
        %815 = vmatmul.mubr.f32.gmra.mrb[0].mxu0 %v354
        %v816 = vpop.f32.mrb[0].mxu0
        %v817 = vadd.f32 %v563, %v816
        %v818 = vpop.f32.mrb[0].mxu0
        %819 = vmatprep.mubr.f32.mxu0 0.0
        %820 = vmatmul.mubr.f32.gmra.mrb[0].mxu0 %v357
        %v821 = vpop.f32.mrb[0].mxu0
        %v822 = vadd.f32 %v569, %v821
        %v823 = vpop.f32.mrb[0].mxu0
        %824 = vmatprep.mubr.f32.mxu0 0.0
        %825 = vmatmul.mubr.f32.gmra.mrb[0].mxu0 %v360
        %v826 = vpop.f32.mrb[0].mxu0
        %v827 = vadd.f32 %v575, %v826
        %v828 = vpop.f32.mrb[0].mxu0
        %829 = vmatprep.mubr.f32.mxu0 0.0
        %830 = vmatmul.mubr.f32.gmra.mrb[0].mxu0 %v363
        %v831 = vpop.f32.mrb[0].mxu0
        %v832 = vadd.f32 %v581, %v831
        %v833 = vpop.f32.mrb[0].mxu0
        %834 = vmatprep.mubr.f32.mxu0 0.0
        %835 = vmatmul.mubr.f32.gmra.mrb[0].mxu0 %v366
        %v836 = vpop.f32.mrb[0].mxu0
        %v837 = vadd.f32 %v587, %v836
        %v838 = vpop.f32.mrb[0].mxu0
        %839 = vmatprep.mubr.f32.mxu0 0.0
        %840 = vmatmul.mubr.f32.gmra.mrb[0].mxu0 %v369
        %v841 = vpop.f32.mrb[0].mxu0
        %v842 = vadd.f32 %v593, %v841
        %v843 = vpop.f32.mrb[0].mxu0
        %844 = vmatprep.mubr.f32.mxu0 0.0
        %845 = vmatmul.mubr.f32.gmra.mrb[0].mxu0 %v372
        %v846 = vpop.f32.mrb[0].mxu0
        %v847 = vadd.f32 %v599, %v846
        %v848 = vpop.f32.mrb[0].mxu0
        %849 = vmatprep.mubr.f32.mxu0 0.0
        %850 = vmatmul.mubr.f32.gmra.mrb[0].mxu0 %v375
        %v851 = vpop.f32.mrb[0].mxu0
        %v852 = vadd.f32 %v605, %v851
        %v853 = vpop.f32.mrb[0].mxu0
        %854 = vmatprep.mubr.f32.mxu0 0.0
        %855 = vmatmul.mubr.f32.gmra.mrb[0].mxu0 %v378
        %v856 = vpop.f32.mrb[0].mxu0
        %v857 = vadd.f32 %v611, %v856
        %v858 = vpop.f32.mrb[0].mxu0
        %859 = vmatprep.mubr.f32.mxu0 0.0
        %860 = vmatmul.mubr.f32.gmra.mrb[0].mxu0 %v381
        %v861 = vpop.f32.mrb[0].mxu0
        %v862 = vadd.f32 %v617, %v861
        %v863 = vpop.f32.mrb[0].mxu0
        %864 = vmatprep.mubr.f32.mxu0 0.0
        %865 = vmatmul.mubr.f32.gmra.mrb[0].mxu0 %v384
        %v866 = vpop.f32.mrb[0].mxu0
        %v867 = vadd.f32 %v623, %v866
        %v868 = vpop.f32.mrb[0].mxu0
        %869 = vmatprep.mubr.f32.mxu0 0.0
        %870 = vmatmul.mubr.f32.gmra.mrb[0].mxu0 %v387
        %v871 = vpop.f32.mrb[0].mxu0
        %v872 = vadd.f32 %v629, %v871
        %v873 = vpop.f32.mrb[0].mxu0
        %874 = vmatprep.mubr.f32.mxu0 0.0
        %875 = vmatmul.mubr.f32.gmra.mrb[0].mxu0 %v390
        %v876 = vpop.f32.mrb[0].mxu0
        %v877 = vadd.f32 %v635, %v876
        %v878 = vpop.f32.mrb[0].mxu0
        %879 = vmatprep.mubr.f32.mxu0 0.0
        %880 = vmatmul.mubr.f32.gmra.mrb[0].mxu0 %v393
        %v881 = vpop.f32.mrb[0].mxu0
        %v882 = vadd.f32 %v641, %v881
        %v883 = vpop.f32.mrb[0].mxu0
        %884 = vmatprep.mubr.f32.mxu0 0.0
        %885 = vmatmul.mubr.f32.gmra.mrb[0].mxu0 %v396
        %v886 = vpop.f32.mrb[0].mxu0
        %v887 = vadd.f32 %v647, %v886
        %v888 = vpop.f32.mrb[0].mxu0
        %889 = vmatprep.mubr.f32.mxu0 0.0
        %890 = vmatmul.mubr.f32.gmra.mrb[0].mxu0 %v399
        %v891 = vpop.f32.mrb[0].mxu0
        %v892 = vadd.f32 %v653, %v891
        %v893 = vpop.f32.mrb[0].mxu0
        %894 = vmatprep.mubr.f32.mxu0 0.0
        %895 = vmatmul.mubr.f32.gmra.mrb[0].mxu0 %v402
        %v896 = vpop.f32.mrb[0].mxu0
        %v897 = vadd.f32 %v659, %v896
        %v898 = vpop.f32.mrb[0].mxu0
        %899 = vmatprep.mubr.f32.mxu0 0.0
        %900 = vmatmul.mubr.f32.gmra.mrb[0].mxu0 %v405
        %v901 = vpop.f32.mrb[0].mxu0
        %v902 = vadd.f32 %v665, %v901
        %v903 = vpop.f32.mrb[0].mxu0
        %904 = vmatprep.mubr.f32.mxu0 0.0
        %905 = vmatmul.mubr.f32.gmra.mrb[0].mxu0 %v408
        %v906 = vpop.f32.mrb[0].mxu0
        %v907 = vadd.f32 %v671, %v906
        %v908 = vpop.f32.mrb[0].mxu0
        %909 = vmatprep.mubr.f32.mxu0 0.0
        %910 = vmatmul.mubr.f32.gmra.mrb[0].mxu0 %v411
        %v911 = vpop.f32.mrb[0].mxu0
        %v912 = vadd.f32 %v677, %v911
        %v913 = vpop.f32.mrb[0].mxu0
        %914 = vdwg.mxu0
        %s915 = scalar_lea.vmem [#allocation2], 72
        %v916 = vld [vmem:[%s915 + $0x4] sm:$0xf]
        %v918 = vsel %vm322, %v314, 0
        %v921 = vsel %vm322, %v315, 0
        %v924 = vsel %vm419, %v916, 0
        %926 = vmatprep.subr.mxu0 0.0
        %927 = vmatpush1.msra.mxu0 %v924
        %928 = vmatprep.subr.mxu0 0.0
        %929 = vmatpush1.msra.mxu0 0.0
        %930 = vmatprep.subr.mxu0 0.0
        %931 = vmatpush1.msra.mxu0 0.0
        %932 = vmatprep.subr.mxu0 0.0
        %933 = vmatpush1.msra.mxu0 0.0
        %934 = vmatprep.subr.mxu0 0.0
        %935 = vmatpush1.msra.mxu0 0.0
        %936 = vmatprep.subr.mxu0 0.0
        %937 = vmatpush1.msra.mxu0 0.0
        %938 = vmatprep.subr.mxu0 0.0
        %939 = vmatpush1.msra.mxu0 0.0
        %940 = vmatprep.subr.mxu0 0.0
        %941 = vmatpush1.msra.mxu0 0.0
        %942 = vmatprep.subr.mxu0 0.0
        %943 = vmatpush1.msra.mxu0 0.0
        %944 = vmatprep.subr.mxu0 0.0
        %945 = vmatpush1.msra.mxu0 0.0
        %946 = vmatprep.subr.mxu0 0.0
        %947 = vmatpush1.msra.mxu0 0.0
        %948 = vmatprep.subr.mxu0 0.0
        %949 = vmatpush1.msra.mxu0 0.0
        %950 = vmatprep.subr.mxu0 0.0
        %951 = vmatpush1.msra.mxu0 0.0
        %952 = vmatprep.subr.mxu0 0.0
        %953 = vmatpush1.msra.mxu0 0.0
        %954 = vmatprep.subr.mxu0 0.0
        %955 = vmatpush1.msra.mxu0 0.0
        %956 = vmatprep.subr.mxu0 0.0
        %957 = vmatpush1.msra.mxu0 0.0
        %958 = vmatprep.subr.mxu0 0.0
        %959 = vmatpush1.msra.mxu0 0.0
        %960 = vmatprep.subr.mxu0 0.0
        %961 = vmatpush1.msra.mxu0 0.0
        %962 = vmatprep.subr.mxu0 0.0
        %963 = vmatpush1.msra.mxu0 0.0
        %964 = vmatprep.subr.mxu0 0.0
        %965 = vmatpush1.msra.mxu0 0.0
        %966 = vmatprep.subr.mxu0 0.0
        %967 = vmatpush1.msra.mxu0 0.0
        %968 = vmatprep.subr.mxu0 0.0
        %969 = vmatpush1.msra.mxu0 0.0
        %970 = vmatprep.subr.mxu0 0.0
        %971 = vmatpush1.msra.mxu0 0.0
        %972 = vmatprep.subr.mxu0 0.0
        %973 = vmatpush1.msra.mxu0 0.0
        %974 = vmatprep.subr.mxu0 0.0
        %975 = vmatpush1.msra.mxu0 0.0
        %976 = vmatprep.subr.mxu0 0.0
        %977 = vmatpush1.msra.mxu0 0.0
        %978 = vmatprep.subr.mxu0 0.0
        %979 = vmatpush1.msra.mxu0 0.0
        %980 = vmatprep.subr.mxu0 0.0
        %981 = vmatpush1.msra.mxu0 0.0
        %982 = vmatprep.subr.mxu0 0.0
        %983 = vmatpush1.msra.mxu0 0.0
        %984 = vmatprep.subr.mxu0 0.0
        %985 = vmatpush1.msra.mxu0 0.0
        %986 = vmatprep.subr.mxu0 0.0
        %987 = vmatpush1.msra.mxu0 0.0
        %988 = vmatprep.subr.mxu0 0.0
        %989 = vmatpush1.msra.mxu0 0.0
        %990 = vmatprep.mubr.f32.mxu0 0.0
        %991 = vmatmul.mubr.f32.gmra.mrb[0].mxu0 %v330
        %v992 = vpop.f32.mrb[0].mxu0
        %v993 = vadd.f32 0.0, %v992
        %v994 = vpop.f32.mrb[0].mxu0
        %995 = vmatprep.mubr.f32.mxu0 0.0
        %996 = vmatmul.mubr.f32.gmra.mrb[0].mxu0 %v333
        %v997 = vpop.f32.mrb[0].mxu0
        %v998 = vadd.f32 0.0, %v997
        %v999 = vpop.f32.mrb[0].mxu0
        %1000 = vmatprep.mubr.f32.mxu0 0.0
        %1001 = vmatmul.mubr.f32.gmra.mrb[0].mxu0 %v336
        %v1002 = vpop.f32.mrb[0].mxu0
        %v1003 = vadd.f32 0.0, %v1002
        %v1004 = vpop.f32.mrb[0].mxu0
        %1005 = vmatprep.mubr.f32.mxu0 0.0
        %1006 = vmatmul.mubr.f32.gmra.mrb[0].mxu0 %v339
        %v1007 = vpop.f32.mrb[0].mxu0
        %v1008 = vadd.f32 0.0, %v1007
        %v1009 = vpop.f32.mrb[0].mxu0
        %1010 = vmatprep.mubr.f32.mxu0 0.0
        %1011 = vmatmul.mubr.f32.gmra.mrb[0].mxu0 %v342
        %v1012 = vpop.f32.mrb[0].mxu0
        %v1013 = vadd.f32 0.0, %v1012
        %v1014 = vpop.f32.mrb[0].mxu0
        %1015 = vmatprep.mubr.f32.mxu0 0.0
        %1016 = vmatmul.mubr.f32.gmra.mrb[0].mxu0 %v345
        %v1017 = vpop.f32.mrb[0].mxu0
        %v1018 = vadd.f32 0.0, %v1017
        %v1019 = vpop.f32.mrb[0].mxu0
        %1020 = vmatprep.mubr.f32.mxu0 0.0
        %1021 = vmatmul.mubr.f32.gmra.mrb[0].mxu0 %v348
        %v1022 = vpop.f32.mrb[0].mxu0
        %v1023 = vadd.f32 0.0, %v1022
        %v1024 = vpop.f32.mrb[0].mxu0
        %1025 = vmatprep.mubr.f32.mxu0 0.0
        %1026 = vmatmul.mubr.f32.gmra.mrb[0].mxu0 %v351
        %v1027 = vpop.f32.mrb[0].mxu0
        %v1028 = vadd.f32 0.0, %v1027
        %v1029 = vpop.f32.mrb[0].mxu0
        %1030 = vmatprep.mubr.f32.mxu0 0.0
        %1031 = vmatmul.mubr.f32.gmra.mrb[0].mxu0 %v354
        %v1032 = vpop.f32.mrb[0].mxu0
        %v1033 = vadd.f32 0.0, %v1032
        %v1034 = vpop.f32.mrb[0].mxu0
        %1035 = vmatprep.mubr.f32.mxu0 0.0
        %1036 = vmatmul.mubr.f32.gmra.mrb[0].mxu0 %v357
        %v1037 = vpop.f32.mrb[0].mxu0
        %v1038 = vadd.f32 0.0, %v1037
        %v1039 = vpop.f32.mrb[0].mxu0
        %1040 = vmatprep.mubr.f32.mxu0 0.0
        %1041 = vmatmul.mubr.f32.gmra.mrb[0].mxu0 %v360
        %v1042 = vpop.f32.mrb[0].mxu0
        %v1043 = vadd.f32 0.0, %v1042
        %v1044 = vpop.f32.mrb[0].mxu0
        %1045 = vmatprep.mubr.f32.mxu0 0.0
        %1046 = vmatmul.mubr.f32.gmra.mrb[0].mxu0 %v363
        %v1047 = vpop.f32.mrb[0].mxu0
        %v1048 = vadd.f32 0.0, %v1047
        %v1049 = vpop.f32.mrb[0].mxu0
        %1050 = vmatprep.mubr.f32.mxu0 0.0
        %1051 = vmatmul.mubr.f32.gmra.mrb[0].mxu0 %v366
        %v1052 = vpop.f32.mrb[0].mxu0
        %v1053 = vadd.f32 0.0, %v1052
        %v1054 = vpop.f32.mrb[0].mxu0
        %1055 = vmatprep.mubr.f32.mxu0 0.0
        %1056 = vmatmul.mubr.f32.gmra.mrb[0].mxu0 %v369
        %v1057 = vpop.f32.mrb[0].mxu0
        %v1058 = vadd.f32 0.0, %v1057
        %v1059 = vpop.f32.mrb[0].mxu0
        %1060 = vmatprep.mubr.f32.mxu0 0.0
        %1061 = vmatmul.mubr.f32.gmra.mrb[0].mxu0 %v372
        %v1062 = vpop.f32.mrb[0].mxu0
        %v1063 = vadd.f32 0.0, %v1062
        %v1064 = vpop.f32.mrb[0].mxu0
        %1065 = vmatprep.mubr.f32.mxu0 0.0
        %1066 = vmatmul.mubr.f32.gmra.mrb[0].mxu0 %v375
        %v1067 = vpop.f32.mrb[0].mxu0
        %v1068 = vadd.f32 0.0, %v1067
        %v1069 = vpop.f32.mrb[0].mxu0
        %1070 = vmatprep.mubr.f32.mxu0 0.0
        %1071 = vmatmul.mubr.f32.gmra.mrb[0].mxu0 %v378
        %v1072 = vpop.f32.mrb[0].mxu0
        %v1073 = vadd.f32 0.0, %v1072
        %v1074 = vpop.f32.mrb[0].mxu0
        %1075 = vmatprep.mubr.f32.mxu0 0.0
        %1076 = vmatmul.mubr.f32.gmra.mrb[0].mxu0 %v381
        %v1077 = vpop.f32.mrb[0].mxu0
        %v1078 = vadd.f32 0.0, %v1077
        %v1079 = vpop.f32.mrb[0].mxu0
        %1080 = vmatprep.mubr.f32.mxu0 0.0
        %1081 = vmatmul.mubr.f32.gmra.mrb[0].mxu0 %v384
        %v1082 = vpop.f32.mrb[0].mxu0
        %v1083 = vadd.f32 0.0, %v1082
        %v1084 = vpop.f32.mrb[0].mxu0
        %1085 = vmatprep.mubr.f32.mxu0 0.0
        %1086 = vmatmul.mubr.f32.gmra.mrb[0].mxu0 %v387
        %v1087 = vpop.f32.mrb[0].mxu0
        %v1088 = vadd.f32 0.0, %v1087
        %v1089 = vpop.f32.mrb[0].mxu0
        %1090 = vmatprep.mubr.f32.mxu0 0.0
        %1091 = vmatmul.mubr.f32.gmra.mrb[0].mxu0 %v390
        %v1092 = vpop.f32.mrb[0].mxu0
        %v1093 = vadd.f32 0.0, %v1092
        %v1094 = vpop.f32.mrb[0].mxu0
        %1095 = vmatprep.mubr.f32.mxu0 0.0
        %1096 = vmatmul.mubr.f32.gmra.mrb[0].mxu0 %v393
        %v1097 = vpop.f32.mrb[0].mxu0
        %v1098 = vadd.f32 0.0, %v1097
        %v1099 = vpop.f32.mrb[0].mxu0
        %1100 = vmatprep.mubr.f32.mxu0 0.0
        %1101 = vmatmul.mubr.f32.gmra.mrb[0].mxu0 %v396
        %v1102 = vpop.f32.mrb[0].mxu0
        %v1103 = vadd.f32 0.0, %v1102
        %v1104 = vpop.f32.mrb[0].mxu0
        %1105 = vmatprep.mubr.f32.mxu0 0.0
        %1106 = vmatmul.mubr.f32.gmra.mrb[0].mxu0 %v399
        %v1107 = vpop.f32.mrb[0].mxu0
        %v1108 = vadd.f32 0.0, %v1107
        %v1109 = vpop.f32.mrb[0].mxu0
        %1110 = vmatprep.mubr.f32.mxu0 0.0
        %1111 = vmatmul.mubr.f32.gmra.mrb[0].mxu0 %v402
        %v1112 = vpop.f32.mrb[0].mxu0
        %v1113 = vadd.f32 0.0, %v1112
        %v1114 = vpop.f32.mrb[0].mxu0
        %1115 = vmatprep.mubr.f32.mxu0 0.0
        %1116 = vmatmul.mubr.f32.gmra.mrb[0].mxu0 %v405
        %v1117 = vpop.f32.mrb[0].mxu0
        %v1118 = vadd.f32 0.0, %v1117
        %v1119 = vpop.f32.mrb[0].mxu0
        %1120 = vmatprep.mubr.f32.mxu0 0.0
        %1121 = vmatmul.mubr.f32.gmra.mrb[0].mxu0 %v408
        %v1122 = vpop.f32.mrb[0].mxu0
        %v1123 = vadd.f32 0.0, %v1122
        %v1124 = vpop.f32.mrb[0].mxu0
        %1125 = vmatprep.mubr.f32.mxu0 0.0
        %1126 = vmatmul.mubr.f32.gmra.mrb[0].mxu0 %v411
        %v1127 = vpop.f32.mrb[0].mxu0
        %v1128 = vadd.f32 0.0, %v1127
        %v1129 = vpop.f32.mrb[0].mxu0
        %1130 = vmatprep.mubr.f32.mxu0 0.0
        %1131 = vmatmul.mubr.f32.gmra.mrb[0].mxu0 %v414
        %v1132 = vpop.f32.mrb[0].mxu0
        %v1133 = vadd.f32 0.0, %v1132
        %v1134 = vpop.f32.mrb[0].mxu0
        %1135 = vmatprep.mubr.f32.mxu0 0.0
        %1136 = vmatmul.mubr.f32.gmra.mrb[0].mxu0 %v417
        %v1137 = vpop.f32.mrb[0].mxu0
        %v1138 = vadd.f32 0.0, %v1137
        %v1139 = vpop.f32.mrb[0].mxu0
        %1140 = vmatprep.mubr.f32.mxu0 0.0
        %1141 = vmatmul.mubr.f32.gmra.mrb[0].mxu0 %v918
        %v1142 = vpop.f32.mrb[0].mxu0
        %v1143 = vadd.f32 0.0, %v1142
        %v1144 = vpop.f32.mrb[0].mxu0
        %1145 = vmatprep.mubr.f32.mxu0 0.0
        %1146 = vmatmul.mubr.f32.gmra.mrb[0].mxu0 %v921
        %v1147 = vpop.f32.mrb[0].mxu0
        %v1148 = vadd.f32 0.0, %v1147
        %v1149 = vpop.f32.mrb[0].mxu0
        %1150 = vdwg.mxu0
        %v1151 = vadd.f32 %v757, %v993
        %v1152 = vadd.f32 %v762, %v998
        %v1153 = vadd.f32 %v767, %v1003
        %v1154 = vadd.f32 %v772, %v1008
        %v1155 = vadd.f32 %v777, %v1013
        %v1156 = vadd.f32 %v782, %v1018
        %v1157 = vadd.f32 %v787, %v1023
        %v1158 = vadd.f32 %v792, %v1028
        %v1159 = vadd.f32 %v797, %v1033
        %v1160 = vadd.f32 %v802, %v1038
        %v1161 = vadd.f32 %v807, %v1043
        %v1162 = vadd.f32 %v812, %v1048
        %v1163 = vadd.f32 %v817, %v1053
        %v1164 = vadd.f32 %v822, %v1058
        %v1165 = vadd.f32 %v827, %v1063
        %v1166 = vadd.f32 %v832, %v1068
        %v1167 = vadd.f32 %v837, %v1073
        %v1168 = vadd.f32 %v842, %v1078
        %v1169 = vadd.f32 %v847, %v1083
        %v1170 = vadd.f32 %v852, %v1088
        %v1171 = vadd.f32 %v857, %v1093
        %v1172 = vadd.f32 %v862, %v1098
        %v1173 = vadd.f32 %v867, %v1103
        %v1174 = vadd.f32 %v872, %v1108
        %v1175 = vadd.f32 %v877, %v1113
        %v1176 = vadd.f32 %v882, %v1118
        %v1177 = vadd.f32 %v887, %v1123
        %v1178 = vadd.f32 %v892, %v1128
        %v1179 = vadd.f32 %v897, %v1133
        %v1180 = vadd.f32 %v902, %v1138
        %v1181 = vadd.f32 %v907, %v1143
        %v1182 = vadd.f32 %v912, %v1148
        %vm1201 = vcmask 1046528
        %v1202 = vrot.slane %v263, 1
        %v1203 = vrot.slane %v264, 1
        %v1204 = vsel %vm1201, %v1202, %v1203
        %v1205 = vrot.slane %v265, 1
        %v1206 = vsel %vm1201, %v1203, %v1205
        %v1207 = vrot.slane %v266, 1
        %v1208 = vrot.slane %v267, 1
        %v1209 = vsel %vm1201, %v1207, %v1208
        %v1210 = vrot.slane %v268, 1
        %v1211 = vsel %vm1201, %v1208, %v1210
        %v1212 = vrot.slane %v269, 1
        %v1213 = vrot.slane %v270, 1
        %v1214 = vsel %vm1201, %v1212, %v1213
        %v1215 = vrot.slane %v271, 1
        %v1216 = vsel %vm1201, %v1213, %v1215
        %v1217 = vrot.slane %v272, 1
        %v1218 = vrot.slane %v273, 1
        %v1219 = vsel %vm1201, %v1217, %v1218
        %v1220 = vrot.slane %v274, 1
        %v1221 = vsel %vm1201, %v1218, %v1220
        %v1222 = vrot.slane %v275, 1
        %v1223 = vrot.slane %v276, 1
        %v1224 = vsel %vm1201, %v1222, %v1223
        %v1225 = vrot.slane %v277, 1
        %v1226 = vsel %vm1201, %v1223, %v1225
        %v1227 = vrot.slane %v278, 1
        %v1228 = vrot.slane %v279, 1
        %v1229 = vsel %vm1201, %v1227, %v1228
        %v1230 = vrot.slane %v280, 1
        %v1231 = vsel %vm1201, %v1228, %v1230
        %v1232 = vrot.slane %v281, 1
        %v1233 = vrot.slane %v282, 1
        %v1234 = vsel %vm1201, %v1232, %v1233
        %v1235 = vrot.slane %v283, 1
        %v1236 = vsel %vm1201, %v1233, %v1235
        %v1237 = vrot.slane %v284, 1
        %v1238 = vrot.slane %v285, 1
        %v1239 = vsel %vm1201, %v1237, %v1238
        %v1240 = vrot.slane %v286, 1
        %v1241 = vsel %vm1201, %v1238, %v1240
        %v1242 = vrot.slane %v287, 1
        %v1243 = vrot.slane %v288, 1
        %v1244 = vsel %vm1201, %v1242, %v1243
        %v1245 = vrot.slane %v289, 1
        %v1246 = vsel %vm1201, %v1243, %v1245
        %v1247 = vrot.slane %v290, 1
        %v1248 = vrot.slane %v291, 1
        %v1249 = vsel %vm1201, %v1247, %v1248
        %v1250 = vrot.slane %v292, 1
        %v1251 = vsel %vm1201, %v1248, %v1250
        %v1252 = vrot.slane %v293, 1
        %v1253 = vrot.slane %v294, 1
        %v1254 = vsel %vm1201, %v1252, %v1253
        %v1255 = vrot.slane %v295, 1
        %v1256 = vsel %vm1201, %v1253, %v1255
        %v1257 = vrot.slane %v296, 1
        %v1258 = vrot.slane %v297, 1
        %v1259 = vsel %vm1201, %v1257, %v1258
        %v1260 = vrot.slane %v298, 1
        %v1261 = vsel %vm1201, %v1258, %v1260
        %v1262 = vrot.slane %v299, 1
        %v1263 = vrot.slane %v300, 1
        %v1264 = vsel %vm1201, %v1262, %v1263
        %v1265 = vrot.slane %v301, 1
        %v1266 = vsel %vm1201, %v1263, %v1265
        %v1267 = vrot.slane %v302, 1
        %v1268 = vrot.slane %v303, 1
        %v1269 = vsel %vm1201, %v1267, %v1268
        %v1270 = vrot.slane %v304, 1
        %v1271 = vsel %vm1201, %v1268, %v1270
        %v1272 = vrot.slane %v305, 1
        %v1273 = vrot.slane %v306, 1
        %v1274 = vsel %vm1201, %v1272, %v1273
        %v1275 = vrot.slane %v307, 1
        %v1276 = vsel %vm1201, %v1273, %v1275
        %v1277 = vrot.slane %v308, 1
        %v1278 = vrot.slane %v309, 1
        %v1279 = vsel %vm1201, %v1277, %v1278
        %v1280 = vrot.slane %v310, 1
        %v1281 = vsel %vm1201, %v1278, %v1280
        %v1282 = vrot.slane %v311, 1
        %v1283 = vrot.slane %v312, 1
        %v1284 = vsel %vm1201, %v1282, %v1283
        %v1285 = vrot.slane %v313, 1
        %v1286 = vsel %vm1201, %v1283, %v1285
        %v1287 = vrot.slane %v314, 1
        %v1288 = vrot.slane %v315, 1
        %v1289 = vsel %vm1201, %v1287, %v1288
        %v1290 = vrot.slane %v316, 1
        %v1291 = vsel %vm1201, %v1288, %v1290
        %s1292 = scalar_lea.vmem [#allocation2], 12
        %v1293 = vld [vmem:[%s1292] sm:$0xff]
        %v1295 = vcombine.high %v1293, %v1293
        %v1296 = vsel %vm322, %v1204, 0
        %v1298 = vsel %vm322, %v1206, 0
        %v1300 = vsel %vm322, %v1209, 0
        %v1302 = vsel %vm322, %v1211, 0
        %v1304 = vsel %vm322, %v1214, 0
        %v1306 = vsel %vm322, %v1216, 0
        %v1308 = vsel %vm322, %v1219, 0
        %v1310 = vsel %vm322, %v1221, 0
        %v1312 = vsel %vm322, %v1224, 0
        %v1314 = vsel %vm322, %v1226, 0
        %v1316 = vsel %vm322, %v1229, 0
        %v1318 = vsel %vm322, %v1231, 0
        %v1320 = vsel %vm322, %v1234, 0
        %v1322 = vsel %vm322, %v1236, 0
        %v1324 = vsel %vm322, %v1239, 0
        %v1326 = vsel %vm322, %v1241, 0
        %v1328 = vsel %vm322, %v1244, 0
        %v1330 = vsel %vm322, %v1246, 0
        %v1332 = vsel %vm322, %v1249, 0
        %v1334 = vsel %vm322, %v1251, 0
        %v1336 = vsel %vm322, %v1254, 0
        %v1338 = vsel %vm322, %v1256, 0
        %v1340 = vsel %vm322, %v1259, 0
        %v1342 = vsel %vm322, %v1261, 0
        %v1344 = vsel %vm322, %v1264, 0
        %v1346 = vsel %vm322, %v1266, 0
        %v1348 = vsel %vm322, %v1269, 0
        %v1350 = vsel %vm322, %v1271, 0
        %v1352 = vsel %vm322, %v1274, 0
        %v1354 = vsel %vm322, %v1276, 0
        %v1356 = vsel %vm322, %v1279, 0
        %v1358 = vsel %vm322, %v1281, 0
        %v1360 = vsel %vm419, %v1293, 0
        %v1362 = vsel %vm419, %v1295, 0
        %1364 = vmatprep.subr.mxu0 %v1362
        %1365 = vmatpush1.msra.mxu0 %v1360
        %1366 = vmatprep.subr.mxu0 0.0
        %1367 = vmatpush1.msra.mxu0 0.0
        %1368 = vmatprep.subr.mxu0 0.0
        %1369 = vmatpush1.msra.mxu0 0.0
        %1370 = vmatprep.subr.mxu0 0.0
        %1371 = vmatpush1.msra.mxu0 0.0
        %1372 = vmatprep.subr.mxu0 0.0
        %1373 = vmatpush1.msra.mxu0 0.0
        %1374 = vmatprep.subr.mxu0 0.0
        %1375 = vmatpush1.msra.mxu0 0.0
        %1376 = vmatprep.subr.mxu0 0.0
        %1377 = vmatpush1.msra.mxu0 0.0
        %1378 = vmatprep.subr.mxu0 0.0
        %1379 = vmatpush1.msra.mxu0 0.0
        %1380 = vmatprep.subr.mxu0 0.0
        %1381 = vmatpush1.msra.mxu0 0.0
        %1382 = vmatprep.subr.mxu0 0.0
        %1383 = vmatpush1.msra.mxu0 0.0
        %1384 = vmatprep.subr.mxu0 0.0
        %1385 = vmatpush1.msra.mxu0 0.0
        %1386 = vmatprep.subr.mxu0 0.0
        %1387 = vmatpush1.msra.mxu0 0.0
        %1388 = vmatprep.subr.mxu0 0.0
        %1389 = vmatpush1.msra.mxu0 0.0
        %1390 = vmatprep.subr.mxu0 0.0
        %1391 = vmatpush1.msra.mxu0 0.0
        %1392 = vmatprep.subr.mxu0 0.0
        %1393 = vmatpush1.msra.mxu0 0.0
        %1394 = vmatprep.subr.mxu0 0.0
        %1395 = vmatpush1.msra.mxu0 0.0
        %1396 = vmatprep.subr.mxu0 0.0
        %1397 = vmatpush1.msra.mxu0 0.0
        %1398 = vmatprep.subr.mxu0 0.0
        %1399 = vmatpush1.msra.mxu0 0.0
        %1400 = vmatprep.subr.mxu0 0.0
        %1401 = vmatpush1.msra.mxu0 0.0
        %1402 = vmatprep.subr.mxu0 0.0
        %1403 = vmatpush1.msra.mxu0 0.0
        %1404 = vmatprep.subr.mxu0 0.0
        %1405 = vmatpush1.msra.mxu0 0.0
        %1406 = vmatprep.subr.mxu0 0.0
        %1407 = vmatpush1.msra.mxu0 0.0
        %1408 = vmatprep.subr.mxu0 0.0
        %1409 = vmatpush1.msra.mxu0 0.0
        %1410 = vmatprep.subr.mxu0 0.0
        %1411 = vmatpush1.msra.mxu0 0.0
        %1412 = vmatprep.subr.mxu0 0.0
        %1413 = vmatpush1.msra.mxu0 0.0
        %1414 = vmatprep.subr.mxu0 0.0
        %1415 = vmatpush1.msra.mxu0 0.0
        %1416 = vmatprep.subr.mxu0 0.0
        %1417 = vmatpush1.msra.mxu0 0.0
        %1418 = vmatprep.subr.mxu0 0.0
        %1419 = vmatpush1.msra.mxu0 0.0
        %1420 = vmatprep.subr.mxu0 0.0
        %1421 = vmatpush1.msra.mxu0 0.0
        %1422 = vmatprep.subr.mxu0 0.0
        %1423 = vmatpush1.msra.mxu0 0.0
        %1424 = vmatprep.subr.mxu0 0.0
        %1425 = vmatpush1.msra.mxu0 0.0
        %1426 = vmatprep.subr.mxu0 0.0
        %1427 = vmatpush1.msra.mxu0 0.0
        %1428 = vmatprep.mubr.f32.mxu0 0.0
        %1429 = vmatmul.mubr.f32.gmra.mrb[0].mxu0 %v1296
        %v1430 = vpop.f32.mrb[0].mxu0
        %v1431 = vadd.f32 0.0, %v1430
        %v1432 = vpop.f32.mrb[0].mxu0
        %v1433 = vadd.f32 0.0, %v1432
        %1434 = vmatprep.mubr.f32.mxu0 0.0
        %1435 = vmatmul.mubr.f32.gmra.mrb[0].mxu0 %v1298
        %v1436 = vpop.f32.mrb[0].mxu0
        %v1437 = vadd.f32 0.0, %v1436
        %v1438 = vpop.f32.mrb[0].mxu0
        %v1439 = vadd.f32 0.0, %v1438
        %1440 = vmatprep.mubr.f32.mxu0 0.0
        %1441 = vmatmul.mubr.f32.gmra.mrb[0].mxu0 %v1300
        %v1442 = vpop.f32.mrb[0].mxu0
        %v1443 = vadd.f32 0.0, %v1442
        %v1444 = vpop.f32.mrb[0].mxu0
        %v1445 = vadd.f32 0.0, %v1444
        %1446 = vmatprep.mubr.f32.mxu0 0.0
        %1447 = vmatmul.mubr.f32.gmra.mrb[0].mxu0 %v1302
        %v1448 = vpop.f32.mrb[0].mxu0
        %v1449 = vadd.f32 0.0, %v1448
        %v1450 = vpop.f32.mrb[0].mxu0
        %v1451 = vadd.f32 0.0, %v1450
        %1452 = vmatprep.mubr.f32.mxu0 0.0
        %1453 = vmatmul.mubr.f32.gmra.mrb[0].mxu0 %v1304
        %v1454 = vpop.f32.mrb[0].mxu0
        %v1455 = vadd.f32 0.0, %v1454
        %v1456 = vpop.f32.mrb[0].mxu0
        %v1457 = vadd.f32 0.0, %v1456
        %1458 = vmatprep.mubr.f32.mxu0 0.0
        %1459 = vmatmul.mubr.f32.gmra.mrb[0].mxu0 %v1306
        %v1460 = vpop.f32.mrb[0].mxu0
        %v1461 = vadd.f32 0.0, %v1460
        %v1462 = vpop.f32.mrb[0].mxu0
        %v1463 = vadd.f32 0.0, %v1462
        %1464 = vmatprep.mubr.f32.mxu0 0.0
        %1465 = vmatmul.mubr.f32.gmra.mrb[0].mxu0 %v1308
        %v1466 = vpop.f32.mrb[0].mxu0
        %v1467 = vadd.f32 0.0, %v1466
        %v1468 = vpop.f32.mrb[0].mxu0
        %v1469 = vadd.f32 0.0, %v1468
        %1470 = vmatprep.mubr.f32.mxu0 0.0
        %1471 = vmatmul.mubr.f32.gmra.mrb[0].mxu0 %v1310
        %v1472 = vpop.f32.mrb[0].mxu0
        %v1473 = vadd.f32 0.0, %v1472
        %v1474 = vpop.f32.mrb[0].mxu0
        %v1475 = vadd.f32 0.0, %v1474
        %1476 = vmatprep.mubr.f32.mxu0 0.0
        %1477 = vmatmul.mubr.f32.gmra.mrb[0].mxu0 %v1312
        %v1478 = vpop.f32.mrb[0].mxu0
        %v1479 = vadd.f32 0.0, %v1478
        %v1480 = vpop.f32.mrb[0].mxu0
        %v1481 = vadd.f32 0.0, %v1480
        %1482 = vmatprep.mubr.f32.mxu0 0.0
        %1483 = vmatmul.mubr.f32.gmra.mrb[0].mxu0 %v1314
        %v1484 = vpop.f32.mrb[0].mxu0
        %v1485 = vadd.f32 0.0, %v1484
        %v1486 = vpop.f32.mrb[0].mxu0
        %v1487 = vadd.f32 0.0, %v1486
        %1488 = vmatprep.mubr.f32.mxu0 0.0
        %1489 = vmatmul.mubr.f32.gmra.mrb[0].mxu0 %v1316
        %v1490 = vpop.f32.mrb[0].mxu0
        %v1491 = vadd.f32 0.0, %v1490
        %v1492 = vpop.f32.mrb[0].mxu0
        %v1493 = vadd.f32 0.0, %v1492
        %1494 = vmatprep.mubr.f32.mxu0 0.0
        %1495 = vmatmul.mubr.f32.gmra.mrb[0].mxu0 %v1318
        %v1496 = vpop.f32.mrb[0].mxu0
        %v1497 = vadd.f32 0.0, %v1496
        %v1498 = vpop.f32.mrb[0].mxu0
        %v1499 = vadd.f32 0.0, %v1498
        %1500 = vmatprep.mubr.f32.mxu0 0.0
        %1501 = vmatmul.mubr.f32.gmra.mrb[0].mxu0 %v1320
        %v1502 = vpop.f32.mrb[0].mxu0
        %v1503 = vadd.f32 0.0, %v1502
        %v1504 = vpop.f32.mrb[0].mxu0
        %v1505 = vadd.f32 0.0, %v1504
        %1506 = vmatprep.mubr.f32.mxu0 0.0
        %1507 = vmatmul.mubr.f32.gmra.mrb[0].mxu0 %v1322
        %v1508 = vpop.f32.mrb[0].mxu0
        %v1509 = vadd.f32 0.0, %v1508
        %v1510 = vpop.f32.mrb[0].mxu0
        %v1511 = vadd.f32 0.0, %v1510
        %1512 = vmatprep.mubr.f32.mxu0 0.0
        %1513 = vmatmul.mubr.f32.gmra.mrb[0].mxu0 %v1324
        %v1514 = vpop.f32.mrb[0].mxu0
        %v1515 = vadd.f32 0.0, %v1514
        %v1516 = vpop.f32.mrb[0].mxu0
        %v1517 = vadd.f32 0.0, %v1516
        %1518 = vmatprep.mubr.f32.mxu0 0.0
        %1519 = vmatmul.mubr.f32.gmra.mrb[0].mxu0 %v1326
        %v1520 = vpop.f32.mrb[0].mxu0
        %v1521 = vadd.f32 0.0, %v1520
        %v1522 = vpop.f32.mrb[0].mxu0
        %v1523 = vadd.f32 0.0, %v1522
        %1524 = vmatprep.mubr.f32.mxu0 0.0
        %1525 = vmatmul.mubr.f32.gmra.mrb[0].mxu0 %v1328
        %v1526 = vpop.f32.mrb[0].mxu0
        %v1527 = vadd.f32 0.0, %v1526
        %v1528 = vpop.f32.mrb[0].mxu0
        %v1529 = vadd.f32 0.0, %v1528
        %1530 = vmatprep.mubr.f32.mxu0 0.0
        %1531 = vmatmul.mubr.f32.gmra.mrb[0].mxu0 %v1330
        %v1532 = vpop.f32.mrb[0].mxu0
        %v1533 = vadd.f32 0.0, %v1532
        %v1534 = vpop.f32.mrb[0].mxu0
        %v1535 = vadd.f32 0.0, %v1534
        %1536 = vmatprep.mubr.f32.mxu0 0.0
        %1537 = vmatmul.mubr.f32.gmra.mrb[0].mxu0 %v1332
        %v1538 = vpop.f32.mrb[0].mxu0
        %v1539 = vadd.f32 0.0, %v1538
        %v1540 = vpop.f32.mrb[0].mxu0
        %v1541 = vadd.f32 0.0, %v1540
        %1542 = vmatprep.mubr.f32.mxu0 0.0
        %1543 = vmatmul.mubr.f32.gmra.mrb[0].mxu0 %v1334
        %v1544 = vpop.f32.mrb[0].mxu0
        %v1545 = vadd.f32 0.0, %v1544
        %v1546 = vpop.f32.mrb[0].mxu0
        %v1547 = vadd.f32 0.0, %v1546
        %1548 = vmatprep.mubr.f32.mxu0 0.0
        %1549 = vmatmul.mubr.f32.gmra.mrb[0].mxu0 %v1336
        %v1550 = vpop.f32.mrb[0].mxu0
        %v1551 = vadd.f32 0.0, %v1550
        %v1552 = vpop.f32.mrb[0].mxu0
        %v1553 = vadd.f32 0.0, %v1552
        %1554 = vmatprep.mubr.f32.mxu0 0.0
        %1555 = vmatmul.mubr.f32.gmra.mrb[0].mxu0 %v1338
        %v1556 = vpop.f32.mrb[0].mxu0
        %v1557 = vadd.f32 0.0, %v1556
        %v1558 = vpop.f32.mrb[0].mxu0
        %v1559 = vadd.f32 0.0, %v1558
        %1560 = vmatprep.mubr.f32.mxu0 0.0
        %1561 = vmatmul.mubr.f32.gmra.mrb[0].mxu0 %v1340
        %v1562 = vpop.f32.mrb[0].mxu0
        %v1563 = vadd.f32 0.0, %v1562
        %v1564 = vpop.f32.mrb[0].mxu0
        %v1565 = vadd.f32 0.0, %v1564
        %1566 = vmatprep.mubr.f32.mxu0 0.0
        %1567 = vmatmul.mubr.f32.gmra.mrb[0].mxu0 %v1342
        %v1568 = vpop.f32.mrb[0].mxu0
        %v1569 = vadd.f32 0.0, %v1568
        %v1570 = vpop.f32.mrb[0].mxu0
        %v1571 = vadd.f32 0.0, %v1570
        %1572 = vmatprep.mubr.f32.mxu0 0.0
        %1573 = vmatmul.mubr.f32.gmra.mrb[0].mxu0 %v1344
        %v1574 = vpop.f32.mrb[0].mxu0
        %v1575 = vadd.f32 0.0, %v1574
        %v1576 = vpop.f32.mrb[0].mxu0
        %v1577 = vadd.f32 0.0, %v1576
        %1578 = vmatprep.mubr.f32.mxu0 0.0
        %1579 = vmatmul.mubr.f32.gmra.mrb[0].mxu0 %v1346
        %v1580 = vpop.f32.mrb[0].mxu0
        %v1581 = vadd.f32 0.0, %v1580
        %v1582 = vpop.f32.mrb[0].mxu0
        %v1583 = vadd.f32 0.0, %v1582
        %1584 = vmatprep.mubr.f32.mxu0 0.0
        %1585 = vmatmul.mubr.f32.gmra.mrb[0].mxu0 %v1348
        %v1586 = vpop.f32.mrb[0].mxu0
        %v1587 = vadd.f32 0.0, %v1586
        %v1588 = vpop.f32.mrb[0].mxu0
        %v1589 = vadd.f32 0.0, %v1588
        %1590 = vmatprep.mubr.f32.mxu0 0.0
        %1591 = vmatmul.mubr.f32.gmra.mrb[0].mxu0 %v1350
        %v1592 = vpop.f32.mrb[0].mxu0
        %v1593 = vadd.f32 0.0, %v1592
        %v1594 = vpop.f32.mrb[0].mxu0
        %v1595 = vadd.f32 0.0, %v1594
        %1596 = vmatprep.mubr.f32.mxu0 0.0
        %1597 = vmatmul.mubr.f32.gmra.mrb[0].mxu0 %v1352
        %v1598 = vpop.f32.mrb[0].mxu0
        %v1599 = vadd.f32 0.0, %v1598
        %v1600 = vpop.f32.mrb[0].mxu0
        %v1601 = vadd.f32 0.0, %v1600
        %1602 = vmatprep.mubr.f32.mxu0 0.0
        %1603 = vmatmul.mubr.f32.gmra.mrb[0].mxu0 %v1354
        %v1604 = vpop.f32.mrb[0].mxu0
        %v1605 = vadd.f32 0.0, %v1604
        %v1606 = vpop.f32.mrb[0].mxu0
        %v1607 = vadd.f32 0.0, %v1606
        %1608 = vmatprep.mubr.f32.mxu0 0.0
        %1609 = vmatmul.mubr.f32.gmra.mrb[0].mxu0 %v1356
        %v1610 = vpop.f32.mrb[0].mxu0
        %v1611 = vadd.f32 0.0, %v1610
        %v1612 = vpop.f32.mrb[0].mxu0
        %v1613 = vadd.f32 0.0, %v1612
        %1614 = vmatprep.mubr.f32.mxu0 0.0
        %1615 = vmatmul.mubr.f32.gmra.mrb[0].mxu0 %v1358
        %v1616 = vpop.f32.mrb[0].mxu0
        %v1617 = vadd.f32 0.0, %v1616
        %v1618 = vpop.f32.mrb[0].mxu0
        %v1619 = vadd.f32 0.0, %v1618
        %1620 = vdwg.mxu0
        %v1621 = vadd.f32 %v1151, %v1433
        %v1622 = vadd.f32 %v1152, %v1439
        %v1623 = vadd.f32 %v1153, %v1445
        %v1624 = vadd.f32 %v1154, %v1451
        %v1625 = vadd.f32 %v1155, %v1457
        %v1626 = vadd.f32 %v1156, %v1463
        %v1627 = vadd.f32 %v1157, %v1469
        %v1628 = vadd.f32 %v1158, %v1475
        %v1629 = vadd.f32 %v1159, %v1481
        %v1630 = vadd.f32 %v1160, %v1487
        %v1631 = vadd.f32 %v1161, %v1493
        %v1632 = vadd.f32 %v1162, %v1499
        %v1633 = vadd.f32 %v1163, %v1505
        %v1634 = vadd.f32 %v1164, %v1511
        %v1635 = vadd.f32 %v1165, %v1517
        %v1636 = vadd.f32 %v1166, %v1523
        %v1637 = vadd.f32 %v1167, %v1529
        %v1638 = vadd.f32 %v1168, %v1535
        %v1639 = vadd.f32 %v1169, %v1541
        %v1640 = vadd.f32 %v1170, %v1547
        %v1641 = vadd.f32 %v1171, %v1553
        %v1642 = vadd.f32 %v1172, %v1559
        %v1643 = vadd.f32 %v1173, %v1565
        %v1644 = vadd.f32 %v1174, %v1571
        %v1645 = vadd.f32 %v1175, %v1577
        %v1646 = vadd.f32 %v1176, %v1583
        %v1647 = vadd.f32 %v1177, %v1589
        %v1648 = vadd.f32 %v1178, %v1595
        %v1649 = vadd.f32 %v1179, %v1601
        %v1650 = vadd.f32 %v1180, %v1607
        %v1651 = vadd.f32 %v1181, %v1613
        %v1652 = vadd.f32 %v1182, %v1619
        %s1653 = scalar_lea.vmem [#allocation2], 48
        %v1654 = vld [vmem:[%s1653] sm:$0xff]
        %v1655 = vld [vmem:[%s1653 + $0x8] sm:$0xf]
        %v1658 = vcombine.high %v1654, %v1654
        %v1659 = vsel %vm322, %v1284, 0
        %v1661 = vsel %vm322, %v1286, 0
        %v1663 = vsel %vm419, %v1654, 0
        %v1665 = vsel %vm419, %v1658, 0
        %v1667 = vsel %vm419, %v1655, 0
        %1669 = vmatprep.subr.mxu0 %v1665
        %1670 = vmatpush1.msra.mxu0 %v1663
        %1671 = vmatprep.subr.mxu0 0.0
        %1672 = vmatpush1.msra.mxu0 0.0
        %1673 = vmatprep.subr.mxu0 0.0
        %1674 = vmatpush1.msra.mxu0 0.0
        %1675 = vmatprep.subr.mxu0 0.0
        %1676 = vmatpush1.msra.mxu0 0.0
        %1677 = vmatprep.subr.mxu0 0.0
        %1678 = vmatpush1.msra.mxu0 0.0
        %1679 = vmatprep.subr.mxu0 0.0
        %1680 = vmatpush1.msra.mxu0 0.0
        %1681 = vmatprep.subr.mxu0 0.0
        %1682 = vmatpush1.msra.mxu0 0.0
        %1683 = vmatprep.subr.mxu0 0.0
        %1684 = vmatpush1.msra.mxu0 0.0
        %1685 = vmatprep.subr.mxu0 0.0
        %1686 = vmatpush1.msra.mxu0 0.0
        %1687 = vmatprep.subr.mxu0 0.0
        %1688 = vmatpush1.msra.mxu0 0.0
        %1689 = vmatprep.subr.mxu0 0.0
        %1690 = vmatpush1.msra.mxu0 0.0
        %1691 = vmatprep.subr.mxu0 0.0
        %1692 = vmatpush1.msra.mxu0 0.0
        %1693 = vmatprep.subr.mxu0 0.0
        %1694 = vmatpush1.msra.mxu0 0.0
        %1695 = vmatprep.subr.mxu0 0.0
        %1696 = vmatpush1.msra.mxu0 0.0
        %1697 = vmatprep.subr.mxu0 0.0
        %1698 = vmatpush1.msra.mxu0 0.0
        %1699 = vmatprep.subr.mxu0 0.0
        %1700 = vmatpush1.msra.mxu0 0.0
        %1701 = vmatprep.subr.mxu0 0.0
        %1702 = vmatpush1.msra.mxu0 0.0
        %1703 = vmatprep.subr.mxu0 0.0
        %1704 = vmatpush1.msra.mxu0 0.0
        %1705 = vmatprep.subr.mxu0 0.0
        %1706 = vmatpush1.msra.mxu0 0.0
        %1707 = vmatprep.subr.mxu0 0.0
        %1708 = vmatpush1.msra.mxu0 0.0
        %1709 = vmatprep.subr.mxu0 0.0
        %1710 = vmatpush1.msra.mxu0 0.0
        %1711 = vmatprep.subr.mxu0 0.0
        %1712 = vmatpush1.msra.mxu0 0.0
        %1713 = vmatprep.subr.mxu0 0.0
        %1714 = vmatpush1.msra.mxu0 0.0
        %1715 = vmatprep.subr.mxu0 0.0
        %1716 = vmatpush1.msra.mxu0 0.0
        %1717 = vmatprep.subr.mxu0 0.0
        %1718 = vmatpush1.msra.mxu0 0.0
        %1719 = vmatprep.subr.mxu0 0.0
        %1720 = vmatpush1.msra.mxu0 0.0
        %1721 = vmatprep.subr.mxu0 0.0
        %1722 = vmatpush1.msra.mxu0 0.0
        %1723 = vmatprep.subr.mxu0 0.0
        %1724 = vmatpush1.msra.mxu0 0.0
        %1725 = vmatprep.subr.mxu0 0.0
        %1726 = vmatpush1.msra.mxu0 0.0
        %1727 = vmatprep.subr.mxu0 0.0
        %1728 = vmatpush1.msra.mxu0 0.0
        %1729 = vmatprep.subr.mxu0 0.0
        %1730 = vmatpush1.msra.mxu0 0.0
        %1731 = vmatprep.subr.mxu0 0.0
        %1732 = vmatpush1.msra.mxu0 0.0
        %1733 = vmatprep.mubr.f32.mxu0 0.0
        %1734 = vmatmul.mubr.f32.gmra.mrb[0].mxu0 %v1300
        %v1735 = vpop.f32.mrb[0].mxu0
        %v1736 = vadd.f32 0.0, %v1735
        %v1737 = vpop.f32.mrb[0].mxu0
        %v1738 = vadd.f32 0.0, %v1737
        %1739 = vmatprep.mubr.f32.mxu0 0.0
        %1740 = vmatmul.mubr.f32.gmra.mrb[0].mxu0 %v1302
        %v1741 = vpop.f32.mrb[0].mxu0
        %v1742 = vadd.f32 0.0, %v1741
        %v1743 = vpop.f32.mrb[0].mxu0
        %v1744 = vadd.f32 0.0, %v1743
        %1745 = vmatprep.mubr.f32.mxu0 0.0
        %1746 = vmatmul.mubr.f32.gmra.mrb[0].mxu0 %v1304
        %v1747 = vpop.f32.mrb[0].mxu0
        %v1748 = vadd.f32 0.0, %v1747
        %v1749 = vpop.f32.mrb[0].mxu0
        %v1750 = vadd.f32 0.0, %v1749
        %1751 = vmatprep.mubr.f32.mxu0 0.0
        %1752 = vmatmul.mubr.f32.gmra.mrb[0].mxu0 %v1306
        %v1753 = vpop.f32.mrb[0].mxu0
        %v1754 = vadd.f32 0.0, %v1753
        %v1755 = vpop.f32.mrb[0].mxu0
        %v1756 = vadd.f32 0.0, %v1755
        %1757 = vmatprep.mubr.f32.mxu0 0.0
        %1758 = vmatmul.mubr.f32.gmra.mrb[0].mxu0 %v1308
        %v1759 = vpop.f32.mrb[0].mxu0
        %v1760 = vadd.f32 0.0, %v1759
        %v1761 = vpop.f32.mrb[0].mxu0
        %v1762 = vadd.f32 0.0, %v1761
        %1763 = vmatprep.mubr.f32.mxu0 0.0
        %1764 = vmatmul.mubr.f32.gmra.mrb[0].mxu0 %v1310
        %v1765 = vpop.f32.mrb[0].mxu0
        %v1766 = vadd.f32 0.0, %v1765
        %v1767 = vpop.f32.mrb[0].mxu0
        %v1768 = vadd.f32 0.0, %v1767
        %1769 = vmatprep.mubr.f32.mxu0 0.0
        %1770 = vmatmul.mubr.f32.gmra.mrb[0].mxu0 %v1312
        %v1771 = vpop.f32.mrb[0].mxu0
        %v1772 = vadd.f32 0.0, %v1771
        %v1773 = vpop.f32.mrb[0].mxu0
        %v1774 = vadd.f32 0.0, %v1773
        %1775 = vmatprep.mubr.f32.mxu0 0.0
        %1776 = vmatmul.mubr.f32.gmra.mrb[0].mxu0 %v1314
        %v1777 = vpop.f32.mrb[0].mxu0
        %v1778 = vadd.f32 0.0, %v1777
        %v1779 = vpop.f32.mrb[0].mxu0
        %v1780 = vadd.f32 0.0, %v1779
        %1781 = vmatprep.mubr.f32.mxu0 0.0
        %1782 = vmatmul.mubr.f32.gmra.mrb[0].mxu0 %v1316
        %v1783 = vpop.f32.mrb[0].mxu0
        %v1784 = vadd.f32 0.0, %v1783
        %v1785 = vpop.f32.mrb[0].mxu0
        %v1786 = vadd.f32 0.0, %v1785
        %1787 = vmatprep.mubr.f32.mxu0 0.0
        %1788 = vmatmul.mubr.f32.gmra.mrb[0].mxu0 %v1318
        %v1789 = vpop.f32.mrb[0].mxu0
        %v1790 = vadd.f32 0.0, %v1789
        %v1791 = vpop.f32.mrb[0].mxu0
        %v1792 = vadd.f32 0.0, %v1791
        %1793 = vmatprep.mubr.f32.mxu0 0.0
        %1794 = vmatmul.mubr.f32.gmra.mrb[0].mxu0 %v1320
        %v1795 = vpop.f32.mrb[0].mxu0
        %v1796 = vadd.f32 0.0, %v1795
        %v1797 = vpop.f32.mrb[0].mxu0
        %v1798 = vadd.f32 0.0, %v1797
        %1799 = vmatprep.mubr.f32.mxu0 0.0
        %1800 = vmatmul.mubr.f32.gmra.mrb[0].mxu0 %v1322
        %v1801 = vpop.f32.mrb[0].mxu0
        %v1802 = vadd.f32 0.0, %v1801
        %v1803 = vpop.f32.mrb[0].mxu0
        %v1804 = vadd.f32 0.0, %v1803
        %1805 = vmatprep.mubr.f32.mxu0 0.0
        %1806 = vmatmul.mubr.f32.gmra.mrb[0].mxu0 %v1324
        %v1807 = vpop.f32.mrb[0].mxu0
        %v1808 = vadd.f32 0.0, %v1807
        %v1809 = vpop.f32.mrb[0].mxu0
        %v1810 = vadd.f32 0.0, %v1809
        %1811 = vmatprep.mubr.f32.mxu0 0.0
        %1812 = vmatmul.mubr.f32.gmra.mrb[0].mxu0 %v1326
        %v1813 = vpop.f32.mrb[0].mxu0
        %v1814 = vadd.f32 0.0, %v1813
        %v1815 = vpop.f32.mrb[0].mxu0
        %v1816 = vadd.f32 0.0, %v1815
        %1817 = vmatprep.mubr.f32.mxu0 0.0
        %1818 = vmatmul.mubr.f32.gmra.mrb[0].mxu0 %v1328
        %v1819 = vpop.f32.mrb[0].mxu0
        %v1820 = vadd.f32 0.0, %v1819
        %v1821 = vpop.f32.mrb[0].mxu0
        %v1822 = vadd.f32 0.0, %v1821
        %1823 = vmatprep.mubr.f32.mxu0 0.0
        %1824 = vmatmul.mubr.f32.gmra.mrb[0].mxu0 %v1330
        %v1825 = vpop.f32.mrb[0].mxu0
        %v1826 = vadd.f32 0.0, %v1825
        %v1827 = vpop.f32.mrb[0].mxu0
        %v1828 = vadd.f32 0.0, %v1827
        %1829 = vmatprep.mubr.f32.mxu0 0.0
        %1830 = vmatmul.mubr.f32.gmra.mrb[0].mxu0 %v1332
        %v1831 = vpop.f32.mrb[0].mxu0
        %v1832 = vadd.f32 0.0, %v1831
        %v1833 = vpop.f32.mrb[0].mxu0
        %v1834 = vadd.f32 0.0, %v1833
        %1835 = vmatprep.mubr.f32.mxu0 0.0
        %1836 = vmatmul.mubr.f32.gmra.mrb[0].mxu0 %v1334
        %v1837 = vpop.f32.mrb[0].mxu0
        %v1838 = vadd.f32 0.0, %v1837
        %v1839 = vpop.f32.mrb[0].mxu0
        %v1840 = vadd.f32 0.0, %v1839
        %1841 = vmatprep.mubr.f32.mxu0 0.0
        %1842 = vmatmul.mubr.f32.gmra.mrb[0].mxu0 %v1336
        %v1843 = vpop.f32.mrb[0].mxu0
        %v1844 = vadd.f32 0.0, %v1843
        %v1845 = vpop.f32.mrb[0].mxu0
        %v1846 = vadd.f32 0.0, %v1845
        %1847 = vmatprep.mubr.f32.mxu0 0.0
        %1848 = vmatmul.mubr.f32.gmra.mrb[0].mxu0 %v1338
        %v1849 = vpop.f32.mrb[0].mxu0
        %v1850 = vadd.f32 0.0, %v1849
        %v1851 = vpop.f32.mrb[0].mxu0
        %v1852 = vadd.f32 0.0, %v1851
        %1853 = vmatprep.mubr.f32.mxu0 0.0
        %1854 = vmatmul.mubr.f32.gmra.mrb[0].mxu0 %v1340
        %v1855 = vpop.f32.mrb[0].mxu0
        %v1856 = vadd.f32 0.0, %v1855
        %v1857 = vpop.f32.mrb[0].mxu0
        %v1858 = vadd.f32 0.0, %v1857
        %1859 = vmatprep.mubr.f32.mxu0 0.0
        %1860 = vmatmul.mubr.f32.gmra.mrb[0].mxu0 %v1342
        %v1861 = vpop.f32.mrb[0].mxu0
        %v1862 = vadd.f32 0.0, %v1861
        %v1863 = vpop.f32.mrb[0].mxu0
        %v1864 = vadd.f32 0.0, %v1863
        %1865 = vmatprep.mubr.f32.mxu0 0.0
        %1866 = vmatmul.mubr.f32.gmra.mrb[0].mxu0 %v1344
        %v1867 = vpop.f32.mrb[0].mxu0
        %v1868 = vadd.f32 0.0, %v1867
        %v1869 = vpop.f32.mrb[0].mxu0
        %v1870 = vadd.f32 0.0, %v1869
        %1871 = vmatprep.mubr.f32.mxu0 0.0
        %1872 = vmatmul.mubr.f32.gmra.mrb[0].mxu0 %v1346
        %v1873 = vpop.f32.mrb[0].mxu0
        %v1874 = vadd.f32 0.0, %v1873
        %v1875 = vpop.f32.mrb[0].mxu0
        %v1876 = vadd.f32 0.0, %v1875
        %1877 = vmatprep.mubr.f32.mxu0 0.0
        %1878 = vmatmul.mubr.f32.gmra.mrb[0].mxu0 %v1348
        %v1879 = vpop.f32.mrb[0].mxu0
        %v1880 = vadd.f32 0.0, %v1879
        %v1881 = vpop.f32.mrb[0].mxu0
        %v1882 = vadd.f32 0.0, %v1881
        %1883 = vmatprep.mubr.f32.mxu0 0.0
        %1884 = vmatmul.mubr.f32.gmra.mrb[0].mxu0 %v1350
        %v1885 = vpop.f32.mrb[0].mxu0
        %v1886 = vadd.f32 0.0, %v1885
        %v1887 = vpop.f32.mrb[0].mxu0
        %v1888 = vadd.f32 0.0, %v1887
        %1889 = vmatprep.mubr.f32.mxu0 0.0
        %1890 = vmatmul.mubr.f32.gmra.mrb[0].mxu0 %v1352
        %v1891 = vpop.f32.mrb[0].mxu0
        %v1892 = vadd.f32 0.0, %v1891
        %v1893 = vpop.f32.mrb[0].mxu0
        %v1894 = vadd.f32 0.0, %v1893
        %1895 = vmatprep.mubr.f32.mxu0 0.0
        %1896 = vmatmul.mubr.f32.gmra.mrb[0].mxu0 %v1354
        %v1897 = vpop.f32.mrb[0].mxu0
        %v1898 = vadd.f32 0.0, %v1897
        %v1899 = vpop.f32.mrb[0].mxu0
        %v1900 = vadd.f32 0.0, %v1899
        %1901 = vmatprep.mubr.f32.mxu0 0.0
        %1902 = vmatmul.mubr.f32.gmra.mrb[0].mxu0 %v1356
        %v1903 = vpop.f32.mrb[0].mxu0
        %v1904 = vadd.f32 0.0, %v1903
        %v1905 = vpop.f32.mrb[0].mxu0
        %v1906 = vadd.f32 0.0, %v1905
        %1907 = vmatprep.mubr.f32.mxu0 0.0
        %1908 = vmatmul.mubr.f32.gmra.mrb[0].mxu0 %v1358
        %v1909 = vpop.f32.mrb[0].mxu0
        %v1910 = vadd.f32 0.0, %v1909
        %v1911 = vpop.f32.mrb[0].mxu0
        %v1912 = vadd.f32 0.0, %v1911
        %1913 = vmatprep.mubr.f32.mxu0 0.0
        %1914 = vmatmul.mubr.f32.gmra.mrb[0].mxu0 %v1659
        %v1915 = vpop.f32.mrb[0].mxu0
        %v1916 = vadd.f32 0.0, %v1915
        %v1917 = vpop.f32.mrb[0].mxu0
        %v1918 = vadd.f32 0.0, %v1917
        %1919 = vmatprep.mubr.f32.mxu0 0.0
        %1920 = vmatmul.mubr.f32.gmra.mrb[0].mxu0 %v1661
        %v1921 = vpop.f32.mrb[0].mxu0
        %v1922 = vadd.f32 0.0, %v1921
        %v1923 = vpop.f32.mrb[0].mxu0
        %v1924 = vadd.f32 0.0, %v1923
        %1925 = vdwg.mxu0
        %1926 = vmatprep.subr.mxu0 0.0
        %1927 = vmatpush1.msra.mxu0 %v1667
        %1928 = vmatprep.subr.mxu0 0.0
        %1929 = vmatpush1.msra.mxu0 0.0
        %1930 = vmatprep.subr.mxu0 0.0
        %1931 = vmatpush1.msra.mxu0 0.0
        %1932 = vmatprep.subr.mxu0 0.0
        %1933 = vmatpush1.msra.mxu0 0.0
        %1934 = vmatprep.subr.mxu0 0.0
        %1935 = vmatpush1.msra.mxu0 0.0
        %1936 = vmatprep.subr.mxu0 0.0
        %1937 = vmatpush1.msra.mxu0 0.0
        %1938 = vmatprep.subr.mxu0 0.0
        %1939 = vmatpush1.msra.mxu0 0.0
        %1940 = vmatprep.subr.mxu0 0.0
        %1941 = vmatpush1.msra.mxu0 0.0
        %1942 = vmatprep.subr.mxu0 0.0
        %1943 = vmatpush1.msra.mxu0 0.0
        %1944 = vmatprep.subr.mxu0 0.0
        %1945 = vmatpush1.msra.mxu0 0.0
        %1946 = vmatprep.subr.mxu0 0.0
        %1947 = vmatpush1.msra.mxu0 0.0
        %1948 = vmatprep.subr.mxu0 0.0
        %1949 = vmatpush1.msra.mxu0 0.0
        %1950 = vmatprep.subr.mxu0 0.0
        %1951 = vmatpush1.msra.mxu0 0.0
        %1952 = vmatprep.subr.mxu0 0.0
        %1953 = vmatpush1.msra.mxu0 0.0
        %1954 = vmatprep.subr.mxu0 0.0
        %1955 = vmatpush1.msra.mxu0 0.0
        %1956 = vmatprep.subr.mxu0 0.0
        %1957 = vmatpush1.msra.mxu0 0.0
        %1958 = vmatprep.subr.mxu0 0.0
        %1959 = vmatpush1.msra.mxu0 0.0
        %1960 = vmatprep.subr.mxu0 0.0
        %1961 = vmatpush1.msra.mxu0 0.0
        %1962 = vmatprep.subr.mxu0 0.0
        %1963 = vmatpush1.msra.mxu0 0.0
        %1964 = vmatprep.subr.mxu0 0.0
        %1965 = vmatpush1.msra.mxu0 0.0
        %1966 = vmatprep.subr.mxu0 0.0
        %1967 = vmatpush1.msra.mxu0 0.0
        %1968 = vmatprep.subr.mxu0 0.0
        %1969 = vmatpush1.msra.mxu0 0.0
        %1970 = vmatprep.subr.mxu0 0.0
        %1971 = vmatpush1.msra.mxu0 0.0
        %1972 = vmatprep.subr.mxu0 0.0
        %1973 = vmatpush1.msra.mxu0 0.0
        %1974 = vmatprep.subr.mxu0 0.0
        %1975 = vmatpush1.msra.mxu0 0.0
        %1976 = vmatprep.subr.mxu0 0.0
        %1977 = vmatpush1.msra.mxu0 0.0
        %1978 = vmatprep.subr.mxu0 0.0
        %1979 = vmatpush1.msra.mxu0 0.0
        %1980 = vmatprep.subr.mxu0 0.0
        %1981 = vmatpush1.msra.mxu0 0.0
        %1982 = vmatprep.subr.mxu0 0.0
        %1983 = vmatpush1.msra.mxu0 0.0
        %1984 = vmatprep.subr.mxu0 0.0
        %1985 = vmatpush1.msra.mxu0 0.0
        %1986 = vmatprep.subr.mxu0 0.0
        %1987 = vmatpush1.msra.mxu0 0.0
        %1988 = vmatprep.subr.mxu0 0.0
        %1989 = vmatpush1.msra.mxu0 0.0
        %1990 = vmatprep.mubr.f32.mxu0 0.0
        %1991 = vmatmul.mubr.f32.gmra.mrb[0].mxu0 %v1300
        %v1992 = vpop.f32.mrb[0].mxu0
        %v1993 = vadd.f32 0.0, %v1992
        %v1994 = vpop.f32.mrb[0].mxu0
        %1995 = vmatprep.mubr.f32.mxu0 0.0
        %1996 = vmatmul.mubr.f32.gmra.mrb[0].mxu0 %v1302
        %v1997 = vpop.f32.mrb[0].mxu0
        %v1998 = vadd.f32 0.0, %v1997
        %v1999 = vpop.f32.mrb[0].mxu0
        %2000 = vmatprep.mubr.f32.mxu0 0.0
        %2001 = vmatmul.mubr.f32.gmra.mrb[0].mxu0 %v1304
        %v2002 = vpop.f32.mrb[0].mxu0
        %v2003 = vadd.f32 0.0, %v2002
        %v2004 = vpop.f32.mrb[0].mxu0
        %2005 = vmatprep.mubr.f32.mxu0 0.0
        %2006 = vmatmul.mubr.f32.gmra.mrb[0].mxu0 %v1306
        %v2007 = vpop.f32.mrb[0].mxu0
        %v2008 = vadd.f32 0.0, %v2007
        %v2009 = vpop.f32.mrb[0].mxu0
        %2010 = vmatprep.mubr.f32.mxu0 0.0
        %2011 = vmatmul.mubr.f32.gmra.mrb[0].mxu0 %v1308
        %v2012 = vpop.f32.mrb[0].mxu0
        %v2013 = vadd.f32 0.0, %v2012
        %v2014 = vpop.f32.mrb[0].mxu0
        %2015 = vmatprep.mubr.f32.mxu0 0.0
        %2016 = vmatmul.mubr.f32.gmra.mrb[0].mxu0 %v1310
        %v2017 = vpop.f32.mrb[0].mxu0
        %v2018 = vadd.f32 0.0, %v2017
        %v2019 = vpop.f32.mrb[0].mxu0
        %2020 = vmatprep.mubr.f32.mxu0 0.0
        %2021 = vmatmul.mubr.f32.gmra.mrb[0].mxu0 %v1312
        %v2022 = vpop.f32.mrb[0].mxu0
        %v2023 = vadd.f32 0.0, %v2022
        %v2024 = vpop.f32.mrb[0].mxu0
        %2025 = vmatprep.mubr.f32.mxu0 0.0
        %2026 = vmatmul.mubr.f32.gmra.mrb[0].mxu0 %v1314
        %v2027 = vpop.f32.mrb[0].mxu0
        %v2028 = vadd.f32 0.0, %v2027
        %v2029 = vpop.f32.mrb[0].mxu0
        %2030 = vmatprep.mubr.f32.mxu0 0.0
        %2031 = vmatmul.mubr.f32.gmra.mrb[0].mxu0 %v1316
        %v2032 = vpop.f32.mrb[0].mxu0
        %v2033 = vadd.f32 0.0, %v2032
        %v2034 = vpop.f32.mrb[0].mxu0
        %2035 = vmatprep.mubr.f32.mxu0 0.0
        %2036 = vmatmul.mubr.f32.gmra.mrb[0].mxu0 %v1318
        %v2037 = vpop.f32.mrb[0].mxu0
        %v2038 = vadd.f32 0.0, %v2037
        %v2039 = vpop.f32.mrb[0].mxu0
        %2040 = vmatprep.mubr.f32.mxu0 0.0
        %2041 = vmatmul.mubr.f32.gmra.mrb[0].mxu0 %v1320
        %v2042 = vpop.f32.mrb[0].mxu0
        %v2043 = vadd.f32 0.0, %v2042
        %v2044 = vpop.f32.mrb[0].mxu0
        %2045 = vmatprep.mubr.f32.mxu0 0.0
        %2046 = vmatmul.mubr.f32.gmra.mrb[0].mxu0 %v1322
        %v2047 = vpop.f32.mrb[0].mxu0
        %v2048 = vadd.f32 0.0, %v2047
        %v2049 = vpop.f32.mrb[0].mxu0
        %2050 = vmatprep.mubr.f32.mxu0 0.0
        %2051 = vmatmul.mubr.f32.gmra.mrb[0].mxu0 %v1324
        %v2052 = vpop.f32.mrb[0].mxu0
        %v2053 = vadd.f32 0.0, %v2052
        %v2054 = vpop.f32.mrb[0].mxu0
        %2055 = vmatprep.mubr.f32.mxu0 0.0
        %2056 = vmatmul.mubr.f32.gmra.mrb[0].mxu0 %v1326
        %v2057 = vpop.f32.mrb[0].mxu0
        %v2058 = vadd.f32 0.0, %v2057
        %v2059 = vpop.f32.mrb[0].mxu0
        %2060 = vmatprep.mubr.f32.mxu0 0.0
        %2061 = vmatmul.mubr.f32.gmra.mrb[0].mxu0 %v1328
        %v2062 = vpop.f32.mrb[0].mxu0
        %v2063 = vadd.f32 0.0, %v2062
        %v2064 = vpop.f32.mrb[0].mxu0
        %2065 = vmatprep.mubr.f32.mxu0 0.0
        %2066 = vmatmul.mubr.f32.gmra.mrb[0].mxu0 %v1330
        %v2067 = vpop.f32.mrb[0].mxu0
        %v2068 = vadd.f32 0.0, %v2067
        %v2069 = vpop.f32.mrb[0].mxu0
        %2070 = vmatprep.mubr.f32.mxu0 0.0
        %2071 = vmatmul.mubr.f32.gmra.mrb[0].mxu0 %v1332
        %v2072 = vpop.f32.mrb[0].mxu0
        %v2073 = vadd.f32 0.0, %v2072
        %v2074 = vpop.f32.mrb[0].mxu0
        %2075 = vmatprep.mubr.f32.mxu0 0.0
        %2076 = vmatmul.mubr.f32.gmra.mrb[0].mxu0 %v1334
        %v2077 = vpop.f32.mrb[0].mxu0
        %v2078 = vadd.f32 0.0, %v2077
        %v2079 = vpop.f32.mrb[0].mxu0
        %2080 = vmatprep.mubr.f32.mxu0 0.0
        %2081 = vmatmul.mubr.f32.gmra.mrb[0].mxu0 %v1336
        %v2082 = vpop.f32.mrb[0].mxu0
        %v2083 = vadd.f32 0.0, %v2082
        %v2084 = vpop.f32.mrb[0].mxu0
        %2085 = vmatprep.mubr.f32.mxu0 0.0
        %2086 = vmatmul.mubr.f32.gmra.mrb[0].mxu0 %v1338
        %v2087 = vpop.f32.mrb[0].mxu0
        %v2088 = vadd.f32 0.0, %v2087
        %v2089 = vpop.f32.mrb[0].mxu0
        %2090 = vmatprep.mubr.f32.mxu0 0.0
        %2091 = vmatmul.mubr.f32.gmra.mrb[0].mxu0 %v1340
        %v2092 = vpop.f32.mrb[0].mxu0
        %v2093 = vadd.f32 0.0, %v2092
        %v2094 = vpop.f32.mrb[0].mxu0
        %2095 = vmatprep.mubr.f32.mxu0 0.0
        %2096 = vmatmul.mubr.f32.gmra.mrb[0].mxu0 %v1342
        %v2097 = vpop.f32.mrb[0].mxu0
        %v2098 = vadd.f32 0.0, %v2097
        %v2099 = vpop.f32.mrb[0].mxu0
        %2100 = vmatprep.mubr.f32.mxu0 0.0
        %2101 = vmatmul.mubr.f32.gmra.mrb[0].mxu0 %v1344
        %v2102 = vpop.f32.mrb[0].mxu0
        %v2103 = vadd.f32 0.0, %v2102
        %v2104 = vpop.f32.mrb[0].mxu0
        %2105 = vmatprep.mubr.f32.mxu0 0.0
        %2106 = vmatmul.mubr.f32.gmra.mrb[0].mxu0 %v1346
        %v2107 = vpop.f32.mrb[0].mxu0
        %v2108 = vadd.f32 0.0, %v2107
        %v2109 = vpop.f32.mrb[0].mxu0
        %2110 = vmatprep.mubr.f32.mxu0 0.0
        %2111 = vmatmul.mubr.f32.gmra.mrb[0].mxu0 %v1348
        %v2112 = vpop.f32.mrb[0].mxu0
        %v2113 = vadd.f32 0.0, %v2112
        %v2114 = vpop.f32.mrb[0].mxu0
        %2115 = vmatprep.mubr.f32.mxu0 0.0
        %2116 = vmatmul.mubr.f32.gmra.mrb[0].mxu0 %v1350
        %v2117 = vpop.f32.mrb[0].mxu0
        %v2118 = vadd.f32 0.0, %v2117
        %v2119 = vpop.f32.mrb[0].mxu0
        %2120 = vmatprep.mubr.f32.mxu0 0.0
        %2121 = vmatmul.mubr.f32.gmra.mrb[0].mxu0 %v1352
        %v2122 = vpop.f32.mrb[0].mxu0
        %v2123 = vadd.f32 0.0, %v2122
        %v2124 = vpop.f32.mrb[0].mxu0
        %2125 = vmatprep.mubr.f32.mxu0 0.0
        %2126 = vmatmul.mubr.f32.gmra.mrb[0].mxu0 %v1354
        %v2127 = vpop.f32.mrb[0].mxu0
        %v2128 = vadd.f32 0.0, %v2127
        %v2129 = vpop.f32.mrb[0].mxu0
        %2130 = vmatprep.mubr.f32.mxu0 0.0
        %2131 = vmatmul.mubr.f32.gmra.mrb[0].mxu0 %v1356
        %v2132 = vpop.f32.mrb[0].mxu0
        %v2133 = vadd.f32 0.0, %v2132
        %v2134 = vpop.f32.mrb[0].mxu0
        %2135 = vmatprep.mubr.f32.mxu0 0.0
        %2136 = vmatmul.mubr.f32.gmra.mrb[0].mxu0 %v1358
        %v2137 = vpop.f32.mrb[0].mxu0
        %v2138 = vadd.f32 0.0, %v2137
        %v2139 = vpop.f32.mrb[0].mxu0
        %2140 = vmatprep.mubr.f32.mxu0 0.0
        %2141 = vmatmul.mubr.f32.gmra.mrb[0].mxu0 %v1659
        %v2142 = vpop.f32.mrb[0].mxu0
        %v2143 = vadd.f32 0.0, %v2142
        %v2144 = vpop.f32.mrb[0].mxu0
        %2145 = vmatprep.mubr.f32.mxu0 0.0
        %2146 = vmatmul.mubr.f32.gmra.mrb[0].mxu0 %v1661
        %v2147 = vpop.f32.mrb[0].mxu0
        %v2148 = vadd.f32 0.0, %v2147
        %v2149 = vpop.f32.mrb[0].mxu0
        %2150 = vdwg.mxu0
        %v2151 = vadd.f32 %v1431, %v1736
        %v2152 = vadd.f32 %v1437, %v1742
        %v2153 = vadd.f32 %v1443, %v1748
        %v2154 = vadd.f32 %v1449, %v1754
        %v2155 = vadd.f32 %v1455, %v1760
        %v2156 = vadd.f32 %v1461, %v1766
        %v2157 = vadd.f32 %v1467, %v1772
        %v2158 = vadd.f32 %v1473, %v1778
        %v2159 = vadd.f32 %v1479, %v1784
        %v2160 = vadd.f32 %v1485, %v1790
        %v2161 = vadd.f32 %v1491, %v1796
        %v2162 = vadd.f32 %v1497, %v1802
        %v2163 = vadd.f32 %v1503, %v1808
        %v2164 = vadd.f32 %v1509, %v1814
        %v2165 = vadd.f32 %v1515, %v1820
        %v2166 = vadd.f32 %v1521, %v1826
        %v2167 = vadd.f32 %v1527, %v1832
        %v2168 = vadd.f32 %v1533, %v1838
        %v2169 = vadd.f32 %v1539, %v1844
        %v2170 = vadd.f32 %v1545, %v1850
        %v2171 = vadd.f32 %v1551, %v1856
        %v2172 = vadd.f32 %v1557, %v1862
        %v2173 = vadd.f32 %v1563, %v1868
        %v2174 = vadd.f32 %v1569, %v1874
        %v2175 = vadd.f32 %v1575, %v1880
        %v2176 = vadd.f32 %v1581, %v1886
        %v2177 = vadd.f32 %v1587, %v1892
        %v2178 = vadd.f32 %v1593, %v1898
        %v2179 = vadd.f32 %v1599, %v1904
        %v2180 = vadd.f32 %v1605, %v1910
        %v2181 = vadd.f32 %v1611, %v1916
        %v2182 = vadd.f32 %v1617, %v1922
        %v2183 = vadd.f32 %v1621, %v1738
        %v2184 = vadd.f32 %v1622, %v1744
        %v2185 = vadd.f32 %v1623, %v1750
        %v2186 = vadd.f32 %v1624, %v1756
        %v2187 = vadd.f32 %v1625, %v1762
        %v2188 = vadd.f32 %v1626, %v1768
        %v2189 = vadd.f32 %v1627, %v1774
        %v2190 = vadd.f32 %v1628, %v1780
        %v2191 = vadd.f32 %v1629, %v1786
        %v2192 = vadd.f32 %v1630, %v1792
        %v2193 = vadd.f32 %v1631, %v1798
        %v2194 = vadd.f32 %v1632, %v1804
        %v2195 = vadd.f32 %v1633, %v1810
        %v2196 = vadd.f32 %v1634, %v1816
        %v2197 = vadd.f32 %v1635, %v1822
        %v2198 = vadd.f32 %v1636, %v1828
        %v2199 = vadd.f32 %v1637, %v1834
        %v2200 = vadd.f32 %v1638, %v1840
        %v2201 = vadd.f32 %v1639, %v1846
        %v2202 = vadd.f32 %v1640, %v1852
        %v2203 = vadd.f32 %v1641, %v1858
        %v2204 = vadd.f32 %v1642, %v1864
        %v2205 = vadd.f32 %v1643, %v1870
        %v2206 = vadd.f32 %v1644, %v1876
        %v2207 = vadd.f32 %v1645, %v1882
        %v2208 = vadd.f32 %v1646, %v1888
        %v2209 = vadd.f32 %v1647, %v1894
        %v2210 = vadd.f32 %v1648, %v1900
        %v2211 = vadd.f32 %v1649, %v1906
        %v2212 = vadd.f32 %v1650, %v1912
        %v2213 = vadd.f32 %v1651, %v1918
        %v2214 = vadd.f32 %v1652, %v1924
        %v2215 = vadd.f32 %v493, %v1993
        %v2216 = vadd.f32 %v499, %v1998
        %v2217 = vadd.f32 %v505, %v2003
        %v2218 = vadd.f32 %v511, %v2008
        %v2219 = vadd.f32 %v517, %v2013
        %v2220 = vadd.f32 %v523, %v2018
        %v2221 = vadd.f32 %v529, %v2023
        %v2222 = vadd.f32 %v535, %v2028
        %v2223 = vadd.f32 %v541, %v2033
        %v2224 = vadd.f32 %v547, %v2038
        %v2225 = vadd.f32 %v553, %v2043
        %v2226 = vadd.f32 %v559, %v2048
        %v2227 = vadd.f32 %v565, %v2053
        %v2228 = vadd.f32 %v571, %v2058
        %v2229 = vadd.f32 %v577, %v2063
        %v2230 = vadd.f32 %v583, %v2068
        %v2231 = vadd.f32 %v589, %v2073
        %v2232 = vadd.f32 %v595, %v2078
        %v2233 = vadd.f32 %v601, %v2083
        %v2234 = vadd.f32 %v607, %v2088
        %v2235 = vadd.f32 %v613, %v2093
        %v2236 = vadd.f32 %v619, %v2098
        %v2237 = vadd.f32 %v625, %v2103
        %v2238 = vadd.f32 %v631, %v2108
        %v2239 = vadd.f32 %v637, %v2113
        %v2240 = vadd.f32 %v643, %v2118
        %v2241 = vadd.f32 %v649, %v2123
        %v2242 = vadd.f32 %v655, %v2128
        %v2243 = vadd.f32 %v661, %v2133
        %v2244 = vadd.f32 %v667, %v2138
        %v2245 = vadd.f32 %v673, %v2143
        %v2246 = vadd.f32 %v679, %v2148
        %s2247 = scalar_lea.vmem [#allocation2], 84
        %v2248 = vld [vmem:[%s2247] sm:$0xff]
        %v2250 = vcombine.high %v2248, %v2248
        %v2251 = vsel %vm322, %v1289, 0
        %v2253 = vsel %vm322, %v1291, 0
        %v2255 = vsel %vm419, %v2248, 0
        %v2257 = vsel %vm419, %v2250, 0
        %2259 = vmatprep.subr.mxu0 %v2257
        %2260 = vmatpush1.msra.mxu0 %v2255
        %2261 = vmatprep.subr.mxu0 0.0
        %2262 = vmatpush1.msra.mxu0 0.0
        %2263 = vmatprep.subr.mxu0 0.0
        %2264 = vmatpush1.msra.mxu0 0.0
        %2265 = vmatprep.subr.mxu0 0.0
        %2266 = vmatpush1.msra.mxu0 0.0
        %2267 = vmatprep.subr.mxu0 0.0
        %2268 = vmatpush1.msra.mxu0 0.0
        %2269 = vmatprep.subr.mxu0 0.0
        %2270 = vmatpush1.msra.mxu0 0.0
        %2271 = vmatprep.subr.mxu0 0.0
        %2272 = vmatpush1.msra.mxu0 0.0
        %2273 = vmatprep.subr.mxu0 0.0
        %2274 = vmatpush1.msra.mxu0 0.0
        %2275 = vmatprep.subr.mxu0 0.0
        %2276 = vmatpush1.msra.mxu0 0.0
        %2277 = vmatprep.subr.mxu0 0.0
        %2278 = vmatpush1.msra.mxu0 0.0
        %2279 = vmatprep.subr.mxu0 0.0
        %2280 = vmatpush1.msra.mxu0 0.0
        %2281 = vmatprep.subr.mxu0 0.0
        %2282 = vmatpush1.msra.mxu0 0.0
        %2283 = vmatprep.subr.mxu0 0.0
        %2284 = vmatpush1.msra.mxu0 0.0
        %2285 = vmatprep.subr.mxu0 0.0
        %2286 = vmatpush1.msra.mxu0 0.0
        %2287 = vmatprep.subr.mxu0 0.0
        %2288 = vmatpush1.msra.mxu0 0.0
        %2289 = vmatprep.subr.mxu0 0.0
        %2290 = vmatpush1.msra.mxu0 0.0
        %2291 = vmatprep.subr.mxu0 0.0
        %2292 = vmatpush1.msra.mxu0 0.0
        %2293 = vmatprep.subr.mxu0 0.0
        %2294 = vmatpush1.msra.mxu0 0.0
        %2295 = vmatprep.subr.mxu0 0.0
        %2296 = vmatpush1.msra.mxu0 0.0
        %2297 = vmatprep.subr.mxu0 0.0
        %2298 = vmatpush1.msra.mxu0 0.0
        %2299 = vmatprep.subr.mxu0 0.0
        %2300 = vmatpush1.msra.mxu0 0.0
        %2301 = vmatprep.subr.mxu0 0.0
        %2302 = vmatpush1.msra.mxu0 0.0
        %2303 = vmatprep.subr.mxu0 0.0
        %2304 = vmatpush1.msra.mxu0 0.0
        %2305 = vmatprep.subr.mxu0 0.0
        %2306 = vmatpush1.msra.mxu0 0.0
        %2307 = vmatprep.subr.mxu0 0.0
        %2308 = vmatpush1.msra.mxu0 0.0
        %2309 = vmatprep.subr.mxu0 0.0
        %2310 = vmatpush1.msra.mxu0 0.0
        %2311 = vmatprep.subr.mxu0 0.0
        %2312 = vmatpush1.msra.mxu0 0.0
        %2313 = vmatprep.subr.mxu0 0.0
        %2314 = vmatpush1.msra.mxu0 0.0
        %2315 = vmatprep.subr.mxu0 0.0
        %2316 = vmatpush1.msra.mxu0 0.0
        %2317 = vmatprep.subr.mxu0 0.0
        %2318 = vmatpush1.msra.mxu0 0.0
        %2319 = vmatprep.subr.mxu0 0.0
        %2320 = vmatpush1.msra.mxu0 0.0
        %2321 = vmatprep.subr.mxu0 0.0
        %2322 = vmatpush1.msra.mxu0 0.0
        %2323 = vmatprep.mubr.f32.mxu0 0.0
        %2324 = vmatmul.mubr.f32.gmra.mrb[0].mxu0 %v1304
        %v2325 = vpop.f32.mrb[0].mxu0
        %v2326 = vadd.f32 0.0, %v2325
        %v2327 = vpop.f32.mrb[0].mxu0
        %v2328 = vadd.f32 0.0, %v2327
        %2329 = vmatprep.mubr.f32.mxu0 0.0
        %2330 = vmatmul.mubr.f32.gmra.mrb[0].mxu0 %v1306
        %v2331 = vpop.f32.mrb[0].mxu0
        %v2332 = vadd.f32 0.0, %v2331
        %v2333 = vpop.f32.mrb[0].mxu0
        %v2334 = vadd.f32 0.0, %v2333
        %2335 = vmatprep.mubr.f32.mxu0 0.0
        %2336 = vmatmul.mubr.f32.gmra.mrb[0].mxu0 %v1308
        %v2337 = vpop.f32.mrb[0].mxu0
        %v2338 = vadd.f32 0.0, %v2337
        %v2339 = vpop.f32.mrb[0].mxu0
        %v2340 = vadd.f32 0.0, %v2339
        %2341 = vmatprep.mubr.f32.mxu0 0.0
        %2342 = vmatmul.mubr.f32.gmra.mrb[0].mxu0 %v1310
        %v2343 = vpop.f32.mrb[0].mxu0
        %v2344 = vadd.f32 0.0, %v2343
        %v2345 = vpop.f32.mrb[0].mxu0
        %v2346 = vadd.f32 0.0, %v2345
        %2347 = vmatprep.mubr.f32.mxu0 0.0
        %2348 = vmatmul.mubr.f32.gmra.mrb[0].mxu0 %v1312
        %v2349 = vpop.f32.mrb[0].mxu0
        %v2350 = vadd.f32 0.0, %v2349
        %v2351 = vpop.f32.mrb[0].mxu0
        %v2352 = vadd.f32 0.0, %v2351
        %2353 = vmatprep.mubr.f32.mxu0 0.0
        %2354 = vmatmul.mubr.f32.gmra.mrb[0].mxu0 %v1314
        %v2355 = vpop.f32.mrb[0].mxu0
        %v2356 = vadd.f32 0.0, %v2355
        %v2357 = vpop.f32.mrb[0].mxu0
        %v2358 = vadd.f32 0.0, %v2357
        %2359 = vmatprep.mubr.f32.mxu0 0.0
        %2360 = vmatmul.mubr.f32.gmra.mrb[0].mxu0 %v1316
        %v2361 = vpop.f32.mrb[0].mxu0
        %v2362 = vadd.f32 0.0, %v2361
        %v2363 = vpop.f32.mrb[0].mxu0
        %v2364 = vadd.f32 0.0, %v2363
        %2365 = vmatprep.mubr.f32.mxu0 0.0
        %2366 = vmatmul.mubr.f32.gmra.mrb[0].mxu0 %v1318
        %v2367 = vpop.f32.mrb[0].mxu0
        %v2368 = vadd.f32 0.0, %v2367
        %v2369 = vpop.f32.mrb[0].mxu0
        %v2370 = vadd.f32 0.0, %v2369
        %2371 = vmatprep.mubr.f32.mxu0 0.0
        %2372 = vmatmul.mubr.f32.gmra.mrb[0].mxu0 %v1320
        %v2373 = vpop.f32.mrb[0].mxu0
        %v2374 = vadd.f32 0.0, %v2373
        %v2375 = vpop.f32.mrb[0].mxu0
        %v2376 = vadd.f32 0.0, %v2375
        %2377 = vmatprep.mubr.f32.mxu0 0.0
        %2378 = vmatmul.mubr.f32.gmra.mrb[0].mxu0 %v1322
        %v2379 = vpop.f32.mrb[0].mxu0
        %v2380 = vadd.f32 0.0, %v2379
        %v2381 = vpop.f32.mrb[0].mxu0
        %v2382 = vadd.f32 0.0, %v2381
        %2383 = vmatprep.mubr.f32.mxu0 0.0
        %2384 = vmatmul.mubr.f32.gmra.mrb[0].mxu0 %v1324
        %v2385 = vpop.f32.mrb[0].mxu0
        %v2386 = vadd.f32 0.0, %v2385
        %v2387 = vpop.f32.mrb[0].mxu0
        %v2388 = vadd.f32 0.0, %v2387
        %2389 = vmatprep.mubr.f32.mxu0 0.0
        %2390 = vmatmul.mubr.f32.gmra.mrb[0].mxu0 %v1326
        %v2391 = vpop.f32.mrb[0].mxu0
        %v2392 = vadd.f32 0.0, %v2391
        %v2393 = vpop.f32.mrb[0].mxu0
        %v2394 = vadd.f32 0.0, %v2393
        %2395 = vmatprep.mubr.f32.mxu0 0.0
        %2396 = vmatmul.mubr.f32.gmra.mrb[0].mxu0 %v1328
        %v2397 = vpop.f32.mrb[0].mxu0
        %v2398 = vadd.f32 0.0, %v2397
        %v2399 = vpop.f32.mrb[0].mxu0
        %v2400 = vadd.f32 0.0, %v2399
        %2401 = vmatprep.mubr.f32.mxu0 0.0
        %2402 = vmatmul.mubr.f32.gmra.mrb[0].mxu0 %v1330
        %v2403 = vpop.f32.mrb[0].mxu0
        %v2404 = vadd.f32 0.0, %v2403
        %v2405 = vpop.f32.mrb[0].mxu0
        %v2406 = vadd.f32 0.0, %v2405
        %2407 = vmatprep.mubr.f32.mxu0 0.0
        %2408 = vmatmul.mubr.f32.gmra.mrb[0].mxu0 %v1332
        %v2409 = vpop.f32.mrb[0].mxu0
        %v2410 = vadd.f32 0.0, %v2409
        %v2411 = vpop.f32.mrb[0].mxu0
        %v2412 = vadd.f32 0.0, %v2411
        %2413 = vmatprep.mubr.f32.mxu0 0.0
        %2414 = vmatmul.mubr.f32.gmra.mrb[0].mxu0 %v1334
        %v2415 = vpop.f32.mrb[0].mxu0
        %v2416 = vadd.f32 0.0, %v2415
        %v2417 = vpop.f32.mrb[0].mxu0
        %v2418 = vadd.f32 0.0, %v2417
        %2419 = vmatprep.mubr.f32.mxu0 0.0
        %2420 = vmatmul.mubr.f32.gmra.mrb[0].mxu0 %v1336
        %v2421 = vpop.f32.mrb[0].mxu0
        %v2422 = vadd.f32 0.0, %v2421
        %v2423 = vpop.f32.mrb[0].mxu0
        %v2424 = vadd.f32 0.0, %v2423
        %2425 = vmatprep.mubr.f32.mxu0 0.0
        %2426 = vmatmul.mubr.f32.gmra.mrb[0].mxu0 %v1338
        %v2427 = vpop.f32.mrb[0].mxu0
        %v2428 = vadd.f32 0.0, %v2427
        %v2429 = vpop.f32.mrb[0].mxu0
        %v2430 = vadd.f32 0.0, %v2429
        %2431 = vmatprep.mubr.f32.mxu0 0.0
        %2432 = vmatmul.mubr.f32.gmra.mrb[0].mxu0 %v1340
        %v2433 = vpop.f32.mrb[0].mxu0
        %v2434 = vadd.f32 0.0, %v2433
        %v2435 = vpop.f32.mrb[0].mxu0
        %v2436 = vadd.f32 0.0, %v2435
        %2437 = vmatprep.mubr.f32.mxu0 0.0
        %2438 = vmatmul.mubr.f32.gmra.mrb[0].mxu0 %v1342
        %v2439 = vpop.f32.mrb[0].mxu0
        %v2440 = vadd.f32 0.0, %v2439
        %v2441 = vpop.f32.mrb[0].mxu0
        %v2442 = vadd.f32 0.0, %v2441
        %2443 = vmatprep.mubr.f32.mxu0 0.0
        %2444 = vmatmul.mubr.f32.gmra.mrb[0].mxu0 %v1344
        %v2445 = vpop.f32.mrb[0].mxu0
        %v2446 = vadd.f32 0.0, %v2445
        %v2447 = vpop.f32.mrb[0].mxu0
        %v2448 = vadd.f32 0.0, %v2447
        %2449 = vmatprep.mubr.f32.mxu0 0.0
        %2450 = vmatmul.mubr.f32.gmra.mrb[0].mxu0 %v1346
        %v2451 = vpop.f32.mrb[0].mxu0
        %v2452 = vadd.f32 0.0, %v2451
        %v2453 = vpop.f32.mrb[0].mxu0
        %v2454 = vadd.f32 0.0, %v2453
        %2455 = vmatprep.mubr.f32.mxu0 0.0
        %2456 = vmatmul.mubr.f32.gmra.mrb[0].mxu0 %v1348
        %v2457 = vpop.f32.mrb[0].mxu0
        %v2458 = vadd.f32 0.0, %v2457
        %v2459 = vpop.f32.mrb[0].mxu0
        %v2460 = vadd.f32 0.0, %v2459
        %2461 = vmatprep.mubr.f32.mxu0 0.0
        %2462 = vmatmul.mubr.f32.gmra.mrb[0].mxu0 %v1350
        %v2463 = vpop.f32.mrb[0].mxu0
        %v2464 = vadd.f32 0.0, %v2463
        %v2465 = vpop.f32.mrb[0].mxu0
        %v2466 = vadd.f32 0.0, %v2465
        %2467 = vmatprep.mubr.f32.mxu0 0.0
        %2468 = vmatmul.mubr.f32.gmra.mrb[0].mxu0 %v1352
        %v2469 = vpop.f32.mrb[0].mxu0
        %v2470 = vadd.f32 0.0, %v2469
        %v2471 = vpop.f32.mrb[0].mxu0
        %v2472 = vadd.f32 0.0, %v2471
        %2473 = vmatprep.mubr.f32.mxu0 0.0
        %2474 = vmatmul.mubr.f32.gmra.mrb[0].mxu0 %v1354
        %v2475 = vpop.f32.mrb[0].mxu0
        %v2476 = vadd.f32 0.0, %v2475
        %v2477 = vpop.f32.mrb[0].mxu0
        %v2478 = vadd.f32 0.0, %v2477
        %2479 = vmatprep.mubr.f32.mxu0 0.0
        %2480 = vmatmul.mubr.f32.gmra.mrb[0].mxu0 %v1356
        %v2481 = vpop.f32.mrb[0].mxu0
        %v2482 = vadd.f32 0.0, %v2481
        %v2483 = vpop.f32.mrb[0].mxu0
        %v2484 = vadd.f32 0.0, %v2483
        %2485 = vmatprep.mubr.f32.mxu0 0.0
        %2486 = vmatmul.mubr.f32.gmra.mrb[0].mxu0 %v1358
        %v2487 = vpop.f32.mrb[0].mxu0
        %v2488 = vadd.f32 0.0, %v2487
        %v2489 = vpop.f32.mrb[0].mxu0
        %v2490 = vadd.f32 0.0, %v2489
        %2491 = vmatprep.mubr.f32.mxu0 0.0
        %2492 = vmatmul.mubr.f32.gmra.mrb[0].mxu0 %v1659
        %v2493 = vpop.f32.mrb[0].mxu0
        %v2494 = vadd.f32 0.0, %v2493
        %v2495 = vpop.f32.mrb[0].mxu0
        %v2496 = vadd.f32 0.0, %v2495
        %2497 = vmatprep.mubr.f32.mxu0 0.0
        %2498 = vmatmul.mubr.f32.gmra.mrb[0].mxu0 %v1661
        %v2499 = vpop.f32.mrb[0].mxu0
        %v2500 = vadd.f32 0.0, %v2499
        %v2501 = vpop.f32.mrb[0].mxu0
        %v2502 = vadd.f32 0.0, %v2501
        %2503 = vmatprep.mubr.f32.mxu0 0.0
        %2504 = vmatmul.mubr.f32.gmra.mrb[0].mxu0 %v2251
        %v2505 = vpop.f32.mrb[0].mxu0
        %v2506 = vadd.f32 0.0, %v2505
        %v2507 = vpop.f32.mrb[0].mxu0
        %v2508 = vadd.f32 0.0, %v2507
        %2509 = vmatprep.mubr.f32.mxu0 0.0
        %2510 = vmatmul.mubr.f32.gmra.mrb[0].mxu0 %v2253
        %v2511 = vpop.f32.mrb[0].mxu0
        %v2512 = vadd.f32 0.0, %v2511
        %v2513 = vpop.f32.mrb[0].mxu0
        %v2514 = vadd.f32 0.0, %v2513
        %2515 = vdwg.mxu0
        %v2516 = vadd.f32 %v2151, %v2326
        %v2517 = vadd.f32 %v2152, %v2332
        %v2518 = vadd.f32 %v2153, %v2338
        %v2519 = vadd.f32 %v2154, %v2344
        %v2520 = vadd.f32 %v2155, %v2350
        %v2521 = vadd.f32 %v2156, %v2356
        %v2522 = vadd.f32 %v2157, %v2362
        %v2523 = vadd.f32 %v2158, %v2368
        %v2524 = vadd.f32 %v2159, %v2374
        %v2525 = vadd.f32 %v2160, %v2380
        %v2526 = vadd.f32 %v2161, %v2386
        %v2527 = vadd.f32 %v2162, %v2392
        %v2528 = vadd.f32 %v2163, %v2398
        %v2529 = vadd.f32 %v2164, %v2404
        %v2530 = vadd.f32 %v2165, %v2410
        %v2531 = vadd.f32 %v2166, %v2416
        %v2532 = vadd.f32 %v2167, %v2422
        %v2533 = vadd.f32 %v2168, %v2428
        %v2534 = vadd.f32 %v2169, %v2434
        %v2535 = vadd.f32 %v2170, %v2440
        %v2536 = vadd.f32 %v2171, %v2446
        %v2537 = vadd.f32 %v2172, %v2452
        %v2538 = vadd.f32 %v2173, %v2458
        %v2539 = vadd.f32 %v2174, %v2464
        %v2540 = vadd.f32 %v2175, %v2470
        %v2541 = vadd.f32 %v2176, %v2476
        %v2542 = vadd.f32 %v2177, %v2482
        %v2543 = vadd.f32 %v2178, %v2488
        %v2544 = vadd.f32 %v2179, %v2494
        %v2545 = vadd.f32 %v2180, %v2500
        %v2546 = vadd.f32 %v2181, %v2506
        %v2547 = vadd.f32 %v2182, %v2512
        %v2548 = vadd.f32 %v2183, %v2328
        %v2549 = vadd.f32 %v2184, %v2334
        %v2550 = vadd.f32 %v2185, %v2340
        %v2551 = vadd.f32 %v2186, %v2346
        %v2552 = vadd.f32 %v2187, %v2352
        %v2553 = vadd.f32 %v2188, %v2358
        %v2554 = vadd.f32 %v2189, %v2364
        %v2555 = vadd.f32 %v2190, %v2370
        %v2556 = vadd.f32 %v2191, %v2376
        %v2557 = vadd.f32 %v2192, %v2382
        %v2558 = vadd.f32 %v2193, %v2388
        %v2559 = vadd.f32 %v2194, %v2394
        %v2560 = vadd.f32 %v2195, %v2400
        %v2561 = vadd.f32 %v2196, %v2406
        %v2562 = vadd.f32 %v2197, %v2412
        %v2563 = vadd.f32 %v2198, %v2418
        %v2564 = vadd.f32 %v2199, %v2424
        %v2565 = vadd.f32 %v2200, %v2430
        %v2566 = vadd.f32 %v2201, %v2436
        %v2567 = vadd.f32 %v2202, %v2442
        %v2568 = vadd.f32 %v2203, %v2448
        %v2569 = vadd.f32 %v2204, %v2454
        %v2570 = vadd.f32 %v2205, %v2460
        %v2571 = vadd.f32 %v2206, %v2466
        %v2572 = vadd.f32 %v2207, %v2472
        %v2573 = vadd.f32 %v2208, %v2478
        %v2574 = vadd.f32 %v2209, %v2484
        %v2575 = vadd.f32 %v2210, %v2490
        %v2576 = vadd.f32 %v2211, %v2496
        %v2577 = vadd.f32 %v2212, %v2502
        %v2578 = vadd.f32 %v2213, %v2508
        %v2579 = vadd.f32 %v2214, %v2514
        %vm2580 = vcmask 1045504
        %v2581 = vrot.slane %v263, 2
        %v2582 = vrot.slane %v264, 2
        %v2583 = vsel %vm2580, %v2581, %v2582
        %v2584 = vrot.slane %v265, 2
        %v2585 = vsel %vm2580, %v2582, %v2584
        %v2586 = vrot.slane %v266, 2
        %v2587 = vrot.slane %v267, 2
        %v2588 = vsel %vm2580, %v2586, %v2587
        %v2589 = vrot.slane %v268, 2
        %v2590 = vsel %vm2580, %v2587, %v2589
        %v2591 = vrot.slane %v269, 2
        %v2592 = vrot.slane %v270, 2
        %v2593 = vsel %vm2580, %v2591, %v2592
        %v2594 = vrot.slane %v271, 2
        %v2595 = vsel %vm2580, %v2592, %v2594
        %v2596 = vrot.slane %v272, 2
        %v2597 = vrot.slane %v273, 2
        %v2598 = vsel %vm2580, %v2596, %v2597
        %v2599 = vrot.slane %v274, 2
        %v2600 = vsel %vm2580, %v2597, %v2599
        %v2601 = vrot.slane %v275, 2
        %v2602 = vrot.slane %v276, 2
        %v2603 = vsel %vm2580, %v2601, %v2602
        %v2604 = vrot.slane %v277, 2
        %v2605 = vsel %vm2580, %v2602, %v2604
        %v2606 = vrot.slane %v278, 2
        %v2607 = vrot.slane %v279, 2
        %v2608 = vsel %vm2580, %v2606, %v2607
        %v2609 = vrot.slane %v280, 2
        %v2610 = vsel %vm2580, %v2607, %v2609
        %v2611 = vrot.slane %v281, 2
        %v2612 = vrot.slane %v282, 2
        %v2613 = vsel %vm2580, %v2611, %v2612
        %v2614 = vrot.slane %v283, 2
        %v2615 = vsel %vm2580, %v2612, %v2614
        %v2616 = vrot.slane %v284, 2
        %v2617 = vrot.slane %v285, 2
        %v2618 = vsel %vm2580, %v2616, %v2617
        %v2619 = vrot.slane %v286, 2
        %v2620 = vsel %vm2580, %v2617, %v2619
        %v2621 = vrot.slane %v287, 2
        %v2622 = vrot.slane %v288, 2
        %v2623 = vsel %vm2580, %v2621, %v2622
        %v2624 = vrot.slane %v289, 2
        %v2625 = vsel %vm2580, %v2622, %v2624
        %v2626 = vrot.slane %v290, 2
        %v2627 = vrot.slane %v291, 2
        %v2628 = vsel %vm2580, %v2626, %v2627
        %v2629 = vrot.slane %v292, 2
        %v2630 = vsel %vm2580, %v2627, %v2629
        %v2631 = vrot.slane %v293, 2
        %v2632 = vrot.slane %v294, 2
        %v2633 = vsel %vm2580, %v2631, %v2632
        %v2634 = vrot.slane %v295, 2
        %v2635 = vsel %vm2580, %v2632, %v2634
        %v2636 = vrot.slane %v296, 2
        %v2637 = vrot.slane %v297, 2
        %v2638 = vsel %vm2580, %v2636, %v2637
        %v2639 = vrot.slane %v298, 2
        %v2640 = vsel %vm2580, %v2637, %v2639
        %v2641 = vrot.slane %v299, 2
        %v2642 = vrot.slane %v300, 2
        %v2643 = vsel %vm2580, %v2641, %v2642
        %v2644 = vrot.slane %v301, 2
        %v2645 = vsel %vm2580, %v2642, %v2644
        %v2646 = vrot.slane %v302, 2
        %v2647 = vrot.slane %v303, 2
        %v2648 = vsel %vm2580, %v2646, %v2647
        %v2649 = vrot.slane %v304, 2
        %v2650 = vsel %vm2580, %v2647, %v2649
        %v2651 = vrot.slane %v305, 2
        %v2652 = vrot.slane %v306, 2
        %v2653 = vsel %vm2580, %v2651, %v2652
        %v2654 = vrot.slane %v307, 2
        %v2655 = vsel %vm2580, %v2652, %v2654
        %v2656 = vrot.slane %v308, 2
        %v2657 = vrot.slane %v309, 2
        %v2658 = vsel %vm2580, %v2656, %v2657
        %v2659 = vrot.slane %v310, 2
        %v2660 = vsel %vm2580, %v2657, %v2659
        %v2661 = vrot.slane %v311, 2
        %v2662 = vrot.slane %v312, 2
        %v2663 = vsel %vm2580, %v2661, %v2662
        %v2664 = vrot.slane %v313, 2
        %v2665 = vsel %vm2580, %v2662, %v2664
        %v2666 = vrot.slane %v314, 2
        %v2667 = vrot.slane %v315, 2
        %v2668 = vsel %vm2580, %v2666, %v2667
        %v2669 = vrot.slane %v316, 2
        %v2670 = vsel %vm2580, %v2667, %v2669
        %s2671 = scalar_lea.vmem [#allocation2], 24
        %v2672 = vld [vmem:[%s2671 + $0x4] sm:$0xf]
        %v2673 = vsel %vm322, %v2583, 0
        %v2675 = vsel %vm322, %v2585, 0
        %v2677 = vsel %vm322, %v2588, 0
        %v2679 = vsel %vm322, %v2590, 0
        %v2681 = vsel %vm322, %v2593, 0
        %v2683 = vsel %vm322, %v2595, 0
        %v2685 = vsel %vm322, %v2598, 0
        %v2687 = vsel %vm322, %v2600, 0
        %v2689 = vsel %vm322, %v2603, 0
        %v2691 = vsel %vm322, %v2605, 0
        %v2693 = vsel %vm322, %v2608, 0
        %v2695 = vsel %vm322, %v2610, 0
        %v2697 = vsel %vm322, %v2613, 0
        %v2699 = vsel %vm322, %v2615, 0
        %v2701 = vsel %vm322, %v2618, 0
        %v2703 = vsel %vm322, %v2620, 0
        %v2705 = vsel %vm322, %v2623, 0
        %v2707 = vsel %vm322, %v2625, 0
        %v2709 = vsel %vm322, %v2628, 0
        %v2711 = vsel %vm322, %v2630, 0
        %v2713 = vsel %vm322, %v2633, 0
        %v2715 = vsel %vm322, %v2635, 0
        %v2717 = vsel %vm322, %v2638, 0
        %v2719 = vsel %vm322, %v2640, 0
        %v2721 = vsel %vm322, %v2643, 0
        %v2723 = vsel %vm322, %v2645, 0
        %v2725 = vsel %vm322, %v2648, 0
        %v2727 = vsel %vm322, %v2650, 0
        %v2729 = vsel %vm322, %v2653, 0
        %v2731 = vsel %vm322, %v2655, 0
        %v2733 = vsel %vm322, %v2658, 0
        %v2735 = vsel %vm322, %v2660, 0
        %v2738 = vsel %vm419, %v2672, 0
        %2740 = vmatprep.subr.mxu0 0.0
        %2741 = vmatpush1.msra.mxu0 %v2738
        %2742 = vmatprep.subr.mxu0 0.0
        %2743 = vmatpush1.msra.mxu0 0.0
        %2744 = vmatprep.subr.mxu0 0.0
        %2745 = vmatpush1.msra.mxu0 0.0
        %2746 = vmatprep.subr.mxu0 0.0
        %2747 = vmatpush1.msra.mxu0 0.0
        %2748 = vmatprep.subr.mxu0 0.0
        %2749 = vmatpush1.msra.mxu0 0.0
        %2750 = vmatprep.subr.mxu0 0.0
        %2751 = vmatpush1.msra.mxu0 0.0
        %2752 = vmatprep.subr.mxu0 0.0
        %2753 = vmatpush1.msra.mxu0 0.0
        %2754 = vmatprep.subr.mxu0 0.0
        %2755 = vmatpush1.msra.mxu0 0.0
        %2756 = vmatprep.subr.mxu0 0.0
        %2757 = vmatpush1.msra.mxu0 0.0
        %2758 = vmatprep.subr.mxu0 0.0
        %2759 = vmatpush1.msra.mxu0 0.0
        %2760 = vmatprep.subr.mxu0 0.0
        %2761 = vmatpush1.msra.mxu0 0.0
        %2762 = vmatprep.subr.mxu0 0.0
        %2763 = vmatpush1.msra.mxu0 0.0
        %2764 = vmatprep.subr.mxu0 0.0
        %2765 = vmatpush1.msra.mxu0 0.0
        %2766 = vmatprep.subr.mxu0 0.0
        %2767 = vmatpush1.msra.mxu0 0.0
        %2768 = vmatprep.subr.mxu0 0.0
        %2769 = vmatpush1.msra.mxu0 0.0
        %2770 = vmatprep.subr.mxu0 0.0
        %2771 = vmatpush1.msra.mxu0 0.0
        %2772 = vmatprep.subr.mxu0 0.0
        %2773 = vmatpush1.msra.mxu0 0.0
        %2774 = vmatprep.subr.mxu0 0.0
        %2775 = vmatpush1.msra.mxu0 0.0
        %2776 = vmatprep.subr.mxu0 0.0
        %2777 = vmatpush1.msra.mxu0 0.0
        %2778 = vmatprep.subr.mxu0 0.0
        %2779 = vmatpush1.msra.mxu0 0.0
        %2780 = vmatprep.subr.mxu0 0.0
        %2781 = vmatpush1.msra.mxu0 0.0
        %2782 = vmatprep.subr.mxu0 0.0
        %2783 = vmatpush1.msra.mxu0 0.0
        %2784 = vmatprep.subr.mxu0 0.0
        %2785 = vmatpush1.msra.mxu0 0.0
        %2786 = vmatprep.subr.mxu0 0.0
        %2787 = vmatpush1.msra.mxu0 0.0
        %2788 = vmatprep.subr.mxu0 0.0
        %2789 = vmatpush1.msra.mxu0 0.0
        %2790 = vmatprep.subr.mxu0 0.0
        %2791 = vmatpush1.msra.mxu0 0.0
        %2792 = vmatprep.subr.mxu0 0.0
        %2793 = vmatpush1.msra.mxu0 0.0
        %2794 = vmatprep.subr.mxu0 0.0
        %2795 = vmatpush1.msra.mxu0 0.0
        %2796 = vmatprep.subr.mxu0 0.0
        %2797 = vmatpush1.msra.mxu0 0.0
        %2798 = vmatprep.subr.mxu0 0.0
        %2799 = vmatpush1.msra.mxu0 0.0
        %2800 = vmatprep.subr.mxu0 0.0
        %2801 = vmatpush1.msra.mxu0 0.0
        %2802 = vmatprep.subr.mxu0 0.0
        %2803 = vmatpush1.msra.mxu0 0.0
        %2804 = vmatprep.mubr.f32.mxu0 0.0
        %2805 = vmatmul.mubr.f32.gmra.mrb[0].mxu0 %v2673
        %v2806 = vpop.f32.mrb[0].mxu0
        %v2807 = vadd.f32 0.0, %v2806
        %v2808 = vpop.f32.mrb[0].mxu0
        %2809 = vmatprep.mubr.f32.mxu0 0.0
        %2810 = vmatmul.mubr.f32.gmra.mrb[0].mxu0 %v2675
        %v2811 = vpop.f32.mrb[0].mxu0
        %v2812 = vadd.f32 0.0, %v2811
        %v2813 = vpop.f32.mrb[0].mxu0
        %2814 = vmatprep.mubr.f32.mxu0 0.0
        %2815 = vmatmul.mubr.f32.gmra.mrb[0].mxu0 %v2677
        %v2816 = vpop.f32.mrb[0].mxu0
        %v2817 = vadd.f32 0.0, %v2816
        %v2818 = vpop.f32.mrb[0].mxu0
        %2819 = vmatprep.mubr.f32.mxu0 0.0
        %2820 = vmatmul.mubr.f32.gmra.mrb[0].mxu0 %v2679
        %v2821 = vpop.f32.mrb[0].mxu0
        %v2822 = vadd.f32 0.0, %v2821
        %v2823 = vpop.f32.mrb[0].mxu0
        %2824 = vmatprep.mubr.f32.mxu0 0.0
        %2825 = vmatmul.mubr.f32.gmra.mrb[0].mxu0 %v2681
        %v2826 = vpop.f32.mrb[0].mxu0
        %v2827 = vadd.f32 0.0, %v2826
        %v2828 = vpop.f32.mrb[0].mxu0
        %2829 = vmatprep.mubr.f32.mxu0 0.0
        %2830 = vmatmul.mubr.f32.gmra.mrb[0].mxu0 %v2683
        %v2831 = vpop.f32.mrb[0].mxu0
        %v2832 = vadd.f32 0.0, %v2831
        %v2833 = vpop.f32.mrb[0].mxu0
        %2834 = vmatprep.mubr.f32.mxu0 0.0
        %2835 = vmatmul.mubr.f32.gmra.mrb[0].mxu0 %v2685
        %v2836 = vpop.f32.mrb[0].mxu0
        %v2837 = vadd.f32 0.0, %v2836
        %v2838 = vpop.f32.mrb[0].mxu0
        %2839 = vmatprep.mubr.f32.mxu0 0.0
        %2840 = vmatmul.mubr.f32.gmra.mrb[0].mxu0 %v2687
        %v2841 = vpop.f32.mrb[0].mxu0
        %v2842 = vadd.f32 0.0, %v2841
        %v2843 = vpop.f32.mrb[0].mxu0
        %2844 = vmatprep.mubr.f32.mxu0 0.0
        %2845 = vmatmul.mubr.f32.gmra.mrb[0].mxu0 %v2689
        %v2846 = vpop.f32.mrb[0].mxu0
        %v2847 = vadd.f32 0.0, %v2846
        %v2848 = vpop.f32.mrb[0].mxu0
        %2849 = vmatprep.mubr.f32.mxu0 0.0
        %2850 = vmatmul.mubr.f32.gmra.mrb[0].mxu0 %v2691
        %v2851 = vpop.f32.mrb[0].mxu0
        %v2852 = vadd.f32 0.0, %v2851
        %v2853 = vpop.f32.mrb[0].mxu0
        %2854 = vmatprep.mubr.f32.mxu0 0.0
        %2855 = vmatmul.mubr.f32.gmra.mrb[0].mxu0 %v2693
        %v2856 = vpop.f32.mrb[0].mxu0
        %v2857 = vadd.f32 0.0, %v2856
        %v2858 = vpop.f32.mrb[0].mxu0
        %2859 = vmatprep.mubr.f32.mxu0 0.0
        %2860 = vmatmul.mubr.f32.gmra.mrb[0].mxu0 %v2695
        %v2861 = vpop.f32.mrb[0].mxu0
        %v2862 = vadd.f32 0.0, %v2861
        %v2863 = vpop.f32.mrb[0].mxu0
        %2864 = vmatprep.mubr.f32.mxu0 0.0
        %2865 = vmatmul.mubr.f32.gmra.mrb[0].mxu0 %v2697
        %v2866 = vpop.f32.mrb[0].mxu0
        %v2867 = vadd.f32 0.0, %v2866
        %v2868 = vpop.f32.mrb[0].mxu0
        %2869 = vmatprep.mubr.f32.mxu0 0.0
        %2870 = vmatmul.mubr.f32.gmra.mrb[0].mxu0 %v2699
        %v2871 = vpop.f32.mrb[0].mxu0
        %v2872 = vadd.f32 0.0, %v2871
        %v2873 = vpop.f32.mrb[0].mxu0
        %2874 = vmatprep.mubr.f32.mxu0 0.0
        %2875 = vmatmul.mubr.f32.gmra.mrb[0].mxu0 %v2701
        %v2876 = vpop.f32.mrb[0].mxu0
        %v2877 = vadd.f32 0.0, %v2876
        %v2878 = vpop.f32.mrb[0].mxu0
        %2879 = vmatprep.mubr.f32.mxu0 0.0
        %2880 = vmatmul.mubr.f32.gmra.mrb[0].mxu0 %v2703
        %v2881 = vpop.f32.mrb[0].mxu0
        %v2882 = vadd.f32 0.0, %v2881
        %v2883 = vpop.f32.mrb[0].mxu0
        %2884 = vmatprep.mubr.f32.mxu0 0.0
        %2885 = vmatmul.mubr.f32.gmra.mrb[0].mxu0 %v2705
        %v2886 = vpop.f32.mrb[0].mxu0
        %v2887 = vadd.f32 0.0, %v2886
        %v2888 = vpop.f32.mrb[0].mxu0
        %2889 = vmatprep.mubr.f32.mxu0 0.0
        %2890 = vmatmul.mubr.f32.gmra.mrb[0].mxu0 %v2707
        %v2891 = vpop.f32.mrb[0].mxu0
        %v2892 = vadd.f32 0.0, %v2891
        %v2893 = vpop.f32.mrb[0].mxu0
        %2894 = vmatprep.mubr.f32.mxu0 0.0
        %2895 = vmatmul.mubr.f32.gmra.mrb[0].mxu0 %v2709
        %v2896 = vpop.f32.mrb[0].mxu0
        %v2897 = vadd.f32 0.0, %v2896
        %v2898 = vpop.f32.mrb[0].mxu0
        %2899 = vmatprep.mubr.f32.mxu0 0.0
        %2900 = vmatmul.mubr.f32.gmra.mrb[0].mxu0 %v2711
        %v2901 = vpop.f32.mrb[0].mxu0
        %v2902 = vadd.f32 0.0, %v2901
        %v2903 = vpop.f32.mrb[0].mxu0
        %2904 = vmatprep.mubr.f32.mxu0 0.0
        %2905 = vmatmul.mubr.f32.gmra.mrb[0].mxu0 %v2713
        %v2906 = vpop.f32.mrb[0].mxu0
        %v2907 = vadd.f32 0.0, %v2906
        %v2908 = vpop.f32.mrb[0].mxu0
        %2909 = vmatprep.mubr.f32.mxu0 0.0
        %2910 = vmatmul.mubr.f32.gmra.mrb[0].mxu0 %v2715
        %v2911 = vpop.f32.mrb[0].mxu0
        %v2912 = vadd.f32 0.0, %v2911
        %v2913 = vpop.f32.mrb[0].mxu0
        %2914 = vmatprep.mubr.f32.mxu0 0.0
        %2915 = vmatmul.mubr.f32.gmra.mrb[0].mxu0 %v2717
        %v2916 = vpop.f32.mrb[0].mxu0
        %v2917 = vadd.f32 0.0, %v2916
        %v2918 = vpop.f32.mrb[0].mxu0
        %2919 = vmatprep.mubr.f32.mxu0 0.0
        %2920 = vmatmul.mubr.f32.gmra.mrb[0].mxu0 %v2719
        %v2921 = vpop.f32.mrb[0].mxu0
        %v2922 = vadd.f32 0.0, %v2921
        %v2923 = vpop.f32.mrb[0].mxu0
        %2924 = vmatprep.mubr.f32.mxu0 0.0
        %2925 = vmatmul.mubr.f32.gmra.mrb[0].mxu0 %v2721
        %v2926 = vpop.f32.mrb[0].mxu0
        %v2927 = vadd.f32 0.0, %v2926
        %v2928 = vpop.f32.mrb[0].mxu0
        %2929 = vmatprep.mubr.f32.mxu0 0.0
        %2930 = vmatmul.mubr.f32.gmra.mrb[0].mxu0 %v2723
        %v2931 = vpop.f32.mrb[0].mxu0
        %v2932 = vadd.f32 0.0, %v2931
        %v2933 = vpop.f32.mrb[0].mxu0
        %2934 = vmatprep.mubr.f32.mxu0 0.0
        %2935 = vmatmul.mubr.f32.gmra.mrb[0].mxu0 %v2725
        %v2936 = vpop.f32.mrb[0].mxu0
        %v2937 = vadd.f32 0.0, %v2936
        %v2938 = vpop.f32.mrb[0].mxu0
        %2939 = vmatprep.mubr.f32.mxu0 0.0
        %2940 = vmatmul.mubr.f32.gmra.mrb[0].mxu0 %v2727
        %v2941 = vpop.f32.mrb[0].mxu0
        %v2942 = vadd.f32 0.0, %v2941
        %v2943 = vpop.f32.mrb[0].mxu0
        %2944 = vmatprep.mubr.f32.mxu0 0.0
        %2945 = vmatmul.mubr.f32.gmra.mrb[0].mxu0 %v2729
        %v2946 = vpop.f32.mrb[0].mxu0
        %v2947 = vadd.f32 0.0, %v2946
        %v2948 = vpop.f32.mrb[0].mxu0
        %2949 = vmatprep.mubr.f32.mxu0 0.0
        %2950 = vmatmul.mubr.f32.gmra.mrb[0].mxu0 %v2731
        %v2951 = vpop.f32.mrb[0].mxu0
        %v2952 = vadd.f32 0.0, %v2951
        %v2953 = vpop.f32.mrb[0].mxu0
        %2954 = vmatprep.mubr.f32.mxu0 0.0
        %2955 = vmatmul.mubr.f32.gmra.mrb[0].mxu0 %v2733
        %v2956 = vpop.f32.mrb[0].mxu0
        %v2957 = vadd.f32 0.0, %v2956
        %v2958 = vpop.f32.mrb[0].mxu0
        %2959 = vmatprep.mubr.f32.mxu0 0.0
        %2960 = vmatmul.mubr.f32.gmra.mrb[0].mxu0 %v2735
        %v2961 = vpop.f32.mrb[0].mxu0
        %v2962 = vadd.f32 0.0, %v2961
        %v2963 = vpop.f32.mrb[0].mxu0
        %2964 = vdwg.mxu0
        %v2965 = vadd.f32 %v2548, %v2807
        %v2966 = vadd.f32 %v2549, %v2812
        %v2967 = vadd.f32 %v2550, %v2817
        %v2968 = vadd.f32 %v2551, %v2822
        %v2969 = vadd.f32 %v2552, %v2827
        %v2970 = vadd.f32 %v2553, %v2832
        %v2971 = vadd.f32 %v2554, %v2837
        %v2972 = vadd.f32 %v2555, %v2842
        %v2973 = vadd.f32 %v2556, %v2847
        %v2974 = vadd.f32 %v2557, %v2852
        %v2975 = vadd.f32 %v2558, %v2857
        %v2976 = vadd.f32 %v2559, %v2862
        %v2977 = vadd.f32 %v2560, %v2867
        %v2978 = vadd.f32 %v2561, %v2872
        %v2979 = vadd.f32 %v2562, %v2877
        %v2980 = vadd.f32 %v2563, %v2882
        %v2981 = vadd.f32 %v2564, %v2887
        %v2982 = vadd.f32 %v2565, %v2892
        %v2983 = vadd.f32 %v2566, %v2897
        %v2984 = vadd.f32 %v2567, %v2902
        %v2985 = vadd.f32 %v2568, %v2907
        %v2986 = vadd.f32 %v2569, %v2912
        %v2987 = vadd.f32 %v2570, %v2917
        %v2988 = vadd.f32 %v2571, %v2922
        %v2989 = vadd.f32 %v2572, %v2927
        %v2990 = vadd.f32 %v2573, %v2932
        %v2991 = vadd.f32 %v2574, %v2937
        %v2992 = vadd.f32 %v2575, %v2942
        %v2993 = vadd.f32 %v2576, %v2947
        %v2994 = vadd.f32 %v2577, %v2952
        %v2995 = vadd.f32 %v2578, %v2957
        %v2996 = vadd.f32 %v2579, %v2962
        %s2997 = scalar_lea.vmem [#allocation2], 60
        %v2998 = vld [vmem:[%s2997 + $0x4] sm:$0xff]
        %v3000 = vcombine.high %v2998, %v2998
        %v3001 = vsel %vm322, %v2663, 0
        %v3003 = vsel %vm322, %v2665, 0
        %v3005 = vsel %vm419, %v2998, 0
        %v3007 = vsel %vm419, %v3000, 0
        %3009 = vmatprep.subr.mxu0 %v3007
        %3010 = vmatpush1.msra.mxu0 %v3005
        %3011 = vmatprep.subr.mxu0 0.0
        %3012 = vmatpush1.msra.mxu0 0.0
        %3013 = vmatprep.subr.mxu0 0.0
        %3014 = vmatpush1.msra.mxu0 0.0
        %3015 = vmatprep.subr.mxu0 0.0
        %3016 = vmatpush1.msra.mxu0 0.0
        %3017 = vmatprep.subr.mxu0 0.0
        %3018 = vmatpush1.msra.mxu0 0.0
        %3019 = vmatprep.subr.mxu0 0.0
        %3020 = vmatpush1.msra.mxu0 0.0
        %3021 = vmatprep.subr.mxu0 0.0
        %3022 = vmatpush1.msra.mxu0 0.0
        %3023 = vmatprep.subr.mxu0 0.0
        %3024 = vmatpush1.msra.mxu0 0.0
        %3025 = vmatprep.subr.mxu0 0.0
        %3026 = vmatpush1.msra.mxu0 0.0
        %3027 = vmatprep.subr.mxu0 0.0
        %3028 = vmatpush1.msra.mxu0 0.0
        %3029 = vmatprep.subr.mxu0 0.0
        %3030 = vmatpush1.msra.mxu0 0.0
        %3031 = vmatprep.subr.mxu0 0.0
        %3032 = vmatpush1.msra.mxu0 0.0
        %3033 = vmatprep.subr.mxu0 0.0
        %3034 = vmatpush1.msra.mxu0 0.0
        %3035 = vmatprep.subr.mxu0 0.0
        %3036 = vmatpush1.msra.mxu0 0.0
        %3037 = vmatprep.subr.mxu0 0.0
        %3038 = vmatpush1.msra.mxu0 0.0
        %3039 = vmatprep.subr.mxu0 0.0
        %3040 = vmatpush1.msra.mxu0 0.0
        %3041 = vmatprep.subr.mxu0 0.0
        %3042 = vmatpush1.msra.mxu0 0.0
        %3043 = vmatprep.subr.mxu0 0.0
        %3044 = vmatpush1.msra.mxu0 0.0
        %3045 = vmatprep.subr.mxu0 0.0
        %3046 = vmatpush1.msra.mxu0 0.0
        %3047 = vmatprep.subr.mxu0 0.0
        %3048 = vmatpush1.msra.mxu0 0.0
        %3049 = vmatprep.subr.mxu0 0.0
        %3050 = vmatpush1.msra.mxu0 0.0
        %3051 = vmatprep.subr.mxu0 0.0
        %3052 = vmatpush1.msra.mxu0 0.0
        %3053 = vmatprep.subr.mxu0 0.0
        %3054 = vmatpush1.msra.mxu0 0.0
        %3055 = vmatprep.subr.mxu0 0.0
        %3056 = vmatpush1.msra.mxu0 0.0
        %3057 = vmatprep.subr.mxu0 0.0
        %3058 = vmatpush1.msra.mxu0 0.0
        %3059 = vmatprep.subr.mxu0 0.0
        %3060 = vmatpush1.msra.mxu0 0.0
        %3061 = vmatprep.subr.mxu0 0.0
        %3062 = vmatpush1.msra.mxu0 0.0
        %3063 = vmatprep.subr.mxu0 0.0
        %3064 = vmatpush1.msra.mxu0 0.0
        %3065 = vmatprep.subr.mxu0 0.0
        %3066 = vmatpush1.msra.mxu0 0.0
        %3067 = vmatprep.subr.mxu0 0.0
        %3068 = vmatpush1.msra.mxu0 0.0
        %3069 = vmatprep.subr.mxu0 0.0
        %3070 = vmatpush1.msra.mxu0 0.0
        %3071 = vmatprep.subr.mxu0 0.0
        %3072 = vmatpush1.msra.mxu0 0.0
        %3073 = vmatprep.mubr.f32.mxu0 0.0
        %3074 = vmatmul.mubr.f32.gmra.mrb[0].mxu0 %v2677
        %v3075 = vpop.f32.mrb[0].mxu0
        %v3076 = vadd.f32 0.0, %v3075
        %v3077 = vpop.f32.mrb[0].mxu0
        %v3078 = vadd.f32 0.0, %v3077
        %3079 = vmatprep.mubr.f32.mxu0 0.0
        %3080 = vmatmul.mubr.f32.gmra.mrb[0].mxu0 %v2679
        %v3081 = vpop.f32.mrb[0].mxu0
        %v3082 = vadd.f32 0.0, %v3081
        %v3083 = vpop.f32.mrb[0].mxu0
        %v3084 = vadd.f32 0.0, %v3083
        %3085 = vmatprep.mubr.f32.mxu0 0.0
        %3086 = vmatmul.mubr.f32.gmra.mrb[0].mxu0 %v2681
        %v3087 = vpop.f32.mrb[0].mxu0
        %v3088 = vadd.f32 0.0, %v3087
        %v3089 = vpop.f32.mrb[0].mxu0
        %v3090 = vadd.f32 0.0, %v3089
        %3091 = vmatprep.mubr.f32.mxu0 0.0
        %3092 = vmatmul.mubr.f32.gmra.mrb[0].mxu0 %v2683
        %v3093 = vpop.f32.mrb[0].mxu0
        %v3094 = vadd.f32 0.0, %v3093
        %v3095 = vpop.f32.mrb[0].mxu0
        %v3096 = vadd.f32 0.0, %v3095
        %3097 = vmatprep.mubr.f32.mxu0 0.0
        %3098 = vmatmul.mubr.f32.gmra.mrb[0].mxu0 %v2685
        %v3099 = vpop.f32.mrb[0].mxu0
        %v3100 = vadd.f32 0.0, %v3099
        %v3101 = vpop.f32.mrb[0].mxu0
        %v3102 = vadd.f32 0.0, %v3101
        %3103 = vmatprep.mubr.f32.mxu0 0.0
        %3104 = vmatmul.mubr.f32.gmra.mrb[0].mxu0 %v2687
        %v3105 = vpop.f32.mrb[0].mxu0
        %v3106 = vadd.f32 0.0, %v3105
        %v3107 = vpop.f32.mrb[0].mxu0
        %v3108 = vadd.f32 0.0, %v3107
        %3109 = vmatprep.mubr.f32.mxu0 0.0
        %3110 = vmatmul.mubr.f32.gmra.mrb[0].mxu0 %v2689
        %v3111 = vpop.f32.mrb[0].mxu0
        %v3112 = vadd.f32 0.0, %v3111
        %v3113 = vpop.f32.mrb[0].mxu0
        %v3114 = vadd.f32 0.0, %v3113
        %3115 = vmatprep.mubr.f32.mxu0 0.0
        %3116 = vmatmul.mubr.f32.gmra.mrb[0].mxu0 %v2691
        %v3117 = vpop.f32.mrb[0].mxu0
        %v3118 = vadd.f32 0.0, %v3117
        %v3119 = vpop.f32.mrb[0].mxu0
        %v3120 = vadd.f32 0.0, %v3119
        %3121 = vmatprep.mubr.f32.mxu0 0.0
        %3122 = vmatmul.mubr.f32.gmra.mrb[0].mxu0 %v2693
        %v3123 = vpop.f32.mrb[0].mxu0
        %v3124 = vadd.f32 0.0, %v3123
        %v3125 = vpop.f32.mrb[0].mxu0
        %v3126 = vadd.f32 0.0, %v3125
        %3127 = vmatprep.mubr.f32.mxu0 0.0
        %3128 = vmatmul.mubr.f32.gmra.mrb[0].mxu0 %v2695
        %v3129 = vpop.f32.mrb[0].mxu0
        %v3130 = vadd.f32 0.0, %v3129
        %v3131 = vpop.f32.mrb[0].mxu0
        %v3132 = vadd.f32 0.0, %v3131
        %3133 = vmatprep.mubr.f32.mxu0 0.0
        %3134 = vmatmul.mubr.f32.gmra.mrb[0].mxu0 %v2697
        %v3135 = vpop.f32.mrb[0].mxu0
        %v3136 = vadd.f32 0.0, %v3135
        %v3137 = vpop.f32.mrb[0].mxu0
        %v3138 = vadd.f32 0.0, %v3137
        %3139 = vmatprep.mubr.f32.mxu0 0.0
        %3140 = vmatmul.mubr.f32.gmra.mrb[0].mxu0 %v2699
        %v3141 = vpop.f32.mrb[0].mxu0
        %v3142 = vadd.f32 0.0, %v3141
        %v3143 = vpop.f32.mrb[0].mxu0
        %v3144 = vadd.f32 0.0, %v3143
        %3145 = vmatprep.mubr.f32.mxu0 0.0
        %3146 = vmatmul.mubr.f32.gmra.mrb[0].mxu0 %v2701
        %v3147 = vpop.f32.mrb[0].mxu0
        %v3148 = vadd.f32 0.0, %v3147
        %v3149 = vpop.f32.mrb[0].mxu0
        %v3150 = vadd.f32 0.0, %v3149
        %3151 = vmatprep.mubr.f32.mxu0 0.0
        %3152 = vmatmul.mubr.f32.gmra.mrb[0].mxu0 %v2703
        %v3153 = vpop.f32.mrb[0].mxu0
        %v3154 = vadd.f32 0.0, %v3153
        %v3155 = vpop.f32.mrb[0].mxu0
        %v3156 = vadd.f32 0.0, %v3155
        %3157 = vmatprep.mubr.f32.mxu0 0.0
        %3158 = vmatmul.mubr.f32.gmra.mrb[0].mxu0 %v2705
        %v3159 = vpop.f32.mrb[0].mxu0
        %v3160 = vadd.f32 0.0, %v3159
        %v3161 = vpop.f32.mrb[0].mxu0
        %v3162 = vadd.f32 0.0, %v3161
        %3163 = vmatprep.mubr.f32.mxu0 0.0
        %3164 = vmatmul.mubr.f32.gmra.mrb[0].mxu0 %v2707
        %v3165 = vpop.f32.mrb[0].mxu0
        %v3166 = vadd.f32 0.0, %v3165
        %v3167 = vpop.f32.mrb[0].mxu0
        %v3168 = vadd.f32 0.0, %v3167
        %3169 = vmatprep.mubr.f32.mxu0 0.0
        %3170 = vmatmul.mubr.f32.gmra.mrb[0].mxu0 %v2709
        %v3171 = vpop.f32.mrb[0].mxu0
        %v3172 = vadd.f32 0.0, %v3171
        %v3173 = vpop.f32.mrb[0].mxu0
        %v3174 = vadd.f32 0.0, %v3173
        %3175 = vmatprep.mubr.f32.mxu0 0.0
        %3176 = vmatmul.mubr.f32.gmra.mrb[0].mxu0 %v2711
        %v3177 = vpop.f32.mrb[0].mxu0
        %v3178 = vadd.f32 0.0, %v3177
        %v3179 = vpop.f32.mrb[0].mxu0
        %v3180 = vadd.f32 0.0, %v3179
        %3181 = vmatprep.mubr.f32.mxu0 0.0
        %3182 = vmatmul.mubr.f32.gmra.mrb[0].mxu0 %v2713
        %v3183 = vpop.f32.mrb[0].mxu0
        %v3184 = vadd.f32 0.0, %v3183
        %v3185 = vpop.f32.mrb[0].mxu0
        %v3186 = vadd.f32 0.0, %v3185
        %3187 = vmatprep.mubr.f32.mxu0 0.0
        %3188 = vmatmul.mubr.f32.gmra.mrb[0].mxu0 %v2715
        %v3189 = vpop.f32.mrb[0].mxu0
        %v3190 = vadd.f32 0.0, %v3189
        %v3191 = vpop.f32.mrb[0].mxu0
        %v3192 = vadd.f32 0.0, %v3191
        %3193 = vmatprep.mubr.f32.mxu0 0.0
        %3194 = vmatmul.mubr.f32.gmra.mrb[0].mxu0 %v2717
        %v3195 = vpop.f32.mrb[0].mxu0
        %v3196 = vadd.f32 0.0, %v3195
        %v3197 = vpop.f32.mrb[0].mxu0
        %v3198 = vadd.f32 0.0, %v3197
        %3199 = vmatprep.mubr.f32.mxu0 0.0
        %3200 = vmatmul.mubr.f32.gmra.mrb[0].mxu0 %v2719
        %v3201 = vpop.f32.mrb[0].mxu0
        %v3202 = vadd.f32 0.0, %v3201
        %v3203 = vpop.f32.mrb[0].mxu0
        %v3204 = vadd.f32 0.0, %v3203
        %3205 = vmatprep.mubr.f32.mxu0 0.0
        %3206 = vmatmul.mubr.f32.gmra.mrb[0].mxu0 %v2721
        %v3207 = vpop.f32.mrb[0].mxu0
        %v3208 = vadd.f32 0.0, %v3207
        %v3209 = vpop.f32.mrb[0].mxu0
        %v3210 = vadd.f32 0.0, %v3209
        %3211 = vmatprep.mubr.f32.mxu0 0.0
        %3212 = vmatmul.mubr.f32.gmra.mrb[0].mxu0 %v2723
        %v3213 = vpop.f32.mrb[0].mxu0
        %v3214 = vadd.f32 0.0, %v3213
        %v3215 = vpop.f32.mrb[0].mxu0
        %v3216 = vadd.f32 0.0, %v3215
        %3217 = vmatprep.mubr.f32.mxu0 0.0
        %3218 = vmatmul.mubr.f32.gmra.mrb[0].mxu0 %v2725
        %v3219 = vpop.f32.mrb[0].mxu0
        %v3220 = vadd.f32 0.0, %v3219
        %v3221 = vpop.f32.mrb[0].mxu0
        %v3222 = vadd.f32 0.0, %v3221
        %3223 = vmatprep.mubr.f32.mxu0 0.0
        %3224 = vmatmul.mubr.f32.gmra.mrb[0].mxu0 %v2727
        %v3225 = vpop.f32.mrb[0].mxu0
        %v3226 = vadd.f32 0.0, %v3225
        %v3227 = vpop.f32.mrb[0].mxu0
        %v3228 = vadd.f32 0.0, %v3227
        %3229 = vmatprep.mubr.f32.mxu0 0.0
        %3230 = vmatmul.mubr.f32.gmra.mrb[0].mxu0 %v2729
        %v3231 = vpop.f32.mrb[0].mxu0
        %v3232 = vadd.f32 0.0, %v3231
        %v3233 = vpop.f32.mrb[0].mxu0
        %v3234 = vadd.f32 0.0, %v3233
        %3235 = vmatprep.mubr.f32.mxu0 0.0
        %3236 = vmatmul.mubr.f32.gmra.mrb[0].mxu0 %v2731
        %v3237 = vpop.f32.mrb[0].mxu0
        %v3238 = vadd.f32 0.0, %v3237
        %v3239 = vpop.f32.mrb[0].mxu0
        %v3240 = vadd.f32 0.0, %v3239
        %3241 = vmatprep.mubr.f32.mxu0 0.0
        %3242 = vmatmul.mubr.f32.gmra.mrb[0].mxu0 %v2733
        %v3243 = vpop.f32.mrb[0].mxu0
        %v3244 = vadd.f32 0.0, %v3243
        %v3245 = vpop.f32.mrb[0].mxu0
        %v3246 = vadd.f32 0.0, %v3245
        %3247 = vmatprep.mubr.f32.mxu0 0.0
        %3248 = vmatmul.mubr.f32.gmra.mrb[0].mxu0 %v2735
        %v3249 = vpop.f32.mrb[0].mxu0
        %v3250 = vadd.f32 0.0, %v3249
        %v3251 = vpop.f32.mrb[0].mxu0
        %v3252 = vadd.f32 0.0, %v3251
        %3253 = vmatprep.mubr.f32.mxu0 0.0
        %3254 = vmatmul.mubr.f32.gmra.mrb[0].mxu0 %v3001
        %v3255 = vpop.f32.mrb[0].mxu0
        %v3256 = vadd.f32 0.0, %v3255
        %v3257 = vpop.f32.mrb[0].mxu0
        %v3258 = vadd.f32 0.0, %v3257
        %3259 = vmatprep.mubr.f32.mxu0 0.0
        %3260 = vmatmul.mubr.f32.gmra.mrb[0].mxu0 %v3003
        %v3261 = vpop.f32.mrb[0].mxu0
        %v3262 = vadd.f32 0.0, %v3261
        %v3263 = vpop.f32.mrb[0].mxu0
        %v3264 = vadd.f32 0.0, %v3263
        %3265 = vdwg.mxu0
        %v3266 = vadd.f32 %v2965, %v3076
        %v3267 = vadd.f32 %v2966, %v3082
        %v3268 = vadd.f32 %v2967, %v3088
        %v3269 = vadd.f32 %v2968, %v3094
        %v3270 = vadd.f32 %v2969, %v3100
        %v3271 = vadd.f32 %v2970, %v3106
        %v3272 = vadd.f32 %v2971, %v3112
        %v3273 = vadd.f32 %v2972, %v3118
        %v3274 = vadd.f32 %v2973, %v3124
        %v3275 = vadd.f32 %v2974, %v3130
        %v3276 = vadd.f32 %v2975, %v3136
        %v3277 = vadd.f32 %v2976, %v3142
        %v3278 = vadd.f32 %v2977, %v3148
        %v3279 = vadd.f32 %v2978, %v3154
        %v3280 = vadd.f32 %v2979, %v3160
        %v3281 = vadd.f32 %v2980, %v3166
        %v3282 = vadd.f32 %v2981, %v3172
        %v3283 = vadd.f32 %v2982, %v3178
        %v3284 = vadd.f32 %v2983, %v3184
        %v3285 = vadd.f32 %v2984, %v3190
        %v3286 = vadd.f32 %v2985, %v3196
        %v3287 = vadd.f32 %v2986, %v3202
        %v3288 = vadd.f32 %v2987, %v3208
        %v3289 = vadd.f32 %v2988, %v3214
        %v3290 = vadd.f32 %v2989, %v3220
        %v3291 = vadd.f32 %v2990, %v3226
        %v3292 = vadd.f32 %v2991, %v3232
        %v3293 = vadd.f32 %v2992, %v3238
        %v3294 = vadd.f32 %v2993, %v3244
        %v3295 = vadd.f32 %v2994, %v3250
        %v3296 = vadd.f32 %v2995, %v3256
        %v3297 = vadd.f32 %v2996, %v3262
        %v3298 = vadd.f32 %v2215, %v3078
        %v3299 = vadd.f32 %v2216, %v3084
        %v3300 = vadd.f32 %v2217, %v3090
        %v3301 = vadd.f32 %v2218, %v3096
        %v3302 = vadd.f32 %v2219, %v3102
        %v3303 = vadd.f32 %v2220, %v3108
        %v3304 = vadd.f32 %v2221, %v3114
        %v3305 = vadd.f32 %v2222, %v3120
        %v3306 = vadd.f32 %v2223, %v3126
        %v3307 = vadd.f32 %v2224, %v3132
        %v3308 = vadd.f32 %v2225, %v3138
        %v3309 = vadd.f32 %v2226, %v3144
        %v3310 = vadd.f32 %v2227, %v3150
        %v3311 = vadd.f32 %v2228, %v3156
        %v3312 = vadd.f32 %v2229, %v3162
        %v3313 = vadd.f32 %v2230, %v3168
        %v3314 = vadd.f32 %v2231, %v3174
        %v3315 = vadd.f32 %v2232, %v3180
        %v3316 = vadd.f32 %v2233, %v3186
        %v3317 = vadd.f32 %v2234, %v3192
        %v3318 = vadd.f32 %v2235, %v3198
        %v3319 = vadd.f32 %v2236, %v3204
        %v3320 = vadd.f32 %v2237, %v3210
        %v3321 = vadd.f32 %v2238, %v3216
        %v3322 = vadd.f32 %v2239, %v3222
        %v3323 = vadd.f32 %v2240, %v3228
        %v3324 = vadd.f32 %v2241, %v3234
        %v3325 = vadd.f32 %v2242, %v3240
        %v3326 = vadd.f32 %v2243, %v3246
        %v3327 = vadd.f32 %v2244, %v3252
        %v3328 = vadd.f32 %v2245, %v3258
        %v3329 = vadd.f32 %v2246, %v3264
        %s3330 = scalar_lea.vmem [#allocation2], 96
        %v3331 = vld [vmem:[%s3330 + $0x4] sm:$0xf]
        %v3332 = vsel %vm322, %v2668, 0
        %v3334 = vsel %vm322, %v2670, 0
        %v3337 = vsel %vm419, %v3331, 0
        %3339 = vmatprep.subr.mxu0 0.0
        %3340 = vmatpush1.msra.mxu0 %v3337
        %3341 = vmatprep.subr.mxu0 0.0
        %3342 = vmatpush1.msra.mxu0 0.0
        %3343 = vmatprep.subr.mxu0 0.0
        %3344 = vmatpush1.msra.mxu0 0.0
        %3345 = vmatprep.subr.mxu0 0.0
        %3346 = vmatpush1.msra.mxu0 0.0
        %3347 = vmatprep.subr.mxu0 0.0
        %3348 = vmatpush1.msra.mxu0 0.0
        %3349 = vmatprep.subr.mxu0 0.0
        %3350 = vmatpush1.msra.mxu0 0.0
        %3351 = vmatprep.subr.mxu0 0.0
        %3352 = vmatpush1.msra.mxu0 0.0
        %3353 = vmatprep.subr.mxu0 0.0
        %3354 = vmatpush1.msra.mxu0 0.0
        %3355 = vmatprep.subr.mxu0 0.0
        %3356 = vmatpush1.msra.mxu0 0.0
        %3357 = vmatprep.subr.mxu0 0.0
        %3358 = vmatpush1.msra.mxu0 0.0
        %3359 = vmatprep.subr.mxu0 0.0
        %3360 = vmatpush1.msra.mxu0 0.0
        %3361 = vmatprep.subr.mxu0 0.0
        %3362 = vmatpush1.msra.mxu0 0.0
        %3363 = vmatprep.subr.mxu0 0.0
        %3364 = vmatpush1.msra.mxu0 0.0
        %3365 = vmatprep.subr.mxu0 0.0
        %3366 = vmatpush1.msra.mxu0 0.0
        %3367 = vmatprep.subr.mxu0 0.0
        %3368 = vmatpush1.msra.mxu0 0.0
        %3369 = vmatprep.subr.mxu0 0.0
        %3370 = vmatpush1.msra.mxu0 0.0
        %3371 = vmatprep.subr.mxu0 0.0
        %3372 = vmatpush1.msra.mxu0 0.0
        %3373 = vmatprep.subr.mxu0 0.0
        %3374 = vmatpush1.msra.mxu0 0.0
        %3375 = vmatprep.subr.mxu0 0.0
        %3376 = vmatpush1.msra.mxu0 0.0
        %3377 = vmatprep.subr.mxu0 0.0
        %3378 = vmatpush1.msra.mxu0 0.0
        %3379 = vmatprep.subr.mxu0 0.0
        %3380 = vmatpush1.msra.mxu0 0.0
        %3381 = vmatprep.subr.mxu0 0.0
        %3382 = vmatpush1.msra.mxu0 0.0
        %3383 = vmatprep.subr.mxu0 0.0
        %3384 = vmatpush1.msra.mxu0 0.0
        %3385 = vmatprep.subr.mxu0 0.0
        %3386 = vmatpush1.msra.mxu0 0.0
        %3387 = vmatprep.subr.mxu0 0.0
        %3388 = vmatpush1.msra.mxu0 0.0
        %3389 = vmatprep.subr.mxu0 0.0
        %3390 = vmatpush1.msra.mxu0 0.0
        %3391 = vmatprep.subr.mxu0 0.0
        %3392 = vmatpush1.msra.mxu0 0.0
        %3393 = vmatprep.subr.mxu0 0.0
        %3394 = vmatpush1.msra.mxu0 0.0
        %3395 = vmatprep.subr.mxu0 0.0
        %3396 = vmatpush1.msra.mxu0 0.0
        %3397 = vmatprep.subr.mxu0 0.0
        %3398 = vmatpush1.msra.mxu0 0.0
        %3399 = vmatprep.subr.mxu0 0.0
        %3400 = vmatpush1.msra.mxu0 0.0
        %3401 = vmatprep.subr.mxu0 0.0
        %3402 = vmatpush1.msra.mxu0 0.0
        %3403 = vmatprep.mubr.f32.mxu0 0.0
        %3404 = vmatmul.mubr.f32.gmra.mrb[0].mxu0 %v2681
        %v3405 = vpop.f32.mrb[0].mxu0
        %v3406 = vadd.f32 0.0, %v3405
        %v3407 = vpop.f32.mrb[0].mxu0
        %3408 = vmatprep.mubr.f32.mxu0 0.0
        %3409 = vmatmul.mubr.f32.gmra.mrb[0].mxu0 %v2683
        %v3410 = vpop.f32.mrb[0].mxu0
        %v3411 = vadd.f32 0.0, %v3410
        %v3412 = vpop.f32.mrb[0].mxu0
        %3413 = vmatprep.mubr.f32.mxu0 0.0
        %3414 = vmatmul.mubr.f32.gmra.mrb[0].mxu0 %v2685
        %v3415 = vpop.f32.mrb[0].mxu0
        %v3416 = vadd.f32 0.0, %v3415
        %v3417 = vpop.f32.mrb[0].mxu0
        %3418 = vmatprep.mubr.f32.mxu0 0.0
        %3419 = vmatmul.mubr.f32.gmra.mrb[0].mxu0 %v2687
        %v3420 = vpop.f32.mrb[0].mxu0
        %v3421 = vadd.f32 0.0, %v3420
        %v3422 = vpop.f32.mrb[0].mxu0
        %3423 = vmatprep.mubr.f32.mxu0 0.0
        %3424 = vmatmul.mubr.f32.gmra.mrb[0].mxu0 %v2689
        %v3425 = vpop.f32.mrb[0].mxu0
        %v3426 = vadd.f32 0.0, %v3425
        %v3427 = vpop.f32.mrb[0].mxu0
        %3428 = vmatprep.mubr.f32.mxu0 0.0
        %3429 = vmatmul.mubr.f32.gmra.mrb[0].mxu0 %v2691
        %v3430 = vpop.f32.mrb[0].mxu0
        %v3431 = vadd.f32 0.0, %v3430
        %v3432 = vpop.f32.mrb[0].mxu0
        %3433 = vmatprep.mubr.f32.mxu0 0.0
        %3434 = vmatmul.mubr.f32.gmra.mrb[0].mxu0 %v2693
        %v3435 = vpop.f32.mrb[0].mxu0
        %v3436 = vadd.f32 0.0, %v3435
        %v3437 = vpop.f32.mrb[0].mxu0
        %3438 = vmatprep.mubr.f32.mxu0 0.0
        %3439 = vmatmul.mubr.f32.gmra.mrb[0].mxu0 %v2695
        %v3440 = vpop.f32.mrb[0].mxu0
        %v3441 = vadd.f32 0.0, %v3440
        %v3442 = vpop.f32.mrb[0].mxu0
        %3443 = vmatprep.mubr.f32.mxu0 0.0
        %3444 = vmatmul.mubr.f32.gmra.mrb[0].mxu0 %v2697
        %v3445 = vpop.f32.mrb[0].mxu0
        %v3446 = vadd.f32 0.0, %v3445
        %v3447 = vpop.f32.mrb[0].mxu0
        %3448 = vmatprep.mubr.f32.mxu0 0.0
        %3449 = vmatmul.mubr.f32.gmra.mrb[0].mxu0 %v2699
        %v3450 = vpop.f32.mrb[0].mxu0
        %v3451 = vadd.f32 0.0, %v3450
        %v3452 = vpop.f32.mrb[0].mxu0
        %3453 = vmatprep.mubr.f32.mxu0 0.0
        %3454 = vmatmul.mubr.f32.gmra.mrb[0].mxu0 %v2701
        %v3455 = vpop.f32.mrb[0].mxu0
        %v3456 = vadd.f32 0.0, %v3455
        %v3457 = vpop.f32.mrb[0].mxu0
        %3458 = vmatprep.mubr.f32.mxu0 0.0
        %3459 = vmatmul.mubr.f32.gmra.mrb[0].mxu0 %v2703
        %v3460 = vpop.f32.mrb[0].mxu0
        %v3461 = vadd.f32 0.0, %v3460
        %v3462 = vpop.f32.mrb[0].mxu0
        %3463 = vmatprep.mubr.f32.mxu0 0.0
        %3464 = vmatmul.mubr.f32.gmra.mrb[0].mxu0 %v2705
        %v3465 = vpop.f32.mrb[0].mxu0
        %v3466 = vadd.f32 0.0, %v3465
        %v3467 = vpop.f32.mrb[0].mxu0
        %3468 = vmatprep.mubr.f32.mxu0 0.0
        %3469 = vmatmul.mubr.f32.gmra.mrb[0].mxu0 %v2707
        %v3470 = vpop.f32.mrb[0].mxu0
        %v3471 = vadd.f32 0.0, %v3470
        %v3472 = vpop.f32.mrb[0].mxu0
        %3473 = vmatprep.mubr.f32.mxu0 0.0
        %3474 = vmatmul.mubr.f32.gmra.mrb[0].mxu0 %v2709
        %v3475 = vpop.f32.mrb[0].mxu0
        %v3476 = vadd.f32 0.0, %v3475
        %v3477 = vpop.f32.mrb[0].mxu0
        %3478 = vmatprep.mubr.f32.mxu0 0.0
        %3479 = vmatmul.mubr.f32.gmra.mrb[0].mxu0 %v2711
        %v3480 = vpop.f32.mrb[0].mxu0
        %v3481 = vadd.f32 0.0, %v3480
        %v3482 = vpop.f32.mrb[0].mxu0
        %3483 = vmatprep.mubr.f32.mxu0 0.0
        %3484 = vmatmul.mubr.f32.gmra.mrb[0].mxu0 %v2713
        %v3485 = vpop.f32.mrb[0].mxu0
        %v3486 = vadd.f32 0.0, %v3485
        %v3487 = vpop.f32.mrb[0].mxu0
        %3488 = vmatprep.mubr.f32.mxu0 0.0
        %3489 = vmatmul.mubr.f32.gmra.mrb[0].mxu0 %v2715
        %v3490 = vpop.f32.mrb[0].mxu0
        %v3491 = vadd.f32 0.0, %v3490
        %v3492 = vpop.f32.mrb[0].mxu0
        %3493 = vmatprep.mubr.f32.mxu0 0.0
        %3494 = vmatmul.mubr.f32.gmra.mrb[0].mxu0 %v2717
        %v3495 = vpop.f32.mrb[0].mxu0
        %v3496 = vadd.f32 0.0, %v3495
        %v3497 = vpop.f32.mrb[0].mxu0
        %3498 = vmatprep.mubr.f32.mxu0 0.0
        %3499 = vmatmul.mubr.f32.gmra.mrb[0].mxu0 %v2719
        %v3500 = vpop.f32.mrb[0].mxu0
        %v3501 = vadd.f32 0.0, %v3500
        %v3502 = vpop.f32.mrb[0].mxu0
        %3503 = vmatprep.mubr.f32.mxu0 0.0
        %3504 = vmatmul.mubr.f32.gmra.mrb[0].mxu0 %v2721
        %v3505 = vpop.f32.mrb[0].mxu0
        %v3506 = vadd.f32 0.0, %v3505
        %v3507 = vpop.f32.mrb[0].mxu0
        %3508 = vmatprep.mubr.f32.mxu0 0.0
        %3509 = vmatmul.mubr.f32.gmra.mrb[0].mxu0 %v2723
        %v3510 = vpop.f32.mrb[0].mxu0
        %v3511 = vadd.f32 0.0, %v3510
        %v3512 = vpop.f32.mrb[0].mxu0
        %3513 = vmatprep.mubr.f32.mxu0 0.0
        %3514 = vmatmul.mubr.f32.gmra.mrb[0].mxu0 %v2725
        %v3515 = vpop.f32.mrb[0].mxu0
        %v3516 = vadd.f32 0.0, %v3515
        %v3517 = vpop.f32.mrb[0].mxu0
        %3518 = vmatprep.mubr.f32.mxu0 0.0
        %3519 = vmatmul.mubr.f32.gmra.mrb[0].mxu0 %v2727
        %v3520 = vpop.f32.mrb[0].mxu0
        %v3521 = vadd.f32 0.0, %v3520
        %v3522 = vpop.f32.mrb[0].mxu0
        %3523 = vmatprep.mubr.f32.mxu0 0.0
        %3524 = vmatmul.mubr.f32.gmra.mrb[0].mxu0 %v2729
        %v3525 = vpop.f32.mrb[0].mxu0
        %v3526 = vadd.f32 0.0, %v3525
        %v3527 = vpop.f32.mrb[0].mxu0
        %3528 = vmatprep.mubr.f32.mxu0 0.0
        %3529 = vmatmul.mubr.f32.gmra.mrb[0].mxu0 %v2731
        %v3530 = vpop.f32.mrb[0].mxu0
        %v3531 = vadd.f32 0.0, %v3530
        %v3532 = vpop.f32.mrb[0].mxu0
        %3533 = vmatprep.mubr.f32.mxu0 0.0
        %3534 = vmatmul.mubr.f32.gmra.mrb[0].mxu0 %v2733
        %v3535 = vpop.f32.mrb[0].mxu0
        %v3536 = vadd.f32 0.0, %v3535
        %v3537 = vpop.f32.mrb[0].mxu0
        %3538 = vmatprep.mubr.f32.mxu0 0.0
        %3539 = vmatmul.mubr.f32.gmra.mrb[0].mxu0 %v2735
        %v3540 = vpop.f32.mrb[0].mxu0
        %v3541 = vadd.f32 0.0, %v3540
        %v3542 = vpop.f32.mrb[0].mxu0
        %3543 = vmatprep.mubr.f32.mxu0 0.0
        %3544 = vmatmul.mubr.f32.gmra.mrb[0].mxu0 %v3001
        %v3545 = vpop.f32.mrb[0].mxu0
        %v3546 = vadd.f32 0.0, %v3545
        %v3547 = vpop.f32.mrb[0].mxu0
        %3548 = vmatprep.mubr.f32.mxu0 0.0
        %3549 = vmatmul.mubr.f32.gmra.mrb[0].mxu0 %v3003
        %v3550 = vpop.f32.mrb[0].mxu0
        %v3551 = vadd.f32 0.0, %v3550
        %v3552 = vpop.f32.mrb[0].mxu0
        %3553 = vmatprep.mubr.f32.mxu0 0.0
        %3554 = vmatmul.mubr.f32.gmra.mrb[0].mxu0 %v3332
        %v3555 = vpop.f32.mrb[0].mxu0
        %v3556 = vadd.f32 0.0, %v3555
        %v3557 = vpop.f32.mrb[0].mxu0
        %3558 = vmatprep.mubr.f32.mxu0 0.0
        %3559 = vmatmul.mubr.f32.gmra.mrb[0].mxu0 %v3334
        %v3560 = vpop.f32.mrb[0].mxu0
        %v3561 = vadd.f32 0.0, %v3560
        %v3562 = vpop.f32.mrb[0].mxu0
        %3563 = vdwg.mxu0
        %v3564 = vadd.f32 %v3266, %v3406
        %v3565 = vadd.f32 %v3267, %v3411
        %v3566 = vadd.f32 %v3268, %v3416
        %v3567 = vadd.f32 %v3269, %v3421
        %v3568 = vadd.f32 %v3270, %v3426
        %v3569 = vadd.f32 %v3271, %v3431
        %v3570 = vadd.f32 %v3272, %v3436
        %v3571 = vadd.f32 %v3273, %v3441
        %v3572 = vadd.f32 %v3274, %v3446
        %v3573 = vadd.f32 %v3275, %v3451
        %v3574 = vadd.f32 %v3276, %v3456
        %v3575 = vadd.f32 %v3277, %v3461
        %v3576 = vadd.f32 %v3278, %v3466
        %v3577 = vadd.f32 %v3279, %v3471
        %v3578 = vadd.f32 %v3280, %v3476
        %v3579 = vadd.f32 %v3281, %v3481
        %v3580 = vadd.f32 %v3282, %v3486
        %v3581 = vadd.f32 %v3283, %v3491
        %v3582 = vadd.f32 %v3284, %v3496
        %v3583 = vadd.f32 %v3285, %v3501
        %v3584 = vadd.f32 %v3286, %v3506
        %v3585 = vadd.f32 %v3287, %v3511
        %v3586 = vadd.f32 %v3288, %v3516
        %v3587 = vadd.f32 %v3289, %v3521
        %v3588 = vadd.f32 %v3290, %v3526
        %v3589 = vadd.f32 %v3291, %v3531
        %v3590 = vadd.f32 %v3292, %v3536
        %v3591 = vadd.f32 %v3293, %v3541
        %v3592 = vadd.f32 %v3294, %v3546
        %v3593 = vadd.f32 %v3295, %v3551
        %v3594 = vadd.f32 %v3296, %v3556
        %v3595 = vadd.f32 %v3297, %v3561
        // Predicated region
        $region67: #{tpu_custom_call.1} parent=23 // pred_check
          %p3596 = pneg %p175
        $region68: #{tpu_custom_call.1} parent=23 // pred_check_branch
          %3598 = sbr.rel (%p3596) target = $region70
        $region69: #{tpu_custom_call.1} parent=23 // pred_region
          %v3599 = vlaneseq
          %vm3600 = vcmp.ge.s32.totalorder %v3599, 0
          %vm3601 = vcmp.lt.s32.totalorder %v3599, 384
          %vm3602 = vmand %vm3600, %vm3601
          %3603 = vst.msk [vmem:[%s158] sm:$0x7] %vm3602, 0.0
          %3604 = vst.msk [vmem:[%s165] sm:$0x7] %vm3602, 0.0
        $region70: #{tpu_custom_call.1} parent=23 // pred_fallthru
          _
        %v3605 = vld [vmem:[%s158] sm:$0x1]
        %v3606 = vadd.f32 %v2516, %v2517
        %v3607 = vadd.f32 %v3606, %v2518
        %v3608 = vadd.f32 %v3607, %v2519
        %v3609 = vadd.f32 %v3608, %v2520
        %v3610 = vadd.f32 %v3609, %v2521
        %v3611 = vadd.f32 %v3610, %v2522
        %v3612 = vadd.f32 %v3611, %v2523
        %v3613 = vadd.f32 %v3612, %v2524
        %v3614 = vadd.f32 %v3613, %v2525
        %v3615 = vadd.f32 %v3614, %v2526
        %v3616 = vadd.f32 %v3615, %v2527
        %v3617 = vadd.f32 %v3616, %v2528
        %v3618 = vadd.f32 %v3617, %v2529
        %v3619 = vadd.f32 %v3618, %v2530
        %v3620 = vadd.f32 %v3619, %v2531
        %v3621 = vadd.f32 %v3620, %v2532
        %v3622 = vadd.f32 %v3621, %v2533
        %v3623 = vadd.f32 %v3622, %v2534
        %v3624 = vadd.f32 %v3623, %v2535
        %v3625 = vadd.f32 %v3624, %v2536
        %v3626 = vadd.f32 %v3625, %v2537
        %v3627 = vadd.f32 %v3626, %v2538
        %v3628 = vadd.f32 %v3627, %v2539
        %v3629 = vadd.f32 %v3628, %v2540
        %v3630 = vadd.f32 %v3629, %v2541
        %v3631 = vadd.f32 %v3630, %v2542
        %v3632 = vadd.f32 %v3631, %v2543
        %v3633 = vadd.f32 %v3632, %v2544
        %v3634 = vadd.f32 %v3633, %v2545
        %v3635 = vadd.f32 %v3634, %v2546
        %v3636 = vadd.f32 %v3635, %v2547
        %v3637 = vrot.slane %v3636, 4
        %v3638 = vadd.f32 %v3636, %v3637
        %v3639 = vrot.slane %v3638, 2
        %v3640 = vadd.f32 %v3638, %v3639
        %v3641 = vrot.slane %v3640, 1
        %v3642 = vadd.f32 %v3640, %v3641
        %v3643 = vadd.f32 %v3605, %v3642
        %v3644 = vlaneseq
        %vm3645 = vcmp.ge.s32.totalorder %v3644, 0
        %vm3646 = vcmp.lt.s32.totalorder %v3644, 128
        %vm3647 = vmand %vm3645, %vm3646
        %3648 = vst.msk [vmem:[%s158] sm:$0x1] %vm3647, %v3643
        %v3649 = vld [vmem:[%s165] sm:$0x1]
        %v3650 = vmul.f32 %v2516, %v2516
        %v3651 = vmul.f32 %v2517, %v2517
        %v3652 = vmul.f32 %v2518, %v2518
        %v3653 = vmul.f32 %v2519, %v2519
        %v3654 = vmul.f32 %v2520, %v2520
        %v3655 = vmul.f32 %v2521, %v2521
        %v3656 = vmul.f32 %v2522, %v2522
        %v3657 = vmul.f32 %v2523, %v2523
        %v3658 = vmul.f32 %v2524, %v2524
        %v3659 = vmul.f32 %v2525, %v2525
        %v3660 = vmul.f32 %v2526, %v2526
        %v3661 = vmul.f32 %v2527, %v2527
        %v3662 = vmul.f32 %v2528, %v2528
        %v3663 = vmul.f32 %v2529, %v2529
        %v3664 = vmul.f32 %v2530, %v2530
        %v3665 = vmul.f32 %v2531, %v2531
        %v3666 = vmul.f32 %v2532, %v2532
        %v3667 = vmul.f32 %v2533, %v2533
        %v3668 = vmul.f32 %v2534, %v2534
        %v3669 = vmul.f32 %v2535, %v2535
        %v3670 = vmul.f32 %v2536, %v2536
        %v3671 = vmul.f32 %v2537, %v2537
        %v3672 = vmul.f32 %v2538, %v2538
        %v3673 = vmul.f32 %v2539, %v2539
        %v3674 = vmul.f32 %v2540, %v2540
        %v3675 = vmul.f32 %v2541, %v2541
        %v3676 = vmul.f32 %v2542, %v2542
        %v3677 = vmul.f32 %v2543, %v2543
        %v3678 = vmul.f32 %v2544, %v2544
        %v3679 = vmul.f32 %v2545, %v2545
        %v3680 = vmul.f32 %v2546, %v2546
        %v3681 = vmul.f32 %v2547, %v2547
        %v3682 = vadd.f32 %v3650, %v3651
        %v3683 = vadd.f32 %v3682, %v3652
        %v3684 = vadd.f32 %v3683, %v3653
        %v3685 = vadd.f32 %v3684, %v3654
        %v3686 = vadd.f32 %v3685, %v3655
        %v3687 = vadd.f32 %v3686, %v3656
        %v3688 = vadd.f32 %v3687, %v3657
        %v3689 = vadd.f32 %v3688, %v3658
        %v3690 = vadd.f32 %v3689, %v3659
        %v3691 = vadd.f32 %v3690, %v3660
        %v3692 = vadd.f32 %v3691, %v3661
        %v3693 = vadd.f32 %v3692, %v3662
        %v3694 = vadd.f32 %v3693, %v3663
        %v3695 = vadd.f32 %v3694, %v3664
        %v3696 = vadd.f32 %v3695, %v3665
        %v3697 = vadd.f32 %v3696, %v3666
        %v3698 = vadd.f32 %v3697, %v3667
        %v3699 = vadd.f32 %v3698, %v3668
        %v3700 = vadd.f32 %v3699, %v3669
        %v3701 = vadd.f32 %v3700, %v3670
        %v3702 = vadd.f32 %v3701, %v3671
        %v3703 = vadd.f32 %v3702, %v3672
        %v3704 = vadd.f32 %v3703, %v3673
        %v3705 = vadd.f32 %v3704, %v3674
        %v3706 = vadd.f32 %v3705, %v3675
        %v3707 = vadd.f32 %v3706, %v3676
        %v3708 = vadd.f32 %v3707, %v3677
        %v3709 = vadd.f32 %v3708, %v3678
        %v3710 = vadd.f32 %v3709, %v3679
        %v3711 = vadd.f32 %v3710, %v3680
        %v3712 = vadd.f32 %v3711, %v3681
        %v3713 = vrot.slane %v3712, 4
        %v3714 = vadd.f32 %v3712, %v3713
        %v3715 = vrot.slane %v3714, 2
        %v3716 = vadd.f32 %v3714, %v3715
        %v3717 = vrot.slane %v3716, 1
        %v3718 = vadd.f32 %v3716, %v3717
        %v3719 = vadd.f32 %v3649, %v3718
        %3720 = vst.msk [vmem:[%s165] sm:$0x1] %vm3647, %v3719
        %v3721 = vld [vmem:[%s158 + $0x1] sm:$0x1]
        %v3722 = vadd.f32 %v3564, %v3565
        %v3723 = vadd.f32 %v3722, %v3566
        %v3724 = vadd.f32 %v3723, %v3567
        %v3725 = vadd.f32 %v3724, %v3568
        %v3726 = vadd.f32 %v3725, %v3569
        %v3727 = vadd.f32 %v3726, %v3570
        %v3728 = vadd.f32 %v3727, %v3571
        %v3729 = vadd.f32 %v3728, %v3572
        %v3730 = vadd.f32 %v3729, %v3573
        %v3731 = vadd.f32 %v3730, %v3574
        %v3732 = vadd.f32 %v3731, %v3575
        %v3733 = vadd.f32 %v3732, %v3576
        %v3734 = vadd.f32 %v3733, %v3577
        %v3735 = vadd.f32 %v3734, %v3578
        %v3736 = vadd.f32 %v3735, %v3579
        %v3737 = vadd.f32 %v3736, %v3580
        %v3738 = vadd.f32 %v3737, %v3581
        %v3739 = vadd.f32 %v3738, %v3582
        %v3740 = vadd.f32 %v3739, %v3583
        %v3741 = vadd.f32 %v3740, %v3584
        %v3742 = vadd.f32 %v3741, %v3585
        %v3743 = vadd.f32 %v3742, %v3586
        %v3744 = vadd.f32 %v3743, %v3587
        %v3745 = vadd.f32 %v3744, %v3588
        %v3746 = vadd.f32 %v3745, %v3589
        %v3747 = vadd.f32 %v3746, %v3590
        %v3748 = vadd.f32 %v3747, %v3591
        %v3749 = vadd.f32 %v3748, %v3592
        %v3750 = vadd.f32 %v3749, %v3593
        %v3751 = vadd.f32 %v3750, %v3594
        %v3752 = vadd.f32 %v3751, %v3595
        %v3753 = vrot.slane %v3752, 4
        %v3754 = vadd.f32 %v3752, %v3753
        %v3755 = vrot.slane %v3754, 2
        %v3756 = vadd.f32 %v3754, %v3755
        %v3757 = vrot.slane %v3756, 1
        %v3758 = vadd.f32 %v3756, %v3757
        %v3759 = vadd.f32 %v3721, %v3758
        %3760 = vst.msk [vmem:[%s158 + $0x1] sm:$0x1] %vm3647, %v3759
        %v3761 = vld [vmem:[%s165 + $0x1] sm:$0x1]
        %v3762 = vmul.f32 %v3564, %v3564
        %v3763 = vmul.f32 %v3565, %v3565
        %v3764 = vmul.f32 %v3566, %v3566
        %v3765 = vmul.f32 %v3567, %v3567
        %v3766 = vmul.f32 %v3568, %v3568
        %v3767 = vmul.f32 %v3569, %v3569
        %v3768 = vmul.f32 %v3570, %v3570
        %v3769 = vmul.f32 %v3571, %v3571
        %v3770 = vmul.f32 %v3572, %v3572
        %v3771 = vmul.f32 %v3573, %v3573
        %v3772 = vmul.f32 %v3574, %v3574
        %v3773 = vmul.f32 %v3575, %v3575
        %v3774 = vmul.f32 %v3576, %v3576
        %v3775 = vmul.f32 %v3577, %v3577
        %v3776 = vmul.f32 %v3578, %v3578
        %v3777 = vmul.f32 %v3579, %v3579
        %v3778 = vmul.f32 %v3580, %v3580
        %v3779 = vmul.f32 %v3581, %v3581
        %v3780 = vmul.f32 %v3582, %v3582
        %v3781 = vmul.f32 %v3583, %v3583
        %v3782 = vmul.f32 %v3584, %v3584
        %v3783 = vmul.f32 %v3585, %v3585
        %v3784 = vmul.f32 %v3586, %v3586
        %v3785 = vmul.f32 %v3587, %v3587
        %v3786 = vmul.f32 %v3588, %v3588
        %v3787 = vmul.f32 %v3589, %v3589
        %v3788 = vmul.f32 %v3590, %v3590
        %v3789 = vmul.f32 %v3591, %v3591
        %v3790 = vmul.f32 %v3592, %v3592
        %v3791 = vmul.f32 %v3593, %v3593
        %v3792 = vmul.f32 %v3594, %v3594
        %v3793 = vmul.f32 %v3595, %v3595
        %v3794 = vadd.f32 %v3762, %v3763
        %v3795 = vadd.f32 %v3794, %v3764
        %v3796 = vadd.f32 %v3795, %v3765
        %v3797 = vadd.f32 %v3796, %v3766
        %v3798 = vadd.f32 %v3797, %v3767
        %v3799 = vadd.f32 %v3798, %v3768
        %v3800 = vadd.f32 %v3799, %v3769
        %v3801 = vadd.f32 %v3800, %v3770
        %v3802 = vadd.f32 %v3801, %v3771
        %v3803 = vadd.f32 %v3802, %v3772
        %v3804 = vadd.f32 %v3803, %v3773
        %v3805 = vadd.f32 %v3804, %v3774
        %v3806 = vadd.f32 %v3805, %v3775
        %v3807 = vadd.f32 %v3806, %v3776
        %v3808 = vadd.f32 %v3807, %v3777
        %v3809 = vadd.f32 %v3808, %v3778
        %v3810 = vadd.f32 %v3809, %v3779
        %v3811 = vadd.f32 %v3810, %v3780
        %v3812 = vadd.f32 %v3811, %v3781
        %v3813 = vadd.f32 %v3812, %v3782
        %v3814 = vadd.f32 %v3813, %v3783
        %v3815 = vadd.f32 %v3814, %v3784
        %v3816 = vadd.f32 %v3815, %v3785
        %v3817 = vadd.f32 %v3816, %v3786
        %v3818 = vadd.f32 %v3817, %v3787
        %v3819 = vadd.f32 %v3818, %v3788
        %v3820 = vadd.f32 %v3819, %v3789
        %v3821 = vadd.f32 %v3820, %v3790
        %v3822 = vadd.f32 %v3821, %v3791
        %v3823 = vadd.f32 %v3822, %v3792
        %v3824 = vadd.f32 %v3823, %v3793
        %v3825 = vrot.slane %v3824, 4
        %v3826 = vadd.f32 %v3824, %v3825
        %v3827 = vrot.slane %v3826, 2
        %v3828 = vadd.f32 %v3826, %v3827
        %v3829 = vrot.slane %v3828, 1
        %v3830 = vadd.f32 %v3828, %v3829
        %v3831 = vadd.f32 %v3761, %v3830
        %3832 = vst.msk [vmem:[%s165 + $0x1] sm:$0x1] %vm3647, %v3831
        %v3833 = vld [vmem:[%s158 + $0x2] sm:$0x1]
        %v3834 = vadd.f32 %v3298, %v3299
        %v3835 = vadd.f32 %v3834, %v3300
        %v3836 = vadd.f32 %v3835, %v3301
        %v3837 = vadd.f32 %v3836, %v3302
        %v3838 = vadd.f32 %v3837, %v3303
        %v3839 = vadd.f32 %v3838, %v3304
        %v3840 = vadd.f32 %v3839, %v3305
        %v3841 = vadd.f32 %v3840, %v3306
        %v3842 = vadd.f32 %v3841, %v3307
        %v3843 = vadd.f32 %v3842, %v3308
        %v3844 = vadd.f32 %v3843, %v3309
        %v3845 = vadd.f32 %v3844, %v3310
        %v3846 = vadd.f32 %v3845, %v3311
        %v3847 = vadd.f32 %v3846, %v3312
        %v3848 = vadd.f32 %v3847, %v3313
        %v3849 = vadd.f32 %v3848, %v3314
        %v3850 = vadd.f32 %v3849, %v3315
        %v3851 = vadd.f32 %v3850, %v3316
        %v3852 = vadd.f32 %v3851, %v3317
        %v3853 = vadd.f32 %v3852, %v3318
        %v3854 = vadd.f32 %v3853, %v3319
        %v3855 = vadd.f32 %v3854, %v3320
        %v3856 = vadd.f32 %v3855, %v3321
        %v3857 = vadd.f32 %v3856, %v3322
        %v3858 = vadd.f32 %v3857, %v3323
        %v3859 = vadd.f32 %v3858, %v3324
        %v3860 = vadd.f32 %v3859, %v3325
        %v3861 = vadd.f32 %v3860, %v3326
        %v3862 = vadd.f32 %v3861, %v3327
        %v3863 = vadd.f32 %v3862, %v3328
        %v3864 = vadd.f32 %v3863, %v3329
        %v3865 = vrot.slane %v3864, 4
        %v3866 = vadd.f32 %v3864, %v3865
        %v3867 = vrot.slane %v3866, 2
        %v3868 = vadd.f32 %v3866, %v3867
        %v3869 = vrot.slane %v3868, 1
        %v3870 = vadd.f32 %v3868, %v3869
        %v3871 = vadd.f32 %v3833, %v3870
        %3872 = vst.msk [vmem:[%s158 + $0x2] sm:$0x1] %vm3647, %v3871
        %v3873 = vld [vmem:[%s165 + $0x2] sm:$0x1]
        %v3874 = vmul.f32 %v3298, %v3298
        %v3875 = vmul.f32 %v3299, %v3299
        %v3876 = vmul.f32 %v3300, %v3300
        %v3877 = vmul.f32 %v3301, %v3301
        %v3878 = vmul.f32 %v3302, %v3302
        %v3879 = vmul.f32 %v3303, %v3303
        %v3880 = vmul.f32 %v3304, %v3304
        %v3881 = vmul.f32 %v3305, %v3305
        %v3882 = vmul.f32 %v3306, %v3306
        %v3883 = vmul.f32 %v3307, %v3307
        %v3884 = vmul.f32 %v3308, %v3308
        %v3885 = vmul.f32 %v3309, %v3309
        %v3886 = vmul.f32 %v3310, %v3310
        %v3887 = vmul.f32 %v3311, %v3311
        %v3888 = vmul.f32 %v3312, %v3312
        %v3889 = vmul.f32 %v3313, %v3313
        %v3890 = vmul.f32 %v3314, %v3314
        %v3891 = vmul.f32 %v3315, %v3315
        %v3892 = vmul.f32 %v3316, %v3316
        %v3893 = vmul.f32 %v3317, %v3317
        %v3894 = vmul.f32 %v3318, %v3318
        %v3895 = vmul.f32 %v3319, %v3319
        %v3896 = vmul.f32 %v3320, %v3320
        %v3897 = vmul.f32 %v3321, %v3321
        %v3898 = vmul.f32 %v3322, %v3322
        %v3899 = vmul.f32 %v3323, %v3323
        %v3900 = vmul.f32 %v3324, %v3324
        %v3901 = vmul.f32 %v3325, %v3325
        %v3902 = vmul.f32 %v3326, %v3326
        %v3903 = vmul.f32 %v3327, %v3327
        %v3904 = vmul.f32 %v3328, %v3328
        %v3905 = vmul.f32 %v3329, %v3329
        %v3906 = vadd.f32 %v3874, %v3875
        %v3907 = vadd.f32 %v3906, %v3876
        %v3908 = vadd.f32 %v3907, %v3877
        %v3909 = vadd.f32 %v3908, %v3878
        %v3910 = vadd.f32 %v3909, %v3879
        %v3911 = vadd.f32 %v3910, %v3880
        %v3912 = vadd.f32 %v3911, %v3881
        %v3913 = vadd.f32 %v3912, %v3882
        %v3914 = vadd.f32 %v3913, %v3883
        %v3915 = vadd.f32 %v3914, %v3884
        %v3916 = vadd.f32 %v3915, %v3885
        %v3917 = vadd.f32 %v3916, %v3886
        %v3918 = vadd.f32 %v3917, %v3887
        %v3919 = vadd.f32 %v3918, %v3888
        %v3920 = vadd.f32 %v3919, %v3889
        %v3921 = vadd.f32 %v3920, %v3890
        %v3922 = vadd.f32 %v3921, %v3891
        %v3923 = vadd.f32 %v3922, %v3892
        %v3924 = vadd.f32 %v3923, %v3893
        %v3925 = vadd.f32 %v3924, %v3894
        %v3926 = vadd.f32 %v3925, %v3895
        %v3927 = vadd.f32 %v3926, %v3896
        %v3928 = vadd.f32 %v3927, %v3897
        %v3929 = vadd.f32 %v3928, %v3898
        %v3930 = vadd.f32 %v3929, %v3899
        %v3931 = vadd.f32 %v3930, %v3900
        %v3932 = vadd.f32 %v3931, %v3901
        %v3933 = vadd.f32 %v3932, %v3902
        %v3934 = vadd.f32 %v3933, %v3903
        %v3935 = vadd.f32 %v3934, %v3904
        %v3936 = vadd.f32 %v3935, %v3905
        %v3937 = vrot.slane %v3936, 4
        %v3938 = vadd.f32 %v3936, %v3937
        %v3939 = vrot.slane %v3938, 2
        %v3940 = vadd.f32 %v3938, %v3939
        %v3941 = vrot.slane %v3940, 1
        %v3942 = vadd.f32 %v3940, %v3941
        %v3943 = vadd.f32 %v3873, %v3942
        %3944 = vst.msk [vmem:[%s165 + $0x2] sm:$0x1] %vm3647, %v3943
        %s3945 = sand.u32 %s69, 1
        %s3946 = scalar_lea.sflag [#allocation4], %s3945
        %s3947 = sand.u32 %s69, 1
        %s3948 = smul.addr %s3947, 3
        %s3949 = scalar_lea.vmem [#allocation3], %s3948
        %s3950 = sand.u32 %s95, 1
        %s3951 = scalar_lea.sflag [#allocation6], %s3950
        %s3952 = sand.u32 %s95, 1
        %s3953 = smul.addr %s3952, 3
        %s3954 = scalar_lea.vmem [#allocation5], %s3953
        // Predicated region
        $region71: #{tpu_custom_call.1} parent=23 // pred_check
          %p3955 = pneg %p79
        $region72: #{tpu_custom_call.1} parent=23 // pred_check_branch
          %3957 = sbr.rel (%p3955) target = $region74
        $region73: #{tpu_custom_call.1} parent=23 // pred_region
          %s3958 = smul.u32 3, %s25
          %s3960 = ssub.s32 48, 48
          %3961 = vsyncadd %s3946, %s3960
          %s3962 = smul.addr %s3958, 16
          %s3963 = scalar_lea.hbm %s2, %s3962
          %s3965 = sshll.u32 %s3949, 4
          %s3966 = int_to_ptr.vmem [resolvable:$true] %s3965
          %3968 = dma.vmem_to_hbm [thread:$0]  %s3966, 48, %s3963, %s3946
        $region74: #{tpu_custom_call.1} parent=23 // pred_fallthru
          _
        // Predicated region
        $region75: #{tpu_custom_call.1} parent=23 // pred_check
          %p3969 = pneg %p105
        $region76: #{tpu_custom_call.1} parent=23 // pred_check_branch
          %3971 = sbr.rel (%p3969) target = $region78
        $region77: #{tpu_custom_call.1} parent=23 // pred_region
          %s3972 = smul.u32 3, %s25
          %s3974 = ssub.s32 48, 48
          %3975 = vsyncadd %s3951, %s3974
          %s3976 = smul.addr %s3972, 16
          %s3977 = scalar_lea.hbm %s3, %s3976
          %s3979 = sshll.u32 %s3954, 4
          %s3980 = int_to_ptr.vmem [resolvable:$true] %s3979
          %3982 = dma.vmem_to_hbm [thread:$0]  %s3980, 48, %s3977, %s3951
        $region78: #{tpu_custom_call.1} parent=23 // pred_fallthru
          _
      $region24: #{tpu_custom_call.1} parent=5 // pred_fallthru
        _
      %p3983 = scmp.le.s32.totalorder 2, %s16
      // Predicated region
      $region79: #{tpu_custom_call.1} parent=5 // pred_check
        %p3984 = pneg %p3983
      $region80: #{tpu_custom_call.1} parent=5 // pred_check_branch
        %3986 = sbr.rel (%p3984) target = $region82
      $region81: #{tpu_custom_call.1} parent=5 // pred_region
        %s3987 = ssub.s32 %s16, 2
        // Predicated region
        $region83: #{tpu_custom_call.1} parent=81 // pred_check
          %p3988 = pneg %p85
        $region84: #{tpu_custom_call.1} parent=81 // pred_check_branch
          %3990 = sbr.rel (%p3988) target = $region86
        $region85: #{tpu_custom_call.1} parent=81 // pred_region
          %s3991 = sand.u32 %s70, 1
          %s3992 = scalar_lea.sflag [#allocation4], %s3991
          %s3993 = sand.u32 %s70, 1
          %s3994 = smul.addr %s3993, 3
          %s3995 = scalar_lea.vmem [#allocation3], %s3994
          %3996 = dma.done %s3992, 48
        $region86: #{tpu_custom_call.1} parent=81 // pred_fallthru
          _
        // Predicated region
        $region87: #{tpu_custom_call.1} parent=81 // pred_check
          %p3997 = pneg %p111
        $region88: #{tpu_custom_call.1} parent=81 // pred_check_branch
          %3999 = sbr.rel (%p3997) target = $region90
        $region89: #{tpu_custom_call.1} parent=81 // pred_region
          %s4000 = sand.u32 %s96, 1
          %s4001 = scalar_lea.sflag [#allocation6], %s4000
          %s4002 = sand.u32 %s96, 1
          %s4003 = smul.addr %s4002, 3
          %s4004 = scalar_lea.vmem [#allocation5], %s4003
          %4005 = dma.done %s4001, 48
        $region90: #{tpu_custom_call.1} parent=81 // pred_fallthru
          _
      $region82: #{tpu_custom_call.1} parent=5 // pred_fallthru
        _
    $region6: #{tpu_custom_call.1} parent=1 // loop_footer
      %s20 = sadd.s32 1, %s16
    $region7: #{tpu_custom_call.1} parent=1 // loop_footer_branch
      %15 = sbr.rel target = $region3
    $region8: #{tpu_custom_call.1} parent=1 // loop_exit
      _
    %4006 = vsyncpa [#allocation4], 1
    %s4007 = scalar_lea.sflag [#allocation4], 1
    %4008 = vsyncpa %s4007, 1
    %4009 = vsyncpa [#allocation6], 1
    %s4010 = scalar_lea.sflag [#allocation6], 1
    %4011 = vsyncpa %s4010, 1

</llo_original>
